<compile_context>
chip_gen: v5e
topology: v5e:2x2
jax: 0.10.0
libtpu: 0.0.40
codegen_flags: <defaults>
</compile_context>

<pallas_src>
import functools

import numpy as np
import jax
import jax.numpy as jnp
from jax import lax
from jax.experimental import pallas as pl
from jax.experimental.pallas import tpu as pltpu

N_TAPS = 9  # 3x3 conv


# ----------------------------------------------------------------------------
# Fused bottleneck kernel: one grid step = one batch tile, all in VMEM/vregs.
# ----------------------------------------------------------------------------
def _fused_bottleneck_kernel(x_ref, w_in_ref, b_in_ref,
                             w_cat_ref, b_mid_ref, g_mid_ref,
                             g_skip_ref, w_skip_ref, b_skip_ref,
                             w_out_ref, b_out_ref, o_ref):
    f32 = jnp.float32
    bf16 = jnp.bfloat16

    mid_p = b_mid_ref.shape[0]                 # padded mid channels (mult. of 8)
    n_taps = w_cat_ref.shape[0] // mid_p       # 9

    x = x_ref[...].astype(bf16)                # (Cin, BT*H*W)

    # in_conv: 1x1 conv + folded BN + ReLU (single dot, lanes = BT*H*W).
    h1 = jnp.dot(w_in_ref[...], x, preferred_element_type=f32) + b_in_ref[...]
    h1 = jnp.maximum(h1, 0.0).astype(bf16)     # (MID_P, BT*H*W)

    # mid_conv: 3x3 stride-2 pad-1 conv as TWO large contractions.
    #  (1) per-tap channel mix, taps stacked along sublanes (M = 9*MID_P):
    mixed = jnp.dot(w_cat_ref[...], h1, preferred_element_type=f32)  # (9*MID_P, BT*H*W)
    # layout-trivial split: MID_P equals the f32 sublane tile (8).
    mixed = mixed.reshape(n_taps, mid_p, mixed.shape[-1]).astype(bf16)
    #  (2) batched (batch = tap) one-hot spatial gather, K = BT*H*W, then a
    #      cheap 9-way VPU tap-sum.
    tapped = jnp.einsum("tcp,tpq->tcq", mixed, g_mid_ref[...],
                        preferred_element_type=f32)                  # (9, MID_P, BT*Ho*Wo)
    h2 = jnp.maximum(tapped.sum(axis=0) + b_mid_ref[...], 0.0).astype(bf16)

    # skip path: 1x1 stride-2 conv + folded BN, fused (no HBM round trip).
    xs = jnp.dot(x, g_skip_ref[...], preferred_element_type=f32).astype(bf16)  # (Cin, BT*Ho*Wo)
    res = jnp.dot(w_skip_ref[...], xs, preferred_element_type=f32) + b_skip_ref[...]

    # out_conv + residual add + final ReLU; lane-dense store (last dim = BT*Ho*Wo,
    # a multiple of 128 lanes -> unmasked vst).
    out = jnp.dot(w_out_ref[...], h2, preferred_element_type=f32) + b_out_ref[...]
    o_ref[...] = jnp.maximum(out + res, 0.0).astype(o_ref.dtype)


def bottleneck_forward(x_nchw, params, mid_channels, batch_tile):
    out_channels = 4 * mid_channels
    n, cin, h, w = x_nchw.shape
    ho, wo = h // 2, w // 2
    hw, howo = h * w, ho * wo
    bt = batch_tile
    assert n % bt == 0, "batch must be a multiple of batch_tile"
    n_tiles = n // bt
    mid_p = params["b_in"].shape[0]

    # Gather matrices are baked for a fixed (H, W, stride, batch_tile); guard
    # against calling with a mismatched resolution / tile.
    assert params["g_mid"].shape == (N_TAPS, bt * hw, bt * howo), params["g_mid"].shape
    assert params["g_skip"].shape == (bt * hw, bt * howo), params["g_skip"].shape

    # Fold the batch into the lane axis: (N,C,H,W) -> (Cin, N*H*W). One small
    # XLA transpose; every in-kernel matmul then sees >=128 dense lanes and the
    # output store is lane-dense.
    x2d = jnp.transpose(x_nchw, (1, 0, 2, 3)).reshape(cin, n * hw).astype(jnp.float32)

    # Advisory cost estimate for XLA scheduling around the fused custom call.
    flops = 2 * n * hw * mid_p * cin                                   # in_conv
    flops += 2 * n * hw * N_TAPS * mid_p * mid_p                       # tap channel mix
    flops += 2 * n_tiles * N_TAPS * mid_p * (bt * hw) * (bt * howo)    # tap gather
    flops += 2 * n_tiles * cin * (bt * hw) * (bt * howo)               # skip gather
    flops += 2 * n * howo * out_channels * cin                         # skip channel mix
    flops += 2 * n * howo * out_channels * mid_p                       # out_conv
    kernel_param_keys = ("w_in", "b_in", "w_cat", "b_mid", "g_mid",
                         "g_skip", "w_skip", "b_skip", "w_out", "b_out")
    param_bytes = sum(int(np.prod(params[k].shape)) * params[k].dtype.itemsize
                      for k in kernel_param_keys)
    io_bytes = x2d.size * 4 + out_channels * n * howo * 4
    cost = pl.CostEstimate(flops=int(flops), transcendentals=0,
                           bytes_accessed=int(param_bytes + io_bytes))

    def const_spec(arr):
        nd = arr.ndim
        return pl.BlockSpec(arr.shape, lambda i, _nd=nd: (0,) * _nd)

    out2d = pl.pallas_call(
        _fused_bottleneck_kernel,
        out_shape=jax.ShapeDtypeStruct((out_channels, n * howo), jnp.float32),
        grid=(n_tiles,),
        in_specs=[
            pl.BlockSpec((cin, bt * hw), lambda i: (0, i)),
            const_spec(params["w_in"]), const_spec(params["b_in"]),
            const_spec(params["w_cat"]), const_spec(params["b_mid"]),
            const_spec(params["g_mid"]),
            const_spec(params["g_skip"]), const_spec(params["w_skip"]),
            const_spec(params["b_skip"]),
            const_spec(params["w_out"]), const_spec(params["b_out"]),
        ],
        out_specs=pl.BlockSpec((out_channels, bt * howo), lambda i: (0, i)),
        compiler_params=pltpu.CompilerParams(
            # Megacore split only pays off with multiple, compute-bound tiles;
            # with the batch folded into lanes this demo is a single grid step.
            dimension_semantics=(("parallel",) if n_tiles > 1 else ("arbitrary",)),
            vmem_limit_bytes=32 * 1024 * 1024,
        ),
        cost_estimate=cost,
    )(x2d, params["w_in"], params["b_in"],
      params["w_cat"], params["b_mid"], params["g_mid"],
      params["g_skip"], params["w_skip"], params["b_skip"],
      params["w_out"], params["b_out"])

    # (Cout, N*Ho*Wo) -> NCHW (N, Cout, Ho, Wo).
    out = out2d.reshape(out_channels, n, ho, wo)
    return jnp.transpose(out, (1, 0, 2, 3))


# ----------------------------------------------------------------------------
# Parameter construction (conv weights, eval-mode BN folded into scale/bias,
# constant one-hot spatial-gather matrices encoding the strided conv windows).
# ----------------------------------------------------------------------------
def _conv_gather_matrices(h, w, ksize, stride, pad):
    ho = (h + 2 * pad - ksize) // stride + 1
    wo = (w + 2 * pad - ksize) // stride + 1
    mats = np.zeros((ksize * ksize, h * w, ho * wo), np.float32)
    for dy in range(ksize):
        for dx in range(ksize):
            t = dy * ksize + dx
            for oh in range(ho):
                ih = stride * oh + dy - pad
                if ih < 0 or ih >= h:
                    continue
                for ow in range(wo):
                    iw = stride * ow + dx - pad
                    if iw < 0 or iw >= w:
                        continue
                    mats[t, ih * w + iw, oh * wo + ow] = 1.0
    return mats


def fold_bn(gamma, beta, mean, var, eps=1e-5):
    scale = gamma / jnp.sqrt(var + eps)
    bias = beta - mean * scale
    return scale, bias  # (C,)


def make_params(key, in_channels, mid_channels, h, w, batch_tile):
    out_channels = 4 * mid_channels
    mid_p = max(8, -(-mid_channels // 8) * 8)   # pad mid to the f32 sublane tile
    ks = jax.random.split(key, 8)

    def conv_w(k, cout, cin, kh, kw):
        return 0.1 * jax.random.normal(k, (cout, cin, kh, kw), jnp.float32)

    def bn(k, c):
        k1, k2, k3 = jax.random.split(k, 3)
        gamma = 1.0 + 0.1 * jax.random.normal(k1, (c,), jnp.float32)
        beta = 0.1 * jax.random.normal(k2, (c,), jnp.float32)
        mean = 0.05 * jax.random.normal(k3, (c,), jnp.float32)
        var = jnp.ones((c,), jnp.float32)
        return fold_bn(gamma, beta, mean, var)

    p = {}
    # raw (conv weight, BN scale/bias) -- used by the pure-JAX reference.
    p["skip_w4"] = conv_w(ks[0], out_channels, in_channels, 1, 1)
    p["skip_scale"], p["skip_bias"] = bn(ks[1], out_channels)
    p["in_w4"] = conv_w(ks[2], mid_channels, in_channels, 1, 1)
    p["in_scale"], p["in_bias"] = bn(ks[3], mid_channels)
    p["mid_w4"] = conv_w(ks[4], mid_channels, mid_channels, 3, 3)
    p["mid_scale"], p["mid_bias"] = bn(ks[5], mid_channels)
    p["out_w4"] = conv_w(ks[6], out_channels, mid_channels, 1, 1)
    p["out_scale"], p["out_bias"] = bn(ks[7], out_channels)

    # kernel-form weights: BN scale folded, mid channel dim zero-padded to MID_P,
    # matmul operands pre-cast to bf16 (MXU-native; biases stay f32).
    bf16 = jnp.bfloat16
    w_in = np.zeros((mid_p, in_channels), np.float32)
    w_in[:mid_channels] = np.asarray(p["in_scale"][:, None] * p["in_w4"][:, :, 0, 0])
    b_in = np.zeros((mid_p, 1), np.float32)
    b_in[:mid_channels, 0] = np.asarray(p["in_bias"])

    wm = np.asarray(p["mid_scale"][:, None, None, None] * p["mid_w4"])  # (mid, mid, 3, 3)
    w_cat = np.zeros((N_TAPS * mid_p, mid_p), np.float32)  # taps stacked along rows
    for dy in range(3):
        for dx in range(3):
            t = dy * 3 + dx
            w_cat[t * mid_p:t * mid_p + mid_channels, :mid_channels] = wm[:, :, dy, dx]
    b_mid = np.zeros((mid_p, 1), np.float32)
    b_mid[:mid_channels, 0] = np.asarray(p["mid_bias"])

    w_out = np.zeros((out_channels, mid_p), np.float32)
    w_out[:, :mid_channels] = np.asarray(p["out_scale"][:, None] * p["out_w4"][:, :, 0, 0])
    w_skip = np.asarray(p["skip_scale"][:, None] * p["skip_w4"][:, :, 0, 0])

    p["w_in"] = jnp.asarray(w_in, bf16)
    p["b_in"] = jnp.asarray(b_in)
    p["w_cat"] = jnp.asarray(w_cat, bf16)
    p["b_mid"] = jnp.asarray(b_mid)
    p["w_out"] = jnp.asarray(w_out, bf16)
    p["b_out"] = jnp.asarray(p["out_bias"])[:, None]
    p["w_skip"] = jnp.asarray(w_skip, bf16)
    p["b_skip"] = jnp.asarray(p["skip_bias"])[:, None]

    # constant one-hot spatial gather matrices (conv structure, not data),
    # block-diagonal over the batch_tile images folded into the lane axis.
    # bf16 is exact for 0/1; size ~1.1 MiB here, budgeted for v7x's 64 MiB VMEM.
    g3 = _conv_gather_matrices(h, w, 3, 2, 1)          # (9, H*W, Ho*Wo)
    g1 = _conv_gather_matrices(h, w, 1, 2, 0)[0]       # (H*W, Ho*Wo)
    eye = np.eye(batch_tile, dtype=np.float32)
    g_mid = np.stack([np.kron(eye, g3[t]) for t in range(N_TAPS)], axis=0)
    g_skip = np.kron(eye, g1)
    p["g_mid"] = jnp.asarray(g_mid, bf16)
    p["g_skip"] = jnp.asarray(g_skip, bf16)
    return p


# ----------------------------------------------------------------------------
# Pure-JAX reference (for correctness check), f32 throughout.
# ----------------------------------------------------------------------------
def reference_forward(x_nchw, params, mid_channels):
    x = jnp.transpose(x_nchw, (0, 2, 3, 1)).astype(jnp.float32)

    def conv(x, w4, stride, pad):
        w_hwio = jnp.transpose(w4, (2, 3, 1, 0))
        return lax.conv_general_dilated(
            x, w_hwio, (stride, stride), [(pad, pad), (pad, pad)],
            dimension_numbers=("NHWC", "HWIO", "NHWC"))

    def bn(x, scale, bias):
        return x * scale.reshape(1, 1, 1, -1) + bias.reshape(1, 1, 1, -1)

    res = bn(conv(x, params["skip_w4"], 2, 0), params["skip_scale"], params["skip_bias"])
    h = jax.nn.relu(bn(conv(x, params["in_w4"], 1, 0), params["in_scale"], params["in_bias"]))
    h = jax.nn.relu(bn(conv(h, params["mid_w4"], 2, 1), params["mid_scale"], params["mid_bias"]))
    h = bn(conv(h, params["out_w4"], 1, 0), params["out_scale"], params["out_bias"])
    out = jax.nn.relu(h + res)
    return jnp.transpose(out, (0, 3, 1, 2))


if __name__ == "__main__":
    key = jax.random.PRNGKey(0)
    k_x, k_p = jax.random.split(key)

    in_channels, mid_channels = 8, 4          # out_channels = 16, downsample=True
    H = W = 16
    N = 2
    howo = (H // 2) * (W // 2)
    batch_tile = max(1, 128 // howo)          # enough images for >=128 output lanes
    while N % batch_tile:
        batch_tile -= 1

    x = jax.random.normal(k_x, (N, in_channels, H, W), jnp.float32)   # NCHW
    params = make_params(k_p, in_channels, mid_channels, H, W, batch_tile)

    fwd = jax.jit(functools.partial(bottleneck_forward,
                                    mid_channels=mid_channels,
                                    batch_tile=batch_tile))
    out = jax.block_until_ready(fwd(x, params))

    ref = reference_forward(x, params, mid_channels)
    assert out.shape == (N, 4 * mid_channels, H // 2, W // 2), out.shape
    max_err = float(jnp.abs(out - ref).max())
    # bf16 matmul operands (weights + activations) vs. the f32 lax.conv reference.
    assert jnp.allclose(out, ref, atol=3e-2, rtol=3e-2), max_err

    print("KERNEL_OK")
</pallas_src>

<mosaic_0001>
module attributes {stable_mosaic.version = 11 : i64} {
  func.func @_fused_bottleneck_kernel(%arg0: i32, %arg1: memref<8x512xf32, #tpu.memory_space<vmem>>, %arg2: memref<8x8xbf16, #tpu.memory_space<vmem>>, %arg3: memref<8x1xf32, #tpu.memory_space<vmem>>, %arg4: memref<72x8xbf16, #tpu.memory_space<vmem>>, %arg5: memref<8x1xf32, #tpu.memory_space<vmem>>, %arg6: memref<9x512x128xbf16, #tpu.memory_space<vmem>>, %arg7: memref<512x128xbf16, #tpu.memory_space<vmem>>, %arg8: memref<16x8xbf16, #tpu.memory_space<vmem>>, %arg9: memref<16x1xf32, #tpu.memory_space<vmem>>, %arg10: memref<16x8xbf16, #tpu.memory_space<vmem>>, %arg11: memref<16x1xf32, #tpu.memory_space<vmem>>, %arg12: memref<16x128xf32, #tpu.memory_space<vmem>>) attributes {dimension_semantics = [#tpu.dimension_semantics<arbitrary>], iteration_bounds = array<i64: 1>, scalar_prefetch = 0 : i64, scratch_operands = 0 : i64, tpu.core_type = #tpu.core_type<tc>, window_params = [{transform_indices = @transform_0, window_bounds = array<i64: 8, 512>}, {pipeline_mode = #tpu.pipeline_mode<synchronous>, transform_indices = @transform_1, window_bounds = array<i64: 8, 8>}, {pipeline_mode = #tpu.pipeline_mode<synchronous>, transform_indices = @transform_2, window_bounds = array<i64: 8, 1>}, {pipeline_mode = #tpu.pipeline_mode<synchronous>, transform_indices = @transform_3, window_bounds = array<i64: 72, 8>}, {pipeline_mode = #tpu.pipeline_mode<synchronous>, transform_indices = @transform_4, window_bounds = array<i64: 8, 1>}, {pipeline_mode = #tpu.pipeline_mode<synchronous>, transform_indices = @transform_5, window_bounds = array<i64: 9, 512, 128>}, {pipeline_mode = #tpu.pipeline_mode<synchronous>, transform_indices = @transform_6, window_bounds = array<i64: 512, 128>}, {pipeline_mode = #tpu.pipeline_mode<synchronous>, transform_indices = @transform_7, window_bounds = array<i64: 16, 8>}, {pipeline_mode = #tpu.pipeline_mode<synchronous>, transform_indices = @transform_8, window_bounds = array<i64: 16, 1>}, {pipeline_mode = #tpu.pipeline_mode<synchronous>, transform_indices = @transform_9, window_bounds = array<i64: 16, 8>}, {pipeline_mode = #tpu.pipeline_mode<synchronous>, transform_indices = @transform_10, window_bounds = array<i64: 16, 1>}, {transform_indices = @transform_11, window_bounds = array<i64: 16, 128>}]} {
    %c0 = arith.constant 0 : index
    %c0_0 = arith.constant 0 : index
    %0 = vector.load %arg1[%c0, %c0_0] : memref<8x512xf32, #tpu.memory_space<vmem>>, vector<8x512xf32>
    %1 = arith.truncf %0 : vector<8x512xf32> to vector<8x512xbf16>
    %c0_1 = arith.constant 0 : index
    %c0_2 = arith.constant 0 : index
    %2 = vector.load %arg2[%c0_1, %c0_2] : memref<8x8xbf16, #tpu.memory_space<vmem>>, vector<8x8xbf16>
    %cst = arith.constant dense<0.000000e+00> : vector<8x512xf32>
    %3 = tpu.matmul %2, %1, %cst {dimension_numbers = #tpu.dot_dimension_numbers<[1], [0], [0], [1], [0, 0, 1, 1], [], []>} : vector<8x8xbf16>, vector<8x512xbf16>, vector<8x512xf32> -> vector<8x512xf32>
    %c0_3 = arith.constant 0 : index
    %c0_4 = arith.constant 0 : index
    %4 = vector.load %arg3[%c0_3, %c0_4] : memref<8x1xf32, #tpu.memory_space<vmem>>, vector<8x1xf32>
    %5 = vector.broadcast %4 : vector<8x1xf32> to vector<8x512xf32>
    %6 = arith.addf %3, %5 : vector<8x512xf32>
    %cst_5 = arith.constant 0.000000e+00 : f32
    %7 = vector.broadcast %cst_5 : f32 to vector<8x512xf32>
    %8 = arith.maximumf %6, %7 : vector<8x512xf32>
    %9 = arith.truncf %8 : vector<8x512xf32> to vector<8x512xbf16>
    %c0_6 = arith.constant 0 : index
    %c0_7 = arith.constant 0 : index
    %10 = vector.load %arg4[%c0_6, %c0_7] : memref<72x8xbf16, #tpu.memory_space<vmem>>, vector<72x8xbf16>
    %cst_8 = arith.constant dense<0.000000e+00> : vector<72x512xf32>
    %11 = tpu.matmul %10, %9, %cst_8 {dimension_numbers = #tpu.dot_dimension_numbers<[1], [0], [0], [1], [0, 0, 1, 1], [], []>} : vector<72x8xbf16>, vector<8x512xbf16>, vector<72x512xf32> -> vector<72x512xf32>
    %12 = vector.shape_cast %11 : vector<72x512xf32> to vector<9x8x512xf32>
    %13 = arith.truncf %12 : vector<9x8x512xf32> to vector<9x8x512xbf16>
    %c0_9 = arith.constant 0 : index
    %c0_10 = arith.constant 0 : index
    %c0_11 = arith.constant 0 : index
    %14 = vector.load %arg6[%c0_9, %c0_10, %c0_11] : memref<9x512x128xbf16, #tpu.memory_space<vmem>>, vector<9x512x128xbf16>
    "tpu.trace_start"() <{level = 10 : i32, message = "tcp,tpq->tcq"}> : () -> ()
    %cst_12 = arith.constant dense<0.000000e+00> : vector<9x8x128xf32>
    %15 = tpu.matmul %13, %14, %cst_12 {dimension_numbers = #tpu.dot_dimension_numbers<[2], [1], [1], [2], [0, 0, 0, 1, 1, 2], [0], [0]>} : vector<9x8x512xbf16>, vector<9x512x128xbf16>, vector<9x8x128xf32> -> vector<9x8x128xf32>
    "tpu.trace_stop"() : () -> ()
    %cst_13 = arith.constant dense<0.000000e+00> : vector<8x128xf32>
    %16 = vector.multi_reduction <add>, %15, %cst_13 [0] : vector<9x8x128xf32> to vector<8x128xf32>
    %c0_14 = arith.constant 0 : index
    %c0_15 = arith.constant 0 : index
    %17 = vector.load %arg5[%c0_14, %c0_15] : memref<8x1xf32, #tpu.memory_space<vmem>>, vector<8x1xf32>
    %18 = vector.broadcast %17 : vector<8x1xf32> to vector<8x128xf32>
    %19 = arith.addf %16, %18 : vector<8x128xf32>
    %cst_16 = arith.constant 0.000000e+00 : f32
    %20 = vector.broadcast %cst_16 : f32 to vector<8x128xf32>
    %21 = arith.maximumf %19, %20 : vector<8x128xf32>
    %22 = arith.truncf %21 : vector<8x128xf32> to vector<8x128xbf16>
    %c0_17 = arith.constant 0 : index
    %c0_18 = arith.constant 0 : index
    %23 = vector.load %arg7[%c0_17, %c0_18] : memref<512x128xbf16, #tpu.memory_space<vmem>>, vector<512x128xbf16>
    %cst_19 = arith.constant dense<0.000000e+00> : vector<8x128xf32>
    %24 = tpu.matmul %1, %23, %cst_19 {dimension_numbers = #tpu.dot_dimension_numbers<[1], [0], [0], [1], [0, 0, 1, 1], [], []>} : vector<8x512xbf16>, vector<512x128xbf16>, vector<8x128xf32> -> vector<8x128xf32>
    %25 = arith.truncf %24 : vector<8x128xf32> to vector<8x128xbf16>
    %c0_20 = arith.constant 0 : index
    %c0_21 = arith.constant 0 : index
    %26 = vector.load %arg8[%c0_20, %c0_21] : memref<16x8xbf16, #tpu.memory_space<vmem>>, vector<16x8xbf16>
    %cst_22 = arith.constant dense<0.000000e+00> : vector<16x128xf32>
    %27 = tpu.matmul %26, %25, %cst_22 {dimension_numbers = #tpu.dot_dimension_numbers<[1], [0], [0], [1], [0, 0, 1, 1], [], []>} : vector<16x8xbf16>, vector<8x128xbf16>, vector<16x128xf32> -> vector<16x128xf32>
    %c0_23 = arith.constant 0 : index
    %c0_24 = arith.constant 0 : index
    %28 = vector.load %arg9[%c0_23, %c0_24] : memref<16x1xf32, #tpu.memory_space<vmem>>, vector<16x1xf32>
    %29 = vector.broadcast %28 : vector<16x1xf32> to vector<16x128xf32>
    %30 = arith.addf %27, %29 : vector<16x128xf32>
    %c0_25 = arith.constant 0 : index
    %c0_26 = arith.constant 0 : index
    %31 = vector.load %arg10[%c0_25, %c0_26] : memref<16x8xbf16, #tpu.memory_space<vmem>>, vector<16x8xbf16>
    %cst_27 = arith.constant dense<0.000000e+00> : vector<16x128xf32>
    %32 = tpu.matmul %31, %22, %cst_27 {dimension_numbers = #tpu.dot_dimension_numbers<[1], [0], [0], [1], [0, 0, 1, 1], [], []>} : vector<16x8xbf16>, vector<8x128xbf16>, vector<16x128xf32> -> vector<16x128xf32>
    %c0_28 = arith.constant 0 : index
    %c0_29 = arith.constant 0 : index
    %33 = vector.load %arg11[%c0_28, %c0_29] : memref<16x1xf32, #tpu.memory_space<vmem>>, vector<16x1xf32>
    %34 = vector.broadcast %33 : vector<16x1xf32> to vector<16x128xf32>
    %35 = arith.addf %32, %34 : vector<16x128xf32>
    %36 = arith.addf %35, %30 : vector<16x128xf32>
    %cst_30 = arith.constant 0.000000e+00 : f32
    %37 = vector.broadcast %cst_30 : f32 to vector<16x128xf32>
    %38 = arith.maximumf %36, %37 : vector<16x128xf32>
    %c0_31 = arith.constant 0 : index
    %c0_32 = arith.constant 0 : index
    %39 = vector.load %arg12[%c0_31, %c0_32] : memref<16x128xf32, #tpu.memory_space<vmem>>, vector<16x128xf32>
    tpu.vector_store %arg12[%c0_31, %c0_32], %38 {strides = array<i32>} : memref<16x128xf32, #tpu.memory_space<vmem>>, vector<16x128xf32>,
    return
  }
  func.func @transform_0(%arg0: i32) -> (i32, i32) {
    %c0_i32 = arith.constant 0 : i32
    %c0_i32_0 = arith.constant 0 : i32
    return %c0_i32, %arg0 : i32, i32
  }
  func.func @transform_1(%arg0: i32) -> (i32, i32) {
    %c0_i32 = arith.constant 0 : i32
    %c0_i32_0 = arith.constant 0 : i32
    %c0_i32_1 = arith.constant 0 : i32
    return %c0_i32, %c0_i32_0 : i32, i32
  }
  func.func @transform_2(%arg0: i32) -> (i32, i32) {
    %c0_i32 = arith.constant 0 : i32
    %c0_i32_0 = arith.constant 0 : i32
    %c0_i32_1 = arith.constant 0 : i32
    return %c0_i32, %c0_i32_0 : i32, i32
  }
  func.func @transform_3(%arg0: i32) -> (i32, i32) {
    %c0_i32 = arith.constant 0 : i32
    %c0_i32_0 = arith.constant 0 : i32
    %c0_i32_1 = arith.constant 0 : i32
    return %c0_i32, %c0_i32_0 : i32, i32
  }
  func.func @transform_4(%arg0: i32) -> (i32, i32) {
    %c0_i32 = arith.constant 0 : i32
    %c0_i32_0 = arith.constant 0 : i32
    %c0_i32_1 = arith.constant 0 : i32
    return %c0_i32, %c0_i32_0 : i32, i32
  }
  func.func @transform_5(%arg0: i32) -> (i32, i32, i32) {
    %c0_i32 = arith.constant 0 : i32
    %c0_i32_0 = arith.constant 0 : i32
    %c0_i32_1 = arith.constant 0 : i32
    %c0_i32_2 = arith.constant 0 : i32
    return %c0_i32, %c0_i32_0, %c0_i32_1 : i32, i32, i32
  }
  func.func @transform_6(%arg0: i32) -> (i32, i32) {
    %c0_i32 = arith.constant 0 : i32
    %c0_i32_0 = arith.constant 0 : i32
    %c0_i32_1 = arith.constant 0 : i32
    return %c0_i32, %c0_i32_0 : i32, i32
  }
  func.func @transform_7(%arg0: i32) -> (i32, i32) {
    %c0_i32 = arith.constant 0 : i32
    %c0_i32_0 = arith.constant 0 : i32
    %c0_i32_1 = arith.constant 0 : i32
    return %c0_i32, %c0_i32_0 : i32, i32
  }
  func.func @transform_8(%arg0: i32) -> (i32, i32) {
    %c0_i32 = arith.constant 0 : i32
    %c0_i32_0 = arith.constant 0 : i32
    %c0_i32_1 = arith.constant 0 : i32
    return %c0_i32, %c0_i32_0 : i32, i32
  }
  func.func @transform_9(%arg0: i32) -> (i32, i32) {
    %c0_i32 = arith.constant 0 : i32
    %c0_i32_0 = arith.constant 0 : i32
    %c0_i32_1 = arith.constant 0 : i32
    return %c0_i32, %c0_i32_0 : i32, i32
  }
  func.func @transform_10(%arg0: i32) -> (i32, i32) {
    %c0_i32 = arith.constant 0 : i32
    %c0_i32_0 = arith.constant 0 : i32
    %c0_i32_1 = arith.constant 0 : i32
    return %c0_i32, %c0_i32_0 : i32, i32
  }
  func.func @transform_11(%arg0: i32) -> (i32, i32) {
    %c0_i32 = arith.constant 0 : i32
    %c0_i32_0 = arith.constant 0 : i32
    return %c0_i32, %arg0 : i32, i32
  }
}

</mosaic_0001>

<llo_original>
// kernel: bottleneck_forward.1
$region0: #{bottleneck_forward.1}
  #allocation0 [shape = 'u32[]', space=smem, size = 0x4, offset = 0x4, fixed_abs, tag = 'smem constant byte address 0x4 - core index']
  #allocation1 [shape = 'u32[72,128]{1,0:T(1,128)}', space=vmem, size = 0x9000, scoped, tag = 'internal scratch']
  %s0 = inlined_call_operand.vmem [shape: f32[8,512], index: 0, kind: input, shape index: {}]
  %s1 = inlined_call_operand.hbm [shape: bf16[8,8], index: 1, kind: input, shape index: {}]
  %s2 = inlined_call_operand.vmem [shape: f32[8,1], index: 2, kind: input, shape index: {}]
  %s3 = inlined_call_operand.vmem [shape: bf16[72,8], index: 3, kind: input, shape index: {}]
  %s4 = inlined_call_operand.vmem [shape: f32[8,1], index: 4, kind: input, shape index: {}]
  %s5 = inlined_call_operand.hbm [shape: bf16[9,512,128], index: 5, kind: input, shape index: {}]
  %s6 = inlined_call_operand.hbm [shape: bf16[512,128], index: 6, kind: input, shape index: {}]
  %s7 = inlined_call_operand.vmem [shape: bf16[16,8], index: 7, kind: input, shape index: {}]
  %s8 = inlined_call_operand.vmem [shape: f32[16,1], index: 8, kind: input, shape index: {}]
  %s9 = inlined_call_operand.vmem [shape: bf16[16,8], index: 9, kind: input, shape index: {}]
  %s10 = inlined_call_operand.vmem [shape: f32[16,1], index: 10, kind: input, shape index: {}]
  %s11 = inlined_call_operand.vmem [shape: f32[16,128], index: 11, kind: output, shape index: {}]
  %s12 = sld [smem:[#allocation0]]
  $region66: #{bottleneck_forward.1} parent=0
    _
  %s14 = ssub.s32 1, %s12
  %s15 = scalar_select 0, %s14, %s12
  $region1: #{bottleneck_forward.1} parent=0
    #allocation2 [shape = 'u8[2048]{0}', space=vmem, size = 0x800, scoped, tag = 'input window, operand 1, single buffered']
    #allocation3 [shape = 's32[1]{0}', space=sflag, size = 0x4, scoped, tag = 'scoped memory for bottleneck_forward.1']
    #allocation4 [shape = 'u8[1179648]{0}', space=vmem, size = 0x120000, scoped, tag = 'input window, operand 5, single buffered']
    #allocation5 [shape = 's32[1]{0}', space=sflag, size = 0x4, scoped, tag = 'scoped memory for bottleneck_forward.1']
    #allocation6 [shape = 'u8[131072]{0}', space=vmem, size = 0x20000, scoped, tag = 'input window, operand 6, single buffered']
    %16 = vsyncpa [#allocation3], 0
    %17 = vsyncpa [#allocation5], 0
    // Predicated region
    $region2: #{bottleneck_forward.1} parent=1 // pred_check
      _
    $region3: #{bottleneck_forward.1} parent=1 // pred_check_branch
      %19 = sbr.rel (0) target = $region5
    $region4: #{bottleneck_forward.1} parent=1 // pred_region
      _
    $region5: #{bottleneck_forward.1} parent=1 // pred_fallthru
      _
    // Predicated region
    $region6: #{bottleneck_forward.1} parent=1 // pred_check
      _
    $region7: #{bottleneck_forward.1} parent=1 // pred_check_branch
      %21 = sbr.rel (0) target = $region9
    $region8: #{bottleneck_forward.1} parent=1 // pred_region
      %23 = vsyncadd [#allocation3], 0
      %s25 = sshll.u32 %s1, 4
      %s26 = int_to_ptr.hbm [resolvable:$true] %s25
      %s27 = sshll.u32 [#allocation2], 4
      %s28 = int_to_ptr.vmem [resolvable:$true] %s27
      %30 = dma.hbm_to_vmem [thread:$0]  %s26, 64, %s28, [#allocation3]
    $region9: #{bottleneck_forward.1} parent=1 // pred_fallthru
      _
    // Predicated region
    $region10: #{bottleneck_forward.1} parent=1 // pred_check
      _
    $region11: #{bottleneck_forward.1} parent=1 // pred_check_branch
      %32 = sbr.rel (0) target = $region13
    $region12: #{bottleneck_forward.1} parent=1 // pred_region
      _
    $region13: #{bottleneck_forward.1} parent=1 // pred_fallthru
      _
    // Predicated region
    $region14: #{bottleneck_forward.1} parent=1 // pred_check
      _
    $region15: #{bottleneck_forward.1} parent=1 // pred_check_branch
      %34 = sbr.rel (0) target = $region17
    $region16: #{bottleneck_forward.1} parent=1 // pred_region
      _
    $region17: #{bottleneck_forward.1} parent=1 // pred_fallthru
      _
    // Predicated region
    $region18: #{bottleneck_forward.1} parent=1 // pred_check
      _
    $region19: #{bottleneck_forward.1} parent=1 // pred_check_branch
      %36 = sbr.rel (0) target = $region21
    $region20: #{bottleneck_forward.1} parent=1 // pred_region
      _
    $region21: #{bottleneck_forward.1} parent=1 // pred_fallthru
      _
    // Predicated region
    $region22: #{bottleneck_forward.1} parent=1 // pred_check
      _
    $region23: #{bottleneck_forward.1} parent=1 // pred_check_branch
      %38 = sbr.rel (0) target = $region25
    $region24: #{bottleneck_forward.1} parent=1 // pred_region
      %40 = vsyncadd [#allocation5], 0
      %s41 = sshll.u32 %s5, 4
      %s42 = int_to_ptr.hbm [resolvable:$true] %s41
      %s43 = sshll.u32 [#allocation4], 4
      %s44 = int_to_ptr.vmem [resolvable:$true] %s43
      %49 = dma.hbm_to_vmem [thread:$0]  %s42, 36864, %s44, [#allocation5], 64, 64, 4
    $region25: #{bottleneck_forward.1} parent=1 // pred_fallthru
      _
    // Predicated region
    $region26: #{bottleneck_forward.1} parent=1 // pred_check
      _
    $region27: #{bottleneck_forward.1} parent=1 // pred_check_branch
      %51 = sbr.rel (0) target = $region29
    $region28: #{bottleneck_forward.1} parent=1 // pred_region
      %53 = vsyncadd [#allocation5], 0
      %s54 = sshll.u32 %s6, 4
      %s55 = int_to_ptr.hbm [resolvable:$true] %s54
      %s56 = sshll.u32 [#allocation6], 4
      %s57 = int_to_ptr.vmem [resolvable:$true] %s56
      %62 = dma.hbm_to_vmem [thread:$0]  %s55, 4096, %s57, [#allocation5], 64, 64, 4
    $region29: #{bottleneck_forward.1} parent=1 // pred_fallthru
      _
    // Predicated region
    $region30: #{bottleneck_forward.1} parent=1 // pred_check
      _
    $region31: #{bottleneck_forward.1} parent=1 // pred_check_branch
      %64 = sbr.rel (0) target = $region33
    $region32: #{bottleneck_forward.1} parent=1 // pred_region
      _
    $region33: #{bottleneck_forward.1} parent=1 // pred_fallthru
      _
    // Predicated region
    $region34: #{bottleneck_forward.1} parent=1 // pred_check
      _
    $region35: #{bottleneck_forward.1} parent=1 // pred_check_branch
      %66 = sbr.rel (0) target = $region37
    $region36: #{bottleneck_forward.1} parent=1 // pred_region
      _
    $region37: #{bottleneck_forward.1} parent=1 // pred_fallthru
      _
    // Predicated region
    $region38: #{bottleneck_forward.1} parent=1 // pred_check
      _
    $region39: #{bottleneck_forward.1} parent=1 // pred_check_branch
      %68 = sbr.rel (0) target = $region41
    $region40: #{bottleneck_forward.1} parent=1 // pred_region
      _
    $region41: #{bottleneck_forward.1} parent=1 // pred_fallthru
      _
    // Predicated region
    $region42: #{bottleneck_forward.1} parent=1 // pred_check
      _
    $region43: #{bottleneck_forward.1} parent=1 // pred_check_branch
      %70 = sbr.rel (0) target = $region45
    $region44: #{bottleneck_forward.1} parent=1 // pred_region
      _
    $region45: #{bottleneck_forward.1} parent=1 // pred_fallthru
      _
    // Predicated region
    $region46: #{bottleneck_forward.1} parent=1 // pred_check
      _
    $region47: #{bottleneck_forward.1} parent=1 // pred_check_branch
      %72 = sbr.rel (0) target = $region49
    $region48: #{bottleneck_forward.1} parent=1 // pred_region
      %74 = dma.done [#allocation3], 64
    $region49: #{bottleneck_forward.1} parent=1 // pred_fallthru
      _
    // Predicated region
    $region50: #{bottleneck_forward.1} parent=1 // pred_check
      _
    $region51: #{bottleneck_forward.1} parent=1 // pred_check_branch
      %76 = sbr.rel (0) target = $region53
    $region52: #{bottleneck_forward.1} parent=1 // pred_region
      %78 = dma.done [#allocation5], 36864
    $region53: #{bottleneck_forward.1} parent=1 // pred_fallthru
      _
    // Predicated region
    $region54: #{bottleneck_forward.1} parent=1 // pred_check
      _
    $region55: #{bottleneck_forward.1} parent=1 // pred_check_branch
      %80 = sbr.rel (0) target = $region57
    $region56: #{bottleneck_forward.1} parent=1 // pred_region
      %82 = dma.done [#allocation5], 4096
    $region57: #{bottleneck_forward.1} parent=1 // pred_fallthru
      _
    %v84 = vld [vmem:[%s0] sm:$0xff]
    %v85 = vld [vmem:[%s0 + $0x8] sm:$0xff]
    %v86 = vld [vmem:[%s0 + $0x10] sm:$0xff]
    %v87 = vld [vmem:[%s0 + $0x18] sm:$0xff]
    %v88 = vpack.c.bf16 %v84, %v84
    %v89 = vpack.c.bf16 %v85, %v85
    %v90 = vpack.c.bf16 %v86, %v86
    %v91 = vpack.c.bf16 %v87, %v87
    %v92 = vld [vmem:[#allocation2] sm:$0xf]
    %v93 = vld [vmem:[%s2] sm:$0xff]
    %95 = vset.pattern.permute.xlu0 0
    %96 = vperm.xlu0 %95, %v93
    %v97 = vpop.permute.xlu0 %96
    %vm99 = vcmask 64512
    %v101 = vsel %vm99, %v92, 0
    %vm103 = vcmask 1043456
    %v105 = vsel %vm103, %v88, 0
    %v108 = vsel %vm103, %v89, 0
    %v111 = vsel %vm103, %v90, 0
    %v114 = vsel %vm103, %v91, 0
    %116 = vmatpush.bf16.msra.mxu0 0
    %117 = vmatpush.bf16.msra.mxu0 0
    %118 = vmatpush.bf16.msra.mxu0 0
    %119 = vmatpush.bf16.msra.mxu0 0
    %120 = vmatpush.bf16.msra.mxu0 0
    %121 = vmatpush.bf16.msra.mxu0 0
    %122 = vmatpush.bf16.msra.mxu0 0
    %123 = vmatpush.bf16.msra.mxu0 %v105
    %124 = vmatmul.bf16.gmra.mxu0 %v101
    %v125 = vpop.f32.mrf.mxu0
    %v126 = vadd.f32 %v97, %v125
    %v127 = vpop.f32.mrf.mxu0
    %128 = vdwg.mxu0
    %129 = vmatpush.bf16.msra.mxu0 0
    %130 = vmatpush.bf16.msra.mxu0 0
    %131 = vmatpush.bf16.msra.mxu0 0
    %132 = vmatpush.bf16.msra.mxu0 0
    %133 = vmatpush.bf16.msra.mxu0 0
    %134 = vmatpush.bf16.msra.mxu0 0
    %135 = vmatpush.bf16.msra.mxu0 0
    %136 = vmatpush.bf16.msra.mxu0 %v108
    %137 = vmatmul.bf16.gmra.mxu0 %v101
    %v138 = vpop.f32.mrf.mxu0
    %v139 = vadd.f32 %v97, %v138
    %v140 = vpop.f32.mrf.mxu0
    %141 = vdwg.mxu0
    %142 = vmatpush.bf16.msra.mxu0 0
    %143 = vmatpush.bf16.msra.mxu0 0
    %144 = vmatpush.bf16.msra.mxu0 0
    %145 = vmatpush.bf16.msra.mxu0 0
    %146 = vmatpush.bf16.msra.mxu0 0
    %147 = vmatpush.bf16.msra.mxu0 0
    %148 = vmatpush.bf16.msra.mxu0 0
    %149 = vmatpush.bf16.msra.mxu0 %v111
    %150 = vmatmul.bf16.gmra.mxu0 %v101
    %v151 = vpop.f32.mrf.mxu0
    %v152 = vadd.f32 %v97, %v151
    %v153 = vpop.f32.mrf.mxu0
    %154 = vdwg.mxu0
    %155 = vmatpush.bf16.msra.mxu0 0
    %156 = vmatpush.bf16.msra.mxu0 0
    %157 = vmatpush.bf16.msra.mxu0 0
    %158 = vmatpush.bf16.msra.mxu0 0
    %159 = vmatpush.bf16.msra.mxu0 0
    %160 = vmatpush.bf16.msra.mxu0 0
    %161 = vmatpush.bf16.msra.mxu0 0
    %162 = vmatpush.bf16.msra.mxu0 %v114
    %163 = vmatmul.bf16.gmra.mxu0 %v101
    %v164 = vpop.f32.mrf.mxu0
    %v165 = vadd.f32 %v97, %v164
    %v166 = vpop.f32.mrf.mxu0
    %167 = vdwg.mxu0
    %v168 = vmax.f32 %v126, 0.0
    %v169 = vmax.f32 %v139, 0.0
    %v170 = vmax.f32 %v152, 0.0
    %v171 = vmax.f32 %v165, 0.0
    %v172 = vpack.c.bf16 %v168, %v168
    %v173 = vpack.c.bf16 %v169, %v169
    %v174 = vpack.c.bf16 %v170, %v170
    %v175 = vpack.c.bf16 %v171, %v171
    %v176 = vld [vmem:[%s3] sm:$0xf]
    %v177 = vld [vmem:[%s3 + $0x4] sm:$0xf]
    %v178 = vld [vmem:[%s3 + $0x8] sm:$0xf]
    %v179 = vld [vmem:[%s3 + $0xc] sm:$0xf]
    %v180 = vld [vmem:[%s3 + $0x10] sm:$0xf]
    %v181 = vld [vmem:[%s3 + $0x14] sm:$0xf]
    %v182 = vld [vmem:[%s3 + $0x18] sm:$0xf]
    %v183 = vld [vmem:[%s3 + $0x1c] sm:$0xf]
    %v184 = vld [vmem:[%s3 + $0x20] sm:$0xf]
    %v194 = vunpack.c.l.b16 %v176
    %v195 = vunpack.c.l.b16 %v177
    %v196 = vunpack.c.l.b16 %v178
    %v197 = vunpack.c.l.b16 %v179
    %v198 = vunpack.c.l.b16 %v180
    %v199 = vunpack.c.l.b16 %v181
    %v200 = vunpack.c.l.b16 %v182
    %v201 = vunpack.c.l.b16 %v183
    %v202 = vunpack.c.l.b16 %v184
    %v203 = vpack.c.b16 %v195, %v194
    %v204 = vpack.c.b16 %v197, %v196
    %v205 = vpack.c.b16 %v199, %v198
    %v206 = vpack.c.b16 %v201, %v200
    %v207 = vpack.c.b16 %v202, %v202
    %v209 = vsel %vm99, %v203, 0
    %v212 = vsel %vm99, %v204, 0
    %v215 = vsel %vm99, %v205, 0
    %v218 = vsel %vm99, %v206, 0
    %v221 = vsel %vm99, %v207, 0
    %v224 = vsel %vm103, %v172, 0
    %v227 = vsel %vm103, %v173, 0
    %v230 = vsel %vm103, %v174, 0
    %v233 = vsel %vm103, %v175, 0
    %235 = vmatpush.bf16.msra.mxu0 0
    %236 = vmatpush.bf16.msra.mxu0 0
    %237 = vmatpush.bf16.msra.mxu0 0
    %238 = vmatpush.bf16.msra.mxu0 0
    %239 = vmatpush.bf16.msra.mxu0 0
    %240 = vmatpush.bf16.msra.mxu0 0
    %241 = vmatpush.bf16.msra.mxu0 0
    %242 = vmatpush.bf16.msra.mxu0 %v224
    %243 = vmatmul.bf16.gmra.mxu0 %v209
    %v244 = vpop.f32.mrf.mxu0
    %v245 = vadd.f32 0.0, %v244
    %v246 = vpop.f32.mrf.mxu0
    %v247 = vadd.f32 0.0, %v246
    %248 = vmatmul.bf16.gmra.mxu0 %v212
    %v249 = vpop.f32.mrf.mxu0
    %v250 = vadd.f32 0.0, %v249
    %v251 = vpop.f32.mrf.mxu0
    %v252 = vadd.f32 0.0, %v251
    %253 = vmatmul.bf16.gmra.mxu0 %v215
    %v254 = vpop.f32.mrf.mxu0
    %v255 = vadd.f32 0.0, %v254
    %v256 = vpop.f32.mrf.mxu0
    %v257 = vadd.f32 0.0, %v256
    %258 = vmatmul.bf16.gmra.mxu0 %v218
    %v259 = vpop.f32.mrf.mxu0
    %v260 = vadd.f32 0.0, %v259
    %v261 = vpop.f32.mrf.mxu0
    %v262 = vadd.f32 0.0, %v261
    %263 = vmatmul.bf16.gmra.mxu0 %v221
    %v264 = vpop.f32.mrf.mxu0
    %v265 = vadd.f32 0.0, %v264
    %v266 = vpop.f32.mrf.mxu0
    %267 = vdwg.mxu0
    %268 = vmatpush.bf16.msra.mxu0 0
    %269 = vmatpush.bf16.msra.mxu0 0
    %270 = vmatpush.bf16.msra.mxu0 0
    %271 = vmatpush.bf16.msra.mxu0 0
    %272 = vmatpush.bf16.msra.mxu0 0
    %273 = vmatpush.bf16.msra.mxu0 0
    %274 = vmatpush.bf16.msra.mxu0 0
    %275 = vmatpush.bf16.msra.mxu0 %v227
    %276 = vmatmul.bf16.gmra.mxu0 %v209
    %v277 = vpop.f32.mrf.mxu0
    %v278 = vadd.f32 0.0, %v277
    %v279 = vpop.f32.mrf.mxu0
    %v280 = vadd.f32 0.0, %v279
    %281 = vmatmul.bf16.gmra.mxu0 %v212
    %v282 = vpop.f32.mrf.mxu0
    %v283 = vadd.f32 0.0, %v282
    %v284 = vpop.f32.mrf.mxu0
    %v285 = vadd.f32 0.0, %v284
    %286 = vmatmul.bf16.gmra.mxu0 %v215
    %v287 = vpop.f32.mrf.mxu0
    %v288 = vadd.f32 0.0, %v287
    %v289 = vpop.f32.mrf.mxu0
    %v290 = vadd.f32 0.0, %v289
    %291 = vmatmul.bf16.gmra.mxu0 %v218
    %v292 = vpop.f32.mrf.mxu0
    %v293 = vadd.f32 0.0, %v292
    %v294 = vpop.f32.mrf.mxu0
    %v295 = vadd.f32 0.0, %v294
    %296 = vmatmul.bf16.gmra.mxu0 %v221
    %v297 = vpop.f32.mrf.mxu0
    %v298 = vadd.f32 0.0, %v297
    %v299 = vpop.f32.mrf.mxu0
    %300 = vdwg.mxu0
    %301 = vmatpush.bf16.msra.mxu0 0
    %302 = vmatpush.bf16.msra.mxu0 0
    %303 = vmatpush.bf16.msra.mxu0 0
    %304 = vmatpush.bf16.msra.mxu0 0
    %305 = vmatpush.bf16.msra.mxu0 0
    %306 = vmatpush.bf16.msra.mxu0 0
    %307 = vmatpush.bf16.msra.mxu0 0
    %308 = vmatpush.bf16.msra.mxu0 %v230
    %309 = vmatmul.bf16.gmra.mxu0 %v209
    %v310 = vpop.f32.mrf.mxu0
    %v311 = vadd.f32 0.0, %v310
    %v312 = vpop.f32.mrf.mxu0
    %v313 = vadd.f32 0.0, %v312
    %314 = vmatmul.bf16.gmra.mxu0 %v212
    %v315 = vpop.f32.mrf.mxu0
    %v316 = vadd.f32 0.0, %v315
    %v317 = vpop.f32.mrf.mxu0
    %v318 = vadd.f32 0.0, %v317
    %319 = vmatmul.bf16.gmra.mxu0 %v215
    %v320 = vpop.f32.mrf.mxu0
    %v321 = vadd.f32 0.0, %v320
    %v322 = vpop.f32.mrf.mxu0
    %v323 = vadd.f32 0.0, %v322
    %324 = vmatmul.bf16.gmra.mxu0 %v218
    %v325 = vpop.f32.mrf.mxu0
    %v326 = vadd.f32 0.0, %v325
    %v327 = vpop.f32.mrf.mxu0
    %v328 = vadd.f32 0.0, %v327
    %329 = vmatmul.bf16.gmra.mxu0 %v221
    %v330 = vpop.f32.mrf.mxu0
    %v331 = vadd.f32 0.0, %v330
    %v332 = vpop.f32.mrf.mxu0
    %333 = vdwg.mxu0
    %334 = vmatpush.bf16.msra.mxu0 0
    %335 = vmatpush.bf16.msra.mxu0 0
    %336 = vmatpush.bf16.msra.mxu0 0
    %337 = vmatpush.bf16.msra.mxu0 0
    %338 = vmatpush.bf16.msra.mxu0 0
    %339 = vmatpush.bf16.msra.mxu0 0
    %340 = vmatpush.bf16.msra.mxu0 0
    %341 = vmatpush.bf16.msra.mxu0 %v233
    %342 = vmatmul.bf16.gmra.mxu0 %v209
    %v343 = vpop.f32.mrf.mxu0
    %v344 = vadd.f32 0.0, %v343
    %v345 = vpop.f32.mrf.mxu0
    %v346 = vadd.f32 0.0, %v345
    %347 = vmatmul.bf16.gmra.mxu0 %v212
    %v348 = vpop.f32.mrf.mxu0
    %v349 = vadd.f32 0.0, %v348
    %v350 = vpop.f32.mrf.mxu0
    %v351 = vadd.f32 0.0, %v350
    %352 = vmatmul.bf16.gmra.mxu0 %v215
    %v353 = vpop.f32.mrf.mxu0
    %v354 = vadd.f32 0.0, %v353
    %v355 = vpop.f32.mrf.mxu0
    %v356 = vadd.f32 0.0, %v355
    %357 = vmatmul.bf16.gmra.mxu0 %v218
    %v358 = vpop.f32.mrf.mxu0
    %v359 = vadd.f32 0.0, %v358
    %v360 = vpop.f32.mrf.mxu0
    %v361 = vadd.f32 0.0, %v360
    %362 = vmatmul.bf16.gmra.mxu0 %v221
    %v363 = vpop.f32.mrf.mxu0
    %v364 = vadd.f32 0.0, %v363
    %v365 = vpop.f32.mrf.mxu0
    %366 = vdwg.mxu0
    %v367 = vpack.c.bf16 %v278, %v245
    %v368 = vpack.c.bf16 %v344, %v311
    %v369 = vpack.c.bf16 %v280, %v247
    %v370 = vpack.c.bf16 %v346, %v313
    %v371 = vpack.c.bf16 %v283, %v250
    %v372 = vpack.c.bf16 %v349, %v316
    %v373 = vpack.c.bf16 %v285, %v252
    %v374 = vpack.c.bf16 %v351, %v318
    %v375 = vpack.c.bf16 %v288, %v255
    %v376 = vpack.c.bf16 %v354, %v321
    %v377 = vpack.c.bf16 %v290, %v257
    %v378 = vpack.c.bf16 %v356, %v323
    %v379 = vpack.c.bf16 %v293, %v260
    %v380 = vpack.c.bf16 %v359, %v326
    %v381 = vpack.c.bf16 %v295, %v262
    %v382 = vpack.c.bf16 %v361, %v328
    %v383 = vpack.c.bf16 %v298, %v265
    %v384 = vpack.c.bf16 %v364, %v331
    %v385 = vld [vmem:[#allocation4] sm:$0xf]
    %v386 = vld [vmem:[#allocation4 + $0x4] sm:$0xf]
    %v387 = vld [vmem:[#allocation4 + $0x8] sm:$0xf]
    %v388 = vld [vmem:[#allocation4 + $0xc] sm:$0xf]
    %v389 = vld [vmem:[#allocation4 + $0x10] sm:$0xf]
    %v390 = vld [vmem:[#allocation4 + $0x14] sm:$0xf]
    %v391 = vld [vmem:[#allocation4 + $0x18] sm:$0xf]
    %v392 = vld [vmem:[#allocation4 + $0x1c] sm:$0xf]
    %v393 = vld [vmem:[#allocation4 + $0x20] sm:$0xf]
    %v394 = vld [vmem:[#allocation4 + $0x24] sm:$0xf]
    %v395 = vld [vmem:[#allocation4 + $0x28] sm:$0xf]
    %v396 = vld [vmem:[#allocation4 + $0x2c] sm:$0xf]
    %v397 = vld [vmem:[#allocation4 + $0x30] sm:$0xf]
    %v398 = vld [vmem:[#allocation4 + $0x34] sm:$0xf]
    %v399 = vld [vmem:[#allocation4 + $0x38] sm:$0xf]
    %v400 = vld [vmem:[#allocation4 + $0x3c] sm:$0xf]
    %v401 = vld [vmem:[#allocation4 + $0x40] sm:$0xf]
    %v402 = vld [vmem:[#allocation4 + $0x44] sm:$0xf]
    %v403 = vld [vmem:[#allocation4 + $0x48] sm:$0xf]
    %v404 = vld [vmem:[#allocation4 + $0x4c] sm:$0xf]
    %v405 = vld [vmem:[#allocation4 + $0x50] sm:$0xf]
    %v406 = vld [vmem:[#allocation4 + $0x54] sm:$0xf]
    %v407 = vld [vmem:[#allocation4 + $0x58] sm:$0xf]
    %v408 = vld [vmem:[#allocation4 + $0x5c] sm:$0xf]
    %v409 = vld [vmem:[#allocation4 + $0x60] sm:$0xf]
    %v410 = vld [vmem:[#allocation4 + $0x64] sm:$0xf]
    %v411 = vld [vmem:[#allocation4 + $0x68] sm:$0xf]
    %v412 = vld [vmem:[#allocation4 + $0x6c] sm:$0xf]
    %v413 = vld [vmem:[#allocation4 + $0x70] sm:$0xf]
    %v414 = vld [vmem:[#allocation4 + $0x74] sm:$0xf]
    %v415 = vld [vmem:[#allocation4 + $0x78] sm:$0xf]
    %v416 = vld [vmem:[#allocation4 + $0x7c] sm:$0xf]
    %v417 = vld [vmem:[#allocation4 + $0x80] sm:$0xf]
    %v418 = vld [vmem:[#allocation4 + $0x84] sm:$0xf]
    %v419 = vld [vmem:[#allocation4 + $0x88] sm:$0xf]
    %v420 = vld [vmem:[#allocation4 + $0x8c] sm:$0xf]
    %v421 = vld [vmem:[#allocation4 + $0x90] sm:$0xf]
    %v422 = vld [vmem:[#allocation4 + $0x94] sm:$0xf]
    %v423 = vld [vmem:[#allocation4 + $0x98] sm:$0xf]
    %v424 = vld [vmem:[#allocation4 + $0x9c] sm:$0xf]
    %v425 = vld [vmem:[#allocation4 + $0xa0] sm:$0xf]
    %v426 = vld [vmem:[#allocation4 + $0xa4] sm:$0xf]
    %v427 = vld [vmem:[#allocation4 + $0xa8] sm:$0xf]
    %v428 = vld [vmem:[#allocation4 + $0xac] sm:$0xf]
    %v429 = vld [vmem:[#allocation4 + $0xb0] sm:$0xf]
    %v430 = vld [vmem:[#allocation4 + $0xb4] sm:$0xf]
    %v431 = vld [vmem:[#allocation4 + $0xb8] sm:$0xf]
    %v432 = vld [vmem:[#allocation4 + $0xbc] sm:$0xf]
    %v433 = vld [vmem:[#allocation4 + $0xc0] sm:$0xf]
    %v434 = vld [vmem:[#allocation4 + $0xc4] sm:$0xf]
    %v435 = vld [vmem:[#allocation4 + $0xc8] sm:$0xf]
    %v436 = vld [vmem:[#allocation4 + $0xcc] sm:$0xf]
    %v437 = vld [vmem:[#allocation4 + $0xd0] sm:$0xf]
    %v438 = vld [vmem:[#allocation4 + $0xd4] sm:$0xf]
    %v439 = vld [vmem:[#allocation4 + $0xd8] sm:$0xf]
    %v440 = vld [vmem:[#allocation4 + $0xdc] sm:$0xf]
    %v441 = vld [vmem:[#allocation4 + $0xe0] sm:$0xf]
    %v442 = vld [vmem:[#allocation4 + $0xe4] sm:$0xf]
    %v443 = vld [vmem:[#allocation4 + $0xe8] sm:$0xf]
    %v444 = vld [vmem:[#allocation4 + $0xec] sm:$0xf]
    %v445 = vld [vmem:[#allocation4 + $0xf0] sm:$0xf]
    %v446 = vld [vmem:[#allocation4 + $0xf4] sm:$0xf]
    %v447 = vld [vmem:[#allocation4 + $0xf8] sm:$0xf]
    %v448 = vld [vmem:[#allocation4 + $0xfc] sm:$0xf]
    %v449 = vld [vmem:[#allocation4 + $0x100] sm:$0xf]
    %v450 = vld [vmem:[#allocation4 + $0x104] sm:$0xf]
    %v451 = vld [vmem:[#allocation4 + $0x108] sm:$0xf]
    %v452 = vld [vmem:[#allocation4 + $0x10c] sm:$0xf]
    %v453 = vld [vmem:[#allocation4 + $0x110] sm:$0xf]
    %v454 = vld [vmem:[#allocation4 + $0x114] sm:$0xf]
    %v455 = vld [vmem:[#allocation4 + $0x118] sm:$0xf]
    %v456 = vld [vmem:[#allocation4 + $0x11c] sm:$0xf]
    %v457 = vld [vmem:[#allocation4 + $0x120] sm:$0xf]
    %v458 = vld [vmem:[#allocation4 + $0x124] sm:$0xf]
    %v459 = vld [vmem:[#allocation4 + $0x128] sm:$0xf]
    %v460 = vld [vmem:[#allocation4 + $0x12c] sm:$0xf]
    %v461 = vld [vmem:[#allocation4 + $0x130] sm:$0xf]
    %v462 = vld [vmem:[#allocation4 + $0x134] sm:$0xf]
    %v463 = vld [vmem:[#allocation4 + $0x138] sm:$0xf]
    %v464 = vld [vmem:[#allocation4 + $0x13c] sm:$0xf]
    %v465 = vld [vmem:[#allocation4 + $0x140] sm:$0xf]
    %v466 = vld [vmem:[#allocation4 + $0x144] sm:$0xf]
    %v467 = vld [vmem:[#allocation4 + $0x148] sm:$0xf]
    %v468 = vld [vmem:[#allocation4 + $0x14c] sm:$0xf]
    %v469 = vld [vmem:[#allocation4 + $0x150] sm:$0xf]
    %v470 = vld [vmem:[#allocation4 + $0x154] sm:$0xf]
    %v471 = vld [vmem:[#allocation4 + $0x158] sm:$0xf]
    %v472 = vld [vmem:[#allocation4 + $0x15c] sm:$0xf]
    %v473 = vld [vmem:[#allocation4 + $0x160] sm:$0xf]
    %v474 = vld [vmem:[#allocation4 + $0x164] sm:$0xf]
    %v475 = vld [vmem:[#allocation4 + $0x168] sm:$0xf]
    %v476 = vld [vmem:[#allocation4 + $0x16c] sm:$0xf]
    %v477 = vld [vmem:[#allocation4 + $0x170] sm:$0xf]
    %v478 = vld [vmem:[#allocation4 + $0x174] sm:$0xf]
    %v479 = vld [vmem:[#allocation4 + $0x178] sm:$0xf]
    %v480 = vld [vmem:[#allocation4 + $0x17c] sm:$0xf]
    %v481 = vld [vmem:[#allocation4 + $0x180] sm:$0xf]
    %v482 = vld [vmem:[#allocation4 + $0x184] sm:$0xf]
    %v483 = vld [vmem:[#allocation4 + $0x188] sm:$0xf]
    %v484 = vld [vmem:[#allocation4 + $0x18c] sm:$0xf]
    %v485 = vld [vmem:[#allocation4 + $0x190] sm:$0xf]
    %v486 = vld [vmem:[#allocation4 + $0x194] sm:$0xf]
    %v487 = vld [vmem:[#allocation4 + $0x198] sm:$0xf]
    %v488 = vld [vmem:[#allocation4 + $0x19c] sm:$0xf]
    %v489 = vld [vmem:[#allocation4 + $0x1a0] sm:$0xf]
    %v490 = vld [vmem:[#allocation4 + $0x1a4] sm:$0xf]
    %v491 = vld [vmem:[#allocation4 + $0x1a8] sm:$0xf]
    %v492 = vld [vmem:[#allocation4 + $0x1ac] sm:$0xf]
    %v493 = vld [vmem:[#allocation4 + $0x1b0] sm:$0xf]
    %v494 = vld [vmem:[#allocation4 + $0x1b4] sm:$0xf]
    %v495 = vld [vmem:[#allocation4 + $0x1b8] sm:$0xf]
    %v496 = vld [vmem:[#allocation4 + $0x1bc] sm:$0xf]
    %v497 = vld [vmem:[#allocation4 + $0x1c0] sm:$0xf]
    %v498 = vld [vmem:[#allocation4 + $0x1c4] sm:$0xf]
    %v499 = vld [vmem:[#allocation4 + $0x1c8] sm:$0xf]
    %v500 = vld [vmem:[#allocation4 + $0x1cc] sm:$0xf]
    %v501 = vld [vmem:[#allocation4 + $0x1d0] sm:$0xf]
    %v502 = vld [vmem:[#allocation4 + $0x1d4] sm:$0xf]
    %v503 = vld [vmem:[#allocation4 + $0x1d8] sm:$0xf]
    %v504 = vld [vmem:[#allocation4 + $0x1dc] sm:$0xf]
    %v505 = vld [vmem:[#allocation4 + $0x1e0] sm:$0xf]
    %v506 = vld [vmem:[#allocation4 + $0x1e4] sm:$0xf]
    %v507 = vld [vmem:[#allocation4 + $0x1e8] sm:$0xf]
    %v508 = vld [vmem:[#allocation4 + $0x1ec] sm:$0xf]
    %v509 = vld [vmem:[#allocation4 + $0x1f0] sm:$0xf]
    %v510 = vld [vmem:[#allocation4 + $0x1f4] sm:$0xf]
    %v511 = vld [vmem:[#allocation4 + $0x1f8] sm:$0xf]
    %v512 = vld [vmem:[#allocation4 + $0x1fc] sm:$0xf]
    %v513 = vld [vmem:[#allocation4 + $0x200] sm:$0xf]
    %v514 = vld [vmem:[#allocation4 + $0x204] sm:$0xf]
    %v515 = vld [vmem:[#allocation4 + $0x208] sm:$0xf]
    %v516 = vld [vmem:[#allocation4 + $0x20c] sm:$0xf]
    %v517 = vld [vmem:[#allocation4 + $0x210] sm:$0xf]
    %v518 = vld [vmem:[#allocation4 + $0x214] sm:$0xf]
    %v519 = vld [vmem:[#allocation4 + $0x218] sm:$0xf]
    %v520 = vld [vmem:[#allocation4 + $0x21c] sm:$0xf]
    %v521 = vld [vmem:[#allocation4 + $0x220] sm:$0xf]
    %v522 = vld [vmem:[#allocation4 + $0x224] sm:$0xf]
    %v523 = vld [vmem:[#allocation4 + $0x228] sm:$0xf]
    %v524 = vld [vmem:[#allocation4 + $0x22c] sm:$0xf]
    %v525 = vld [vmem:[#allocation4 + $0x230] sm:$0xf]
    %v526 = vld [vmem:[#allocation4 + $0x234] sm:$0xf]
    %v527 = vld [vmem:[#allocation4 + $0x238] sm:$0xf]
    %v528 = vld [vmem:[#allocation4 + $0x23c] sm:$0xf]
    %v529 = vld [vmem:[#allocation4 + $0x240] sm:$0xf]
    %v530 = vld [vmem:[#allocation4 + $0x244] sm:$0xf]
    %v531 = vld [vmem:[#allocation4 + $0x248] sm:$0xf]
    %v532 = vld [vmem:[#allocation4 + $0x24c] sm:$0xf]
    %v533 = vld [vmem:[#allocation4 + $0x250] sm:$0xf]
    %v534 = vld [vmem:[#allocation4 + $0x254] sm:$0xf]
    %v535 = vld [vmem:[#allocation4 + $0x258] sm:$0xf]
    %v536 = vld [vmem:[#allocation4 + $0x25c] sm:$0xf]
    %v537 = vld [vmem:[#allocation4 + $0x260] sm:$0xf]
    %v538 = vld [vmem:[#allocation4 + $0x264] sm:$0xf]
    %v539 = vld [vmem:[#allocation4 + $0x268] sm:$0xf]
    %v540 = vld [vmem:[#allocation4 + $0x26c] sm:$0xf]
    %v541 = vld [vmem:[#allocation4 + $0x270] sm:$0xf]
    %v542 = vld [vmem:[#allocation4 + $0x274] sm:$0xf]
    %v543 = vld [vmem:[#allocation4 + $0x278] sm:$0xf]
    %v544 = vld [vmem:[#allocation4 + $0x27c] sm:$0xf]
    %v545 = vld [vmem:[#allocation4 + $0x280] sm:$0xf]
    %v546 = vld [vmem:[#allocation4 + $0x284] sm:$0xf]
    %v547 = vld [vmem:[#allocation4 + $0x288] sm:$0xf]
    %v548 = vld [vmem:[#allocation4 + $0x28c] sm:$0xf]
    %v549 = vld [vmem:[#allocation4 + $0x290] sm:$0xf]
    %v550 = vld [vmem:[#allocation4 + $0x294] sm:$0xf]
    %v551 = vld [vmem:[#allocation4 + $0x298] sm:$0xf]
    %v552 = vld [vmem:[#allocation4 + $0x29c] sm:$0xf]
    %v553 = vld [vmem:[#allocation4 + $0x2a0] sm:$0xf]
    %v554 = vld [vmem:[#allocation4 + $0x2a4] sm:$0xf]
    %v555 = vld [vmem:[#allocation4 + $0x2a8] sm:$0xf]
    %v556 = vld [vmem:[#allocation4 + $0x2ac] sm:$0xf]
    %v557 = vld [vmem:[#allocation4 + $0x2b0] sm:$0xf]
    %v558 = vld [vmem:[#allocation4 + $0x2b4] sm:$0xf]
    %v559 = vld [vmem:[#allocation4 + $0x2b8] sm:$0xf]
    %v560 = vld [vmem:[#allocation4 + $0x2bc] sm:$0xf]
    %v561 = vld [vmem:[#allocation4 + $0x2c0] sm:$0xf]
    %v562 = vld [vmem:[#allocation4 + $0x2c4] sm:$0xf]
    %v563 = vld [vmem:[#allocation4 + $0x2c8] sm:$0xf]
    %v564 = vld [vmem:[#allocation4 + $0x2cc] sm:$0xf]
    %v565 = vld [vmem:[#allocation4 + $0x2d0] sm:$0xf]
    %v566 = vld [vmem:[#allocation4 + $0x2d4] sm:$0xf]
    %v567 = vld [vmem:[#allocation4 + $0x2d8] sm:$0xf]
    %v568 = vld [vmem:[#allocation4 + $0x2dc] sm:$0xf]
    %v569 = vld [vmem:[#allocation4 + $0x2e0] sm:$0xf]
    %v570 = vld [vmem:[#allocation4 + $0x2e4] sm:$0xf]
    %v571 = vld [vmem:[#allocation4 + $0x2e8] sm:$0xf]
    %v572 = vld [vmem:[#allocation4 + $0x2ec] sm:$0xf]
    %v573 = vld [vmem:[#allocation4 + $0x2f0] sm:$0xf]
    %v574 = vld [vmem:[#allocation4 + $0x2f4] sm:$0xf]
    %v575 = vld [vmem:[#allocation4 + $0x2f8] sm:$0xf]
    %v576 = vld [vmem:[#allocation4 + $0x2fc] sm:$0xf]
    %v577 = vld [vmem:[#allocation4 + $0x300] sm:$0xf]
    %v578 = vld [vmem:[#allocation4 + $0x304] sm:$0xf]
    %v579 = vld [vmem:[#allocation4 + $0x308] sm:$0xf]
    %v580 = vld [vmem:[#allocation4 + $0x30c] sm:$0xf]
    %v581 = vld [vmem:[#allocation4 + $0x310] sm:$0xf]
    %v582 = vld [vmem:[#allocation4 + $0x314] sm:$0xf]
    %v583 = vld [vmem:[#allocation4 + $0x318] sm:$0xf]
    %v584 = vld [vmem:[#allocation4 + $0x31c] sm:$0xf]
    %v585 = vld [vmem:[#allocation4 + $0x320] sm:$0xf]
    %v586 = vld [vmem:[#allocation4 + $0x324] sm:$0xf]
    %v587 = vld [vmem:[#allocation4 + $0x328] sm:$0xf]
    %v588 = vld [vmem:[#allocation4 + $0x32c] sm:$0xf]
    %v589 = vld [vmem:[#allocation4 + $0x330] sm:$0xf]
    %v590 = vld [vmem:[#allocation4 + $0x334] sm:$0xf]
    %v591 = vld [vmem:[#allocation4 + $0x338] sm:$0xf]
    %v592 = vld [vmem:[#allocation4 + $0x33c] sm:$0xf]
    %v593 = vld [vmem:[#allocation4 + $0x340] sm:$0xf]
    %v594 = vld [vmem:[#allocation4 + $0x344] sm:$0xf]
    %v595 = vld [vmem:[#allocation4 + $0x348] sm:$0xf]
    %v596 = vld [vmem:[#allocation4 + $0x34c] sm:$0xf]
    %v597 = vld [vmem:[#allocation4 + $0x350] sm:$0xf]
    %v598 = vld [vmem:[#allocation4 + $0x354] sm:$0xf]
    %v599 = vld [vmem:[#allocation4 + $0x358] sm:$0xf]
    %v600 = vld [vmem:[#allocation4 + $0x35c] sm:$0xf]
    %v601 = vld [vmem:[#allocation4 + $0x360] sm:$0xf]
    %v602 = vld [vmem:[#allocation4 + $0x364] sm:$0xf]
    %v603 = vld [vmem:[#allocation4 + $0x368] sm:$0xf]
    %v604 = vld [vmem:[#allocation4 + $0x36c] sm:$0xf]
    %v605 = vld [vmem:[#allocation4 + $0x370] sm:$0xf]
    %v606 = vld [vmem:[#allocation4 + $0x374] sm:$0xf]
    %v607 = vld [vmem:[#allocation4 + $0x378] sm:$0xf]
    %v608 = vld [vmem:[#allocation4 + $0x37c] sm:$0xf]
    %v609 = vld [vmem:[#allocation4 + $0x380] sm:$0xf]
    %v610 = vld [vmem:[#allocation4 + $0x384] sm:$0xf]
    %v611 = vld [vmem:[#allocation4 + $0x388] sm:$0xf]
    %v612 = vld [vmem:[#allocation4 + $0x38c] sm:$0xf]
    %v613 = vld [vmem:[#allocation4 + $0x390] sm:$0xf]
    %v614 = vld [vmem:[#allocation4 + $0x394] sm:$0xf]
    %v615 = vld [vmem:[#allocation4 + $0x398] sm:$0xf]
    %v616 = vld [vmem:[#allocation4 + $0x39c] sm:$0xf]
    %v617 = vld [vmem:[#allocation4 + $0x3a0] sm:$0xf]
    %v618 = vld [vmem:[#allocation4 + $0x3a4] sm:$0xf]
    %v619 = vld [vmem:[#allocation4 + $0x3a8] sm:$0xf]
    %v620 = vld [vmem:[#allocation4 + $0x3ac] sm:$0xf]
    %v621 = vld [vmem:[#allocation4 + $0x3b0] sm:$0xf]
    %v622 = vld [vmem:[#allocation4 + $0x3b4] sm:$0xf]
    %v623 = vld [vmem:[#allocation4 + $0x3b8] sm:$0xf]
    %v624 = vld [vmem:[#allocation4 + $0x3bc] sm:$0xf]
    %v625 = vld [vmem:[#allocation4 + $0x3c0] sm:$0xf]
    %v626 = vld [vmem:[#allocation4 + $0x3c4] sm:$0xf]
    %v627 = vld [vmem:[#allocation4 + $0x3c8] sm:$0xf]
    %v628 = vld [vmem:[#allocation4 + $0x3cc] sm:$0xf]
    %v629 = vld [vmem:[#allocation4 + $0x3d0] sm:$0xf]
    %v630 = vld [vmem:[#allocation4 + $0x3d4] sm:$0xf]
    %v631 = vld [vmem:[#allocation4 + $0x3d8] sm:$0xf]
    %v632 = vld [vmem:[#allocation4 + $0x3dc] sm:$0xf]
    %v633 = vld [vmem:[#allocation4 + $0x3e0] sm:$0xf]
    %v634 = vld [vmem:[#allocation4 + $0x3e4] sm:$0xf]
    %v635 = vld [vmem:[#allocation4 + $0x3e8] sm:$0xf]
    %v636 = vld [vmem:[#allocation4 + $0x3ec] sm:$0xf]
    %v637 = vld [vmem:[#allocation4 + $0x3f0] sm:$0xf]
    %v638 = vld [vmem:[#allocation4 + $0x3f4] sm:$0xf]
    %v639 = vld [vmem:[#allocation4 + $0x3f8] sm:$0xf]
    %v640 = vld [vmem:[#allocation4 + $0x3fc] sm:$0xf]
    %v641 = vld [vmem:[#allocation4 + $0x400] sm:$0xf]
    %v642 = vld [vmem:[#allocation4 + $0x404] sm:$0xf]
    %v643 = vld [vmem:[#allocation4 + $0x408] sm:$0xf]
    %v644 = vld [vmem:[#allocation4 + $0x40c] sm:$0xf]
    %v645 = vld [vmem:[#allocation4 + $0x410] sm:$0xf]
    %v646 = vld [vmem:[#allocation4 + $0x414] sm:$0xf]
    %v647 = vld [vmem:[#allocation4 + $0x418] sm:$0xf]
    %v648 = vld [vmem:[#allocation4 + $0x41c] sm:$0xf]
    %v649 = vld [vmem:[#allocation4 + $0x420] sm:$0xf]
    %v650 = vld [vmem:[#allocation4 + $0x424] sm:$0xf]
    %v651 = vld [vmem:[#allocation4 + $0x428] sm:$0xf]
    %v652 = vld [vmem:[#allocation4 + $0x42c] sm:$0xf]
    %v653 = vld [vmem:[#allocation4 + $0x430] sm:$0xf]
    %v654 = vld [vmem:[#allocation4 + $0x434] sm:$0xf]
    %v655 = vld [vmem:[#allocation4 + $0x438] sm:$0xf]
    %v656 = vld [vmem:[#allocation4 + $0x43c] sm:$0xf]
    %v657 = vld [vmem:[#allocation4 + $0x440] sm:$0xf]
    %v658 = vld [vmem:[#allocation4 + $0x444] sm:$0xf]
    %v659 = vld [vmem:[#allocation4 + $0x448] sm:$0xf]
    %v660 = vld [vmem:[#allocation4 + $0x44c] sm:$0xf]
    %v661 = vld [vmem:[#allocation4 + $0x450] sm:$0xf]
    %v662 = vld [vmem:[#allocation4 + $0x454] sm:$0xf]
    %v663 = vld [vmem:[#allocation4 + $0x458] sm:$0xf]
    %v664 = vld [vmem:[#allocation4 + $0x45c] sm:$0xf]
    %v665 = vld [vmem:[#allocation4 + $0x460] sm:$0xf]
    %v666 = vld [vmem:[#allocation4 + $0x464] sm:$0xf]
    %v667 = vld [vmem:[#allocation4 + $0x468] sm:$0xf]
    %v668 = vld [vmem:[#allocation4 + $0x46c] sm:$0xf]
    %v669 = vld [vmem:[#allocation4 + $0x470] sm:$0xf]
    %v670 = vld [vmem:[#allocation4 + $0x474] sm:$0xf]
    %v671 = vld [vmem:[#allocation4 + $0x478] sm:$0xf]
    %v672 = vld [vmem:[#allocation4 + $0x47c] sm:$0xf]
    %v673 = vld [vmem:[#allocation4 + $0x480] sm:$0xf]
    %v674 = vld [vmem:[#allocation4 + $0x484] sm:$0xf]
    %v675 = vld [vmem:[#allocation4 + $0x488] sm:$0xf]
    %v676 = vld [vmem:[#allocation4 + $0x48c] sm:$0xf]
    %v677 = vld [vmem:[#allocation4 + $0x490] sm:$0xf]
    %v678 = vld [vmem:[#allocation4 + $0x494] sm:$0xf]
    %v679 = vld [vmem:[#allocation4 + $0x498] sm:$0xf]
    %v680 = vld [vmem:[#allocation4 + $0x49c] sm:$0xf]
    %v681 = vld [vmem:[#allocation4 + $0x4a0] sm:$0xf]
    %v682 = vld [vmem:[#allocation4 + $0x4a4] sm:$0xf]
    %v683 = vld [vmem:[#allocation4 + $0x4a8] sm:$0xf]
    %v684 = vld [vmem:[#allocation4 + $0x4ac] sm:$0xf]
    %v685 = vld [vmem:[#allocation4 + $0x4b0] sm:$0xf]
    %v686 = vld [vmem:[#allocation4 + $0x4b4] sm:$0xf]
    %v687 = vld [vmem:[#allocation4 + $0x4b8] sm:$0xf]
    %v688 = vld [vmem:[#allocation4 + $0x4bc] sm:$0xf]
    %v689 = vld [vmem:[#allocation4 + $0x4c0] sm:$0xf]
    %v690 = vld [vmem:[#allocation4 + $0x4c4] sm:$0xf]
    %v691 = vld [vmem:[#allocation4 + $0x4c8] sm:$0xf]
    %v692 = vld [vmem:[#allocation4 + $0x4cc] sm:$0xf]
    %v693 = vld [vmem:[#allocation4 + $0x4d0] sm:$0xf]
    %v694 = vld [vmem:[#allocation4 + $0x4d4] sm:$0xf]
    %v695 = vld [vmem:[#allocation4 + $0x4d8] sm:$0xf]
    %v696 = vld [vmem:[#allocation4 + $0x4dc] sm:$0xf]
    %v697 = vld [vmem:[#allocation4 + $0x4e0] sm:$0xf]
    %v698 = vld [vmem:[#allocation4 + $0x4e4] sm:$0xf]
    %v699 = vld [vmem:[#allocation4 + $0x4e8] sm:$0xf]
    %v700 = vld [vmem:[#allocation4 + $0x4ec] sm:$0xf]
    %v701 = vld [vmem:[#allocation4 + $0x4f0] sm:$0xf]
    %v702 = vld [vmem:[#allocation4 + $0x4f4] sm:$0xf]
    %v703 = vld [vmem:[#allocation4 + $0x4f8] sm:$0xf]
    %v704 = vld [vmem:[#allocation4 + $0x4fc] sm:$0xf]
    %v705 = vld [vmem:[#allocation4 + $0x500] sm:$0xf]
    %v706 = vld [vmem:[#allocation4 + $0x504] sm:$0xf]
    %v707 = vld [vmem:[#allocation4 + $0x508] sm:$0xf]
    %v708 = vld [vmem:[#allocation4 + $0x50c] sm:$0xf]
    %v709 = vld [vmem:[#allocation4 + $0x510] sm:$0xf]
    %v710 = vld [vmem:[#allocation4 + $0x514] sm:$0xf]
    %v711 = vld [vmem:[#allocation4 + $0x518] sm:$0xf]
    %v712 = vld [vmem:[#allocation4 + $0x51c] sm:$0xf]
    %v713 = vld [vmem:[#allocation4 + $0x520] sm:$0xf]
    %v714 = vld [vmem:[#allocation4 + $0x524] sm:$0xf]
    %v715 = vld [vmem:[#allocation4 + $0x528] sm:$0xf]
    %v716 = vld [vmem:[#allocation4 + $0x52c] sm:$0xf]
    %v717 = vld [vmem:[#allocation4 + $0x530] sm:$0xf]
    %v718 = vld [vmem:[#allocation4 + $0x534] sm:$0xf]
    %v719 = vld [vmem:[#allocation4 + $0x538] sm:$0xf]
    %v720 = vld [vmem:[#allocation4 + $0x53c] sm:$0xf]
    %v721 = vld [vmem:[#allocation4 + $0x540] sm:$0xf]
    %v722 = vld [vmem:[#allocation4 + $0x544] sm:$0xf]
    %v723 = vld [vmem:[#allocation4 + $0x548] sm:$0xf]
    %v724 = vld [vmem:[#allocation4 + $0x54c] sm:$0xf]
    %v725 = vld [vmem:[#allocation4 + $0x550] sm:$0xf]
    %v726 = vld [vmem:[#allocation4 + $0x554] sm:$0xf]
    %v727 = vld [vmem:[#allocation4 + $0x558] sm:$0xf]
    %v728 = vld [vmem:[#allocation4 + $0x55c] sm:$0xf]
    %v729 = vld [vmem:[#allocation4 + $0x560] sm:$0xf]
    %v730 = vld [vmem:[#allocation4 + $0x564] sm:$0xf]
    %v731 = vld [vmem:[#allocation4 + $0x568] sm:$0xf]
    %v732 = vld [vmem:[#allocation4 + $0x56c] sm:$0xf]
    %v733 = vld [vmem:[#allocation4 + $0x570] sm:$0xf]
    %v734 = vld [vmem:[#allocation4 + $0x574] sm:$0xf]
    %v735 = vld [vmem:[#allocation4 + $0x578] sm:$0xf]
    %v736 = vld [vmem:[#allocation4 + $0x57c] sm:$0xf]
    %v737 = vld [vmem:[#allocation4 + $0x580] sm:$0xf]
    %v738 = vld [vmem:[#allocation4 + $0x584] sm:$0xf]
    %v739 = vld [vmem:[#allocation4 + $0x588] sm:$0xf]
    %v740 = vld [vmem:[#allocation4 + $0x58c] sm:$0xf]
    %v741 = vld [vmem:[#allocation4 + $0x590] sm:$0xf]
    %v742 = vld [vmem:[#allocation4 + $0x594] sm:$0xf]
    %v743 = vld [vmem:[#allocation4 + $0x598] sm:$0xf]
    %v744 = vld [vmem:[#allocation4 + $0x59c] sm:$0xf]
    %v745 = vld [vmem:[#allocation4 + $0x5a0] sm:$0xf]
    %v746 = vld [vmem:[#allocation4 + $0x5a4] sm:$0xf]
    %v747 = vld [vmem:[#allocation4 + $0x5a8] sm:$0xf]
    %v748 = vld [vmem:[#allocation4 + $0x5ac] sm:$0xf]
    %v749 = vld [vmem:[#allocation4 + $0x5b0] sm:$0xf]
    %v750 = vld [vmem:[#allocation4 + $0x5b4] sm:$0xf]
    %v751 = vld [vmem:[#allocation4 + $0x5b8] sm:$0xf]
    %v752 = vld [vmem:[#allocation4 + $0x5bc] sm:$0xf]
    %v753 = vld [vmem:[#allocation4 + $0x5c0] sm:$0xf]
    %v754 = vld [vmem:[#allocation4 + $0x5c4] sm:$0xf]
    %v755 = vld [vmem:[#allocation4 + $0x5c8] sm:$0xf]
    %v756 = vld [vmem:[#allocation4 + $0x5cc] sm:$0xf]
    %v757 = vld [vmem:[#allocation4 + $0x5d0] sm:$0xf]
    %v758 = vld [vmem:[#allocation4 + $0x5d4] sm:$0xf]
    %v759 = vld [vmem:[#allocation4 + $0x5d8] sm:$0xf]
    %v760 = vld [vmem:[#allocation4 + $0x5dc] sm:$0xf]
    %v761 = vld [vmem:[#allocation4 + $0x5e0] sm:$0xf]
    %v762 = vld [vmem:[#allocation4 + $0x5e4] sm:$0xf]
    %v763 = vld [vmem:[#allocation4 + $0x5e8] sm:$0xf]
    %v764 = vld [vmem:[#allocation4 + $0x5ec] sm:$0xf]
    %v765 = vld [vmem:[#allocation4 + $0x5f0] sm:$0xf]
    %v766 = vld [vmem:[#allocation4 + $0x5f4] sm:$0xf]
    %v767 = vld [vmem:[#allocation4 + $0x5f8] sm:$0xf]
    %v768 = vld [vmem:[#allocation4 + $0x5fc] sm:$0xf]
    %v769 = vld [vmem:[#allocation4 + $0x600] sm:$0xf]
    %v770 = vld [vmem:[#allocation4 + $0x604] sm:$0xf]
    %v771 = vld [vmem:[#allocation4 + $0x608] sm:$0xf]
    %v772 = vld [vmem:[#allocation4 + $0x60c] sm:$0xf]
    %v773 = vld [vmem:[#allocation4 + $0x610] sm:$0xf]
    %v774 = vld [vmem:[#allocation4 + $0x614] sm:$0xf]
    %v775 = vld [vmem:[#allocation4 + $0x618] sm:$0xf]
    %v776 = vld [vmem:[#allocation4 + $0x61c] sm:$0xf]
    %v777 = vld [vmem:[#allocation4 + $0x620] sm:$0xf]
    %v778 = vld [vmem:[#allocation4 + $0x624] sm:$0xf]
    %v779 = vld [vmem:[#allocation4 + $0x628] sm:$0xf]
    %v780 = vld [vmem:[#allocation4 + $0x62c] sm:$0xf]
    %v781 = vld [vmem:[#allocation4 + $0x630] sm:$0xf]
    %v782 = vld [vmem:[#allocation4 + $0x634] sm:$0xf]
    %v783 = vld [vmem:[#allocation4 + $0x638] sm:$0xf]
    %v784 = vld [vmem:[#allocation4 + $0x63c] sm:$0xf]
    %v785 = vld [vmem:[#allocation4 + $0x640] sm:$0xf]
    %v786 = vld [vmem:[#allocation4 + $0x644] sm:$0xf]
    %v787 = vld [vmem:[#allocation4 + $0x648] sm:$0xf]
    %v788 = vld [vmem:[#allocation4 + $0x64c] sm:$0xf]
    %v789 = vld [vmem:[#allocation4 + $0x650] sm:$0xf]
    %v790 = vld [vmem:[#allocation4 + $0x654] sm:$0xf]
    %v791 = vld [vmem:[#allocation4 + $0x658] sm:$0xf]
    %v792 = vld [vmem:[#allocation4 + $0x65c] sm:$0xf]
    %v793 = vld [vmem:[#allocation4 + $0x660] sm:$0xf]
    %v794 = vld [vmem:[#allocation4 + $0x664] sm:$0xf]
    %v795 = vld [vmem:[#allocation4 + $0x668] sm:$0xf]
    %v796 = vld [vmem:[#allocation4 + $0x66c] sm:$0xf]
    %v797 = vld [vmem:[#allocation4 + $0x670] sm:$0xf]
    %v798 = vld [vmem:[#allocation4 + $0x674] sm:$0xf]
    %v799 = vld [vmem:[#allocation4 + $0x678] sm:$0xf]
    %v800 = vld [vmem:[#allocation4 + $0x67c] sm:$0xf]
    %v801 = vld [vmem:[#allocation4 + $0x680] sm:$0xf]
    %v802 = vld [vmem:[#allocation4 + $0x684] sm:$0xf]
    %v803 = vld [vmem:[#allocation4 + $0x688] sm:$0xf]
    %v804 = vld [vmem:[#allocation4 + $0x68c] sm:$0xf]
    %v805 = vld [vmem:[#allocation4 + $0x690] sm:$0xf]
    %v806 = vld [vmem:[#allocation4 + $0x694] sm:$0xf]
    %v807 = vld [vmem:[#allocation4 + $0x698] sm:$0xf]
    %v808 = vld [vmem:[#allocation4 + $0x69c] sm:$0xf]
    %v809 = vld [vmem:[#allocation4 + $0x6a0] sm:$0xf]
    %v810 = vld [vmem:[#allocation4 + $0x6a4] sm:$0xf]
    %v811 = vld [vmem:[#allocation4 + $0x6a8] sm:$0xf]
    %v812 = vld [vmem:[#allocation4 + $0x6ac] sm:$0xf]
    %v813 = vld [vmem:[#allocation4 + $0x6b0] sm:$0xf]
    %v814 = vld [vmem:[#allocation4 + $0x6b4] sm:$0xf]
    %v815 = vld [vmem:[#allocation4 + $0x6b8] sm:$0xf]
    %v816 = vld [vmem:[#allocation4 + $0x6bc] sm:$0xf]
    %v817 = vld [vmem:[#allocation4 + $0x6c0] sm:$0xf]
    %v818 = vld [vmem:[#allocation4 + $0x6c4] sm:$0xf]
    %v819 = vld [vmem:[#allocation4 + $0x6c8] sm:$0xf]
    %v820 = vld [vmem:[#allocation4 + $0x6cc] sm:$0xf]
    %v821 = vld [vmem:[#allocation4 + $0x6d0] sm:$0xf]
    %v822 = vld [vmem:[#allocation4 + $0x6d4] sm:$0xf]
    %v823 = vld [vmem:[#allocation4 + $0x6d8] sm:$0xf]
    %v824 = vld [vmem:[#allocation4 + $0x6dc] sm:$0xf]
    %v825 = vld [vmem:[#allocation4 + $0x6e0] sm:$0xf]
    %v826 = vld [vmem:[#allocation4 + $0x6e4] sm:$0xf]
    %v827 = vld [vmem:[#allocation4 + $0x6e8] sm:$0xf]
    %v828 = vld [vmem:[#allocation4 + $0x6ec] sm:$0xf]
    %v829 = vld [vmem:[#allocation4 + $0x6f0] sm:$0xf]
    %v830 = vld [vmem:[#allocation4 + $0x6f4] sm:$0xf]
    %v831 = vld [vmem:[#allocation4 + $0x6f8] sm:$0xf]
    %v832 = vld [vmem:[#allocation4 + $0x6fc] sm:$0xf]
    %v833 = vld [vmem:[#allocation4 + $0x700] sm:$0xf]
    %v834 = vld [vmem:[#allocation4 + $0x704] sm:$0xf]
    %v835 = vld [vmem:[#allocation4 + $0x708] sm:$0xf]
    %v836 = vld [vmem:[#allocation4 + $0x70c] sm:$0xf]
    %v837 = vld [vmem:[#allocation4 + $0x710] sm:$0xf]
    %v838 = vld [vmem:[#allocation4 + $0x714] sm:$0xf]
    %v839 = vld [vmem:[#allocation4 + $0x718] sm:$0xf]
    %v840 = vld [vmem:[#allocation4 + $0x71c] sm:$0xf]
    %v841 = vld [vmem:[#allocation4 + $0x720] sm:$0xf]
    %v842 = vld [vmem:[#allocation4 + $0x724] sm:$0xf]
    %v843 = vld [vmem:[#allocation4 + $0x728] sm:$0xf]
    %v844 = vld [vmem:[#allocation4 + $0x72c] sm:$0xf]
    %v845 = vld [vmem:[#allocation4 + $0x730] sm:$0xf]
    %v846 = vld [vmem:[#allocation4 + $0x734] sm:$0xf]
    %v847 = vld [vmem:[#allocation4 + $0x738] sm:$0xf]
    %v848 = vld [vmem:[#allocation4 + $0x73c] sm:$0xf]
    %v849 = vld [vmem:[#allocation4 + $0x740] sm:$0xf]
    %v850 = vld [vmem:[#allocation4 + $0x744] sm:$0xf]
    %v851 = vld [vmem:[#allocation4 + $0x748] sm:$0xf]
    %v852 = vld [vmem:[#allocation4 + $0x74c] sm:$0xf]
    %v853 = vld [vmem:[#allocation4 + $0x750] sm:$0xf]
    %v854 = vld [vmem:[#allocation4 + $0x754] sm:$0xf]
    %v855 = vld [vmem:[#allocation4 + $0x758] sm:$0xf]
    %v856 = vld [vmem:[#allocation4 + $0x75c] sm:$0xf]
    %v857 = vld [vmem:[#allocation4 + $0x760] sm:$0xf]
    %v858 = vld [vmem:[#allocation4 + $0x764] sm:$0xf]
    %v859 = vld [vmem:[#allocation4 + $0x768] sm:$0xf]
    %v860 = vld [vmem:[#allocation4 + $0x76c] sm:$0xf]
    %v861 = vld [vmem:[#allocation4 + $0x770] sm:$0xf]
    %v862 = vld [vmem:[#allocation4 + $0x774] sm:$0xf]
    %v863 = vld [vmem:[#allocation4 + $0x778] sm:$0xf]
    %v864 = vld [vmem:[#allocation4 + $0x77c] sm:$0xf]
    %v865 = vld [vmem:[#allocation4 + $0x780] sm:$0xf]
    %v866 = vld [vmem:[#allocation4 + $0x784] sm:$0xf]
    %v867 = vld [vmem:[#allocation4 + $0x788] sm:$0xf]
    %v868 = vld [vmem:[#allocation4 + $0x78c] sm:$0xf]
    %v869 = vld [vmem:[#allocation4 + $0x790] sm:$0xf]
    %v870 = vld [vmem:[#allocation4 + $0x794] sm:$0xf]
    %v871 = vld [vmem:[#allocation4 + $0x798] sm:$0xf]
    %v872 = vld [vmem:[#allocation4 + $0x79c] sm:$0xf]
    %v873 = vld [vmem:[#allocation4 + $0x7a0] sm:$0xf]
    %v874 = vld [vmem:[#allocation4 + $0x7a4] sm:$0xf]
    %v875 = vld [vmem:[#allocation4 + $0x7a8] sm:$0xf]
    %v876 = vld [vmem:[#allocation4 + $0x7ac] sm:$0xf]
    %v877 = vld [vmem:[#allocation4 + $0x7b0] sm:$0xf]
    %v878 = vld [vmem:[#allocation4 + $0x7b4] sm:$0xf]
    %v879 = vld [vmem:[#allocation4 + $0x7b8] sm:$0xf]
    %v880 = vld [vmem:[#allocation4 + $0x7bc] sm:$0xf]
    %v881 = vld [vmem:[#allocation4 + $0x7c0] sm:$0xf]
    %v882 = vld [vmem:[#allocation4 + $0x7c4] sm:$0xf]
    %v883 = vld [vmem:[#allocation4 + $0x7c8] sm:$0xf]
    %v884 = vld [vmem:[#allocation4 + $0x7cc] sm:$0xf]
    %v885 = vld [vmem:[#allocation4 + $0x7d0] sm:$0xf]
    %v886 = vld [vmem:[#allocation4 + $0x7d4] sm:$0xf]
    %v887 = vld [vmem:[#allocation4 + $0x7d8] sm:$0xf]
    %v888 = vld [vmem:[#allocation4 + $0x7dc] sm:$0xf]
    %v889 = vld [vmem:[#allocation4 + $0x7e0] sm:$0xf]
    %v890 = vld [vmem:[#allocation4 + $0x7e4] sm:$0xf]
    %v891 = vld [vmem:[#allocation4 + $0x7e8] sm:$0xf]
    %v892 = vld [vmem:[#allocation4 + $0x7ec] sm:$0xf]
    %v893 = vld [vmem:[#allocation4 + $0x7f0] sm:$0xf]
    %v894 = vld [vmem:[#allocation4 + $0x7f4] sm:$0xf]
    %v895 = vld [vmem:[#allocation4 + $0x7f8] sm:$0xf]
    %v896 = vld [vmem:[#allocation4 + $0x7fc] sm:$0xf]
    %v897 = vld [vmem:[#allocation4 + $0x800] sm:$0xf]
    %v898 = vld [vmem:[#allocation4 + $0x804] sm:$0xf]
    %v899 = vld [vmem:[#allocation4 + $0x808] sm:$0xf]
    %v900 = vld [vmem:[#allocation4 + $0x80c] sm:$0xf]
    %v901 = vld [vmem:[#allocation4 + $0x810] sm:$0xf]
    %v902 = vld [vmem:[#allocation4 + $0x814] sm:$0xf]
    %v903 = vld [vmem:[#allocation4 + $0x818] sm:$0xf]
    %v904 = vld [vmem:[#allocation4 + $0x81c] sm:$0xf]
    %v905 = vld [vmem:[#allocation4 + $0x820] sm:$0xf]
    %v906 = vld [vmem:[#allocation4 + $0x824] sm:$0xf]
    %v907 = vld [vmem:[#allocation4 + $0x828] sm:$0xf]
    %v908 = vld [vmem:[#allocation4 + $0x82c] sm:$0xf]
    %v909 = vld [vmem:[#allocation4 + $0x830] sm:$0xf]
    %v910 = vld [vmem:[#allocation4 + $0x834] sm:$0xf]
    %v911 = vld [vmem:[#allocation4 + $0x838] sm:$0xf]
    %v912 = vld [vmem:[#allocation4 + $0x83c] sm:$0xf]
    %v913 = vld [vmem:[#allocation4 + $0x840] sm:$0xf]
    %v914 = vld [vmem:[#allocation4 + $0x844] sm:$0xf]
    %v915 = vld [vmem:[#allocation4 + $0x848] sm:$0xf]
    %v916 = vld [vmem:[#allocation4 + $0x84c] sm:$0xf]
    %v917 = vld [vmem:[#allocation4 + $0x850] sm:$0xf]
    %v918 = vld [vmem:[#allocation4 + $0x854] sm:$0xf]
    %v919 = vld [vmem:[#allocation4 + $0x858] sm:$0xf]
    %v920 = vld [vmem:[#allocation4 + $0x85c] sm:$0xf]
    %v921 = vld [vmem:[#allocation4 + $0x860] sm:$0xf]
    %v922 = vld [vmem:[#allocation4 + $0x864] sm:$0xf]
    %v923 = vld [vmem:[#allocation4 + $0x868] sm:$0xf]
    %v924 = vld [vmem:[#allocation4 + $0x86c] sm:$0xf]
    %v925 = vld [vmem:[#allocation4 + $0x870] sm:$0xf]
    %v926 = vld [vmem:[#allocation4 + $0x874] sm:$0xf]
    %v927 = vld [vmem:[#allocation4 + $0x878] sm:$0xf]
    %v928 = vld [vmem:[#allocation4 + $0x87c] sm:$0xf]
    %v929 = vld [vmem:[#allocation4 + $0x880] sm:$0xf]
    %v930 = vld [vmem:[#allocation4 + $0x884] sm:$0xf]
    %v931 = vld [vmem:[#allocation4 + $0x888] sm:$0xf]
    %v932 = vld [vmem:[#allocation4 + $0x88c] sm:$0xf]
    %v933 = vld [vmem:[#allocation4 + $0x890] sm:$0xf]
    %v934 = vld [vmem:[#allocation4 + $0x894] sm:$0xf]
    %v935 = vld [vmem:[#allocation4 + $0x898] sm:$0xf]
    %v936 = vld [vmem:[#allocation4 + $0x89c] sm:$0xf]
    %v937 = vld [vmem:[#allocation4 + $0x8a0] sm:$0xf]
    %v938 = vld [vmem:[#allocation4 + $0x8a4] sm:$0xf]
    %v939 = vld [vmem:[#allocation4 + $0x8a8] sm:$0xf]
    %v940 = vld [vmem:[#allocation4 + $0x8ac] sm:$0xf]
    %v941 = vld [vmem:[#allocation4 + $0x8b0] sm:$0xf]
    %v942 = vld [vmem:[#allocation4 + $0x8b4] sm:$0xf]
    %v943 = vld [vmem:[#allocation4 + $0x8b8] sm:$0xf]
    %v944 = vld [vmem:[#allocation4 + $0x8bc] sm:$0xf]
    %v945 = vld [vmem:[#allocation4 + $0x8c0] sm:$0xf]
    %v946 = vld [vmem:[#allocation4 + $0x8c4] sm:$0xf]
    %v947 = vld [vmem:[#allocation4 + $0x8c8] sm:$0xf]
    %v948 = vld [vmem:[#allocation4 + $0x8cc] sm:$0xf]
    %v949 = vld [vmem:[#allocation4 + $0x8d0] sm:$0xf]
    %v950 = vld [vmem:[#allocation4 + $0x8d4] sm:$0xf]
    %v951 = vld [vmem:[#allocation4 + $0x8d8] sm:$0xf]
    %v952 = vld [vmem:[#allocation4 + $0x8dc] sm:$0xf]
    %v953 = vld [vmem:[#allocation4 + $0x8e0] sm:$0xf]
    %v954 = vld [vmem:[#allocation4 + $0x8e4] sm:$0xf]
    %v955 = vld [vmem:[#allocation4 + $0x8e8] sm:$0xf]
    %v956 = vld [vmem:[#allocation4 + $0x8ec] sm:$0xf]
    %v957 = vld [vmem:[#allocation4 + $0x8f0] sm:$0xf]
    %v958 = vld [vmem:[#allocation4 + $0x8f4] sm:$0xf]
    %v959 = vld [vmem:[#allocation4 + $0x8f8] sm:$0xf]
    %v960 = vld [vmem:[#allocation4 + $0x8fc] sm:$0xf]
    %v963 = vunpack.c.l.b16 %v367
    %v964 = vunpack.c.h.b16 %v367
    %v965 = vunpack.c.l.b16 %v368
    %v966 = vunpack.c.h.b16 %v368
    %v967 = vpack.c.b16 %v963, %v963
    %v968 = vpack.c.b16 %v964, %v964
    %v969 = vpack.c.b16 %v965, %v965
    %v970 = vpack.c.b16 %v966, %v966
    %v1039 = vunpack.c.l.b16 %v385
    %v1040 = vunpack.c.l.b16 %v386
    %v1041 = vunpack.c.l.b16 %v387
    %v1042 = vunpack.c.l.b16 %v388
    %v1043 = vunpack.c.l.b16 %v389
    %v1044 = vunpack.c.l.b16 %v390
    %v1045 = vunpack.c.l.b16 %v391
    %v1046 = vunpack.c.l.b16 %v392
    %v1047 = vunpack.c.l.b16 %v393
    %v1048 = vunpack.c.l.b16 %v394
    %v1049 = vunpack.c.l.b16 %v395
    %v1050 = vunpack.c.l.b16 %v396
    %v1051 = vunpack.c.l.b16 %v397
    %v1052 = vunpack.c.l.b16 %v398
    %v1053 = vunpack.c.l.b16 %v399
    %v1054 = vunpack.c.l.b16 %v400
    %v1055 = vunpack.c.l.b16 %v401
    %v1056 = vunpack.c.l.b16 %v402
    %v1057 = vunpack.c.l.b16 %v403
    %v1058 = vunpack.c.l.b16 %v404
    %v1059 = vunpack.c.l.b16 %v405
    %v1060 = vunpack.c.l.b16 %v406
    %v1061 = vunpack.c.l.b16 %v407
    %v1062 = vunpack.c.l.b16 %v408
    %v1063 = vunpack.c.l.b16 %v409
    %v1064 = vunpack.c.l.b16 %v410
    %v1065 = vunpack.c.l.b16 %v411
    %v1066 = vunpack.c.l.b16 %v412
    %v1067 = vunpack.c.l.b16 %v413
    %v1068 = vunpack.c.l.b16 %v414
    %v1069 = vunpack.c.l.b16 %v415
    %v1070 = vunpack.c.l.b16 %v416
    %v1071 = vunpack.c.l.b16 %v417
    %v1072 = vunpack.c.l.b16 %v418
    %v1073 = vunpack.c.l.b16 %v419
    %v1074 = vunpack.c.l.b16 %v420
    %v1075 = vunpack.c.l.b16 %v421
    %v1076 = vunpack.c.l.b16 %v422
    %v1077 = vunpack.c.l.b16 %v423
    %v1078 = vunpack.c.l.b16 %v424
    %v1079 = vunpack.c.l.b16 %v425
    %v1080 = vunpack.c.l.b16 %v426
    %v1081 = vunpack.c.l.b16 %v427
    %v1082 = vunpack.c.l.b16 %v428
    %v1083 = vunpack.c.l.b16 %v429
    %v1084 = vunpack.c.l.b16 %v430
    %v1085 = vunpack.c.l.b16 %v431
    %v1086 = vunpack.c.l.b16 %v432
    %v1087 = vunpack.c.l.b16 %v433
    %v1088 = vunpack.c.l.b16 %v434
    %v1089 = vunpack.c.l.b16 %v435
    %v1090 = vunpack.c.l.b16 %v436
    %v1091 = vunpack.c.l.b16 %v437
    %v1092 = vunpack.c.l.b16 %v438
    %v1093 = vunpack.c.l.b16 %v439
    %v1094 = vunpack.c.l.b16 %v440
    %v1095 = vunpack.c.l.b16 %v441
    %v1096 = vunpack.c.l.b16 %v442
    %v1097 = vunpack.c.l.b16 %v443
    %v1098 = vunpack.c.l.b16 %v444
    %v1099 = vunpack.c.l.b16 %v445
    %v1100 = vunpack.c.l.b16 %v446
    %v1101 = vunpack.c.l.b16 %v447
    %v1102 = vunpack.c.l.b16 %v448
    %v1103 = vpack.c.b16 %v1040, %v1039
    %v1104 = vpack.c.b16 %v1042, %v1041
    %v1105 = vpack.c.b16 %v1044, %v1043
    %v1106 = vpack.c.b16 %v1046, %v1045
    %v1107 = vpack.c.b16 %v1048, %v1047
    %v1108 = vpack.c.b16 %v1050, %v1049
    %v1109 = vpack.c.b16 %v1052, %v1051
    %v1110 = vpack.c.b16 %v1054, %v1053
    %v1111 = vpack.c.b16 %v1056, %v1055
    %v1112 = vpack.c.b16 %v1058, %v1057
    %v1113 = vpack.c.b16 %v1060, %v1059
    %v1114 = vpack.c.b16 %v1062, %v1061
    %v1115 = vpack.c.b16 %v1064, %v1063
    %v1116 = vpack.c.b16 %v1066, %v1065
    %v1117 = vpack.c.b16 %v1068, %v1067
    %v1118 = vpack.c.b16 %v1070, %v1069
    %v1119 = vpack.c.b16 %v1072, %v1071
    %v1120 = vpack.c.b16 %v1074, %v1073
    %v1121 = vpack.c.b16 %v1076, %v1075
    %v1122 = vpack.c.b16 %v1078, %v1077
    %v1123 = vpack.c.b16 %v1080, %v1079
    %v1124 = vpack.c.b16 %v1082, %v1081
    %v1125 = vpack.c.b16 %v1084, %v1083
    %v1126 = vpack.c.b16 %v1086, %v1085
    %v1127 = vpack.c.b16 %v1088, %v1087
    %v1128 = vpack.c.b16 %v1090, %v1089
    %v1129 = vpack.c.b16 %v1092, %v1091
    %v1130 = vpack.c.b16 %v1094, %v1093
    %v1131 = vpack.c.b16 %v1096, %v1095
    %v1132 = vpack.c.b16 %v1098, %v1097
    %v1133 = vpack.c.b16 %v1100, %v1099
    %v1134 = vpack.c.b16 %v1102, %v1101
    %1167 = vmatpush.bf16.msra.mxu0 %v1110
    %1168 = vmatpush.bf16.msra.mxu0 %v1109
    %1169 = vmatpush.bf16.msra.mxu0 %v1108
    %1170 = vmatpush.bf16.msra.mxu0 %v1107
    %1171 = vmatpush.bf16.msra.mxu0 %v1106
    %1172 = vmatpush.bf16.msra.mxu0 %v1105
    %1173 = vmatpush.bf16.msra.mxu0 %v1104
    %1174 = vmatpush.bf16.msra.mxu0 %v1103
    %1175 = vmatmul.bf16.gmra.mxu0 %v967
    %v1176 = vpop.f32.mrf.mxu0
    %v1177 = vadd.f32 0.0, %v1176
    %v1178 = vpop.f32.mrf.mxu0
    %1179 = vdwg.mxu0
    %1180 = vmatpush.bf16.msra.mxu0 %v1118
    %1181 = vmatpush.bf16.msra.mxu0 %v1117
    %1182 = vmatpush.bf16.msra.mxu0 %v1116
    %1183 = vmatpush.bf16.msra.mxu0 %v1115
    %1184 = vmatpush.bf16.msra.mxu0 %v1114
    %1185 = vmatpush.bf16.msra.mxu0 %v1113
    %1186 = vmatpush.bf16.msra.mxu0 %v1112
    %1187 = vmatpush.bf16.msra.mxu0 %v1111
    %1188 = vmatmul.bf16.gmra.mxu0 %v968
    %v1189 = vpop.f32.mrf.mxu0
    %v1190 = vadd.f32 %v1177, %v1189
    %v1191 = vpop.f32.mrf.mxu0
    %1192 = vdwg.mxu0
    %1193 = vmatpush.bf16.msra.mxu0 %v1126
    %1194 = vmatpush.bf16.msra.mxu0 %v1125
    %1195 = vmatpush.bf16.msra.mxu0 %v1124
    %1196 = vmatpush.bf16.msra.mxu0 %v1123
    %1197 = vmatpush.bf16.msra.mxu0 %v1122
    %1198 = vmatpush.bf16.msra.mxu0 %v1121
    %1199 = vmatpush.bf16.msra.mxu0 %v1120
    %1200 = vmatpush.bf16.msra.mxu0 %v1119
    %1201 = vmatmul.bf16.gmra.mxu0 %v969
    %v1202 = vpop.f32.mrf.mxu0
    %v1203 = vadd.f32 %v1190, %v1202
    %v1204 = vpop.f32.mrf.mxu0
    %1205 = vdwg.mxu0
    %1206 = vmatpush.bf16.msra.mxu0 %v1134
    %1207 = vmatpush.bf16.msra.mxu0 %v1133
    %1208 = vmatpush.bf16.msra.mxu0 %v1132
    %1209 = vmatpush.bf16.msra.mxu0 %v1131
    %1210 = vmatpush.bf16.msra.mxu0 %v1130
    %1211 = vmatpush.bf16.msra.mxu0 %v1129
    %1212 = vmatpush.bf16.msra.mxu0 %v1128
    %1213 = vmatpush.bf16.msra.mxu0 %v1127
    %1214 = vmatmul.bf16.gmra.mxu0 %v970
    %v1215 = vpop.f32.mrf.mxu0
    %v1216 = vadd.f32 %v1203, %v1215
    %v1217 = vpop.f32.mrf.mxu0
    %1218 = vdwg.mxu0
    %v1221 = vunpack.c.l.b16 %v369
    %v1222 = vunpack.c.h.b16 %v369
    %v1223 = vunpack.c.l.b16 %v370
    %v1224 = vunpack.c.h.b16 %v370
    %v1225 = vpack.c.b16 %v1221, %v1221
    %v1226 = vpack.c.b16 %v1222, %v1222
    %v1227 = vpack.c.b16 %v1223, %v1223
    %v1228 = vpack.c.b16 %v1224, %v1224
    %v1297 = vunpack.c.l.b16 %v449
    %v1298 = vunpack.c.l.b16 %v450
    %v1299 = vunpack.c.l.b16 %v451
    %v1300 = vunpack.c.l.b16 %v452
    %v1301 = vunpack.c.l.b16 %v453
    %v1302 = vunpack.c.l.b16 %v454
    %v1303 = vunpack.c.l.b16 %v455
    %v1304 = vunpack.c.l.b16 %v456
    %v1305 = vunpack.c.l.b16 %v457
    %v1306 = vunpack.c.l.b16 %v458
    %v1307 = vunpack.c.l.b16 %v459
    %v1308 = vunpack.c.l.b16 %v460
    %v1309 = vunpack.c.l.b16 %v461
    %v1310 = vunpack.c.l.b16 %v462
    %v1311 = vunpack.c.l.b16 %v463
    %v1312 = vunpack.c.l.b16 %v464
    %v1313 = vunpack.c.l.b16 %v465
    %v1314 = vunpack.c.l.b16 %v466
    %v1315 = vunpack.c.l.b16 %v467
    %v1316 = vunpack.c.l.b16 %v468
    %v1317 = vunpack.c.l.b16 %v469
    %v1318 = vunpack.c.l.b16 %v470
    %v1319 = vunpack.c.l.b16 %v471
    %v1320 = vunpack.c.l.b16 %v472
    %v1321 = vunpack.c.l.b16 %v473
    %v1322 = vunpack.c.l.b16 %v474
    %v1323 = vunpack.c.l.b16 %v475
    %v1324 = vunpack.c.l.b16 %v476
    %v1325 = vunpack.c.l.b16 %v477
    %v1326 = vunpack.c.l.b16 %v478
    %v1327 = vunpack.c.l.b16 %v479
    %v1328 = vunpack.c.l.b16 %v480
    %v1329 = vunpack.c.l.b16 %v481
    %v1330 = vunpack.c.l.b16 %v482
    %v1331 = vunpack.c.l.b16 %v483
    %v1332 = vunpack.c.l.b16 %v484
    %v1333 = vunpack.c.l.b16 %v485
    %v1334 = vunpack.c.l.b16 %v486
    %v1335 = vunpack.c.l.b16 %v487
    %v1336 = vunpack.c.l.b16 %v488
    %v1337 = vunpack.c.l.b16 %v489
    %v1338 = vunpack.c.l.b16 %v490
    %v1339 = vunpack.c.l.b16 %v491
    %v1340 = vunpack.c.l.b16 %v492
    %v1341 = vunpack.c.l.b16 %v493
    %v1342 = vunpack.c.l.b16 %v494
    %v1343 = vunpack.c.l.b16 %v495
    %v1344 = vunpack.c.l.b16 %v496
    %v1345 = vunpack.c.l.b16 %v497
    %v1346 = vunpack.c.l.b16 %v498
    %v1347 = vunpack.c.l.b16 %v499
    %v1348 = vunpack.c.l.b16 %v500
    %v1349 = vunpack.c.l.b16 %v501
    %v1350 = vunpack.c.l.b16 %v502
    %v1351 = vunpack.c.l.b16 %v503
    %v1352 = vunpack.c.l.b16 %v504
    %v1353 = vunpack.c.l.b16 %v505
    %v1354 = vunpack.c.l.b16 %v506
    %v1355 = vunpack.c.l.b16 %v507
    %v1356 = vunpack.c.l.b16 %v508
    %v1357 = vunpack.c.l.b16 %v509
    %v1358 = vunpack.c.l.b16 %v510
    %v1359 = vunpack.c.l.b16 %v511
    %v1360 = vunpack.c.l.b16 %v512
    %v1361 = vpack.c.b16 %v1298, %v1297
    %v1362 = vpack.c.b16 %v1300, %v1299
    %v1363 = vpack.c.b16 %v1302, %v1301
    %v1364 = vpack.c.b16 %v1304, %v1303
    %v1365 = vpack.c.b16 %v1306, %v1305
    %v1366 = vpack.c.b16 %v1308, %v1307
    %v1367 = vpack.c.b16 %v1310, %v1309
    %v1368 = vpack.c.b16 %v1312, %v1311
    %v1369 = vpack.c.b16 %v1314, %v1313
    %v1370 = vpack.c.b16 %v1316, %v1315
    %v1371 = vpack.c.b16 %v1318, %v1317
    %v1372 = vpack.c.b16 %v1320, %v1319
    %v1373 = vpack.c.b16 %v1322, %v1321
    %v1374 = vpack.c.b16 %v1324, %v1323
    %v1375 = vpack.c.b16 %v1326, %v1325
    %v1376 = vpack.c.b16 %v1328, %v1327
    %v1377 = vpack.c.b16 %v1330, %v1329
    %v1378 = vpack.c.b16 %v1332, %v1331
    %v1379 = vpack.c.b16 %v1334, %v1333
    %v1380 = vpack.c.b16 %v1336, %v1335
    %v1381 = vpack.c.b16 %v1338, %v1337
    %v1382 = vpack.c.b16 %v1340, %v1339
    %v1383 = vpack.c.b16 %v1342, %v1341
    %v1384 = vpack.c.b16 %v1344, %v1343
    %v1385 = vpack.c.b16 %v1346, %v1345
    %v1386 = vpack.c.b16 %v1348, %v1347
    %v1387 = vpack.c.b16 %v1350, %v1349
    %v1388 = vpack.c.b16 %v1352, %v1351
    %v1389 = vpack.c.b16 %v1354, %v1353
    %v1390 = vpack.c.b16 %v1356, %v1355
    %v1391 = vpack.c.b16 %v1358, %v1357
    %v1392 = vpack.c.b16 %v1360, %v1359
    %1425 = vmatpush.bf16.msra.mxu0 %v1368
    %1426 = vmatpush.bf16.msra.mxu0 %v1367
    %1427 = vmatpush.bf16.msra.mxu0 %v1366
    %1428 = vmatpush.bf16.msra.mxu0 %v1365
    %1429 = vmatpush.bf16.msra.mxu0 %v1364
    %1430 = vmatpush.bf16.msra.mxu0 %v1363
    %1431 = vmatpush.bf16.msra.mxu0 %v1362
    %1432 = vmatpush.bf16.msra.mxu0 %v1361
    %1433 = vmatmul.bf16.gmra.mxu0 %v1225
    %v1434 = vpop.f32.mrf.mxu0
    %v1435 = vadd.f32 0.0, %v1434
    %v1436 = vpop.f32.mrf.mxu0
    %1437 = vdwg.mxu0
    %1438 = vmatpush.bf16.msra.mxu0 %v1376
    %1439 = vmatpush.bf16.msra.mxu0 %v1375
    %1440 = vmatpush.bf16.msra.mxu0 %v1374
    %1441 = vmatpush.bf16.msra.mxu0 %v1373
    %1442 = vmatpush.bf16.msra.mxu0 %v1372
    %1443 = vmatpush.bf16.msra.mxu0 %v1371
    %1444 = vmatpush.bf16.msra.mxu0 %v1370
    %1445 = vmatpush.bf16.msra.mxu0 %v1369
    %1446 = vmatmul.bf16.gmra.mxu0 %v1226
    %v1447 = vpop.f32.mrf.mxu0
    %v1448 = vadd.f32 %v1435, %v1447
    %v1449 = vpop.f32.mrf.mxu0
    %1450 = vdwg.mxu0
    %1451 = vmatpush.bf16.msra.mxu0 %v1384
    %1452 = vmatpush.bf16.msra.mxu0 %v1383
    %1453 = vmatpush.bf16.msra.mxu0 %v1382
    %1454 = vmatpush.bf16.msra.mxu0 %v1381
    %1455 = vmatpush.bf16.msra.mxu0 %v1380
    %1456 = vmatpush.bf16.msra.mxu0 %v1379
    %1457 = vmatpush.bf16.msra.mxu0 %v1378
    %1458 = vmatpush.bf16.msra.mxu0 %v1377
    %1459 = vmatmul.bf16.gmra.mxu0 %v1227
    %v1460 = vpop.f32.mrf.mxu0
    %v1461 = vadd.f32 %v1448, %v1460
    %v1462 = vpop.f32.mrf.mxu0
    %1463 = vdwg.mxu0
    %1464 = vmatpush.bf16.msra.mxu0 %v1392
    %1465 = vmatpush.bf16.msra.mxu0 %v1391
    %1466 = vmatpush.bf16.msra.mxu0 %v1390
    %1467 = vmatpush.bf16.msra.mxu0 %v1389
    %1468 = vmatpush.bf16.msra.mxu0 %v1388
    %1469 = vmatpush.bf16.msra.mxu0 %v1387
    %1470 = vmatpush.bf16.msra.mxu0 %v1386
    %1471 = vmatpush.bf16.msra.mxu0 %v1385
    %1472 = vmatmul.bf16.gmra.mxu0 %v1228
    %v1473 = vpop.f32.mrf.mxu0
    %v1474 = vadd.f32 %v1461, %v1473
    %v1475 = vpop.f32.mrf.mxu0
    %1476 = vdwg.mxu0
    %v1479 = vunpack.c.l.b16 %v371
    %v1480 = vunpack.c.h.b16 %v371
    %v1481 = vunpack.c.l.b16 %v372
    %v1482 = vunpack.c.h.b16 %v372
    %v1483 = vpack.c.b16 %v1479, %v1479
    %v1484 = vpack.c.b16 %v1480, %v1480
    %v1485 = vpack.c.b16 %v1481, %v1481
    %v1486 = vpack.c.b16 %v1482, %v1482
    %v1555 = vunpack.c.l.b16 %v513
    %v1556 = vunpack.c.l.b16 %v514
    %v1557 = vunpack.c.l.b16 %v515
    %v1558 = vunpack.c.l.b16 %v516
    %v1559 = vunpack.c.l.b16 %v517
    %v1560 = vunpack.c.l.b16 %v518
    %v1561 = vunpack.c.l.b16 %v519
    %v1562 = vunpack.c.l.b16 %v520
    %v1563 = vunpack.c.l.b16 %v521
    %v1564 = vunpack.c.l.b16 %v522
    %v1565 = vunpack.c.l.b16 %v523
    %v1566 = vunpack.c.l.b16 %v524
    %v1567 = vunpack.c.l.b16 %v525
    %v1568 = vunpack.c.l.b16 %v526
    %v1569 = vunpack.c.l.b16 %v527
    %v1570 = vunpack.c.l.b16 %v528
    %v1571 = vunpack.c.l.b16 %v529
    %v1572 = vunpack.c.l.b16 %v530
    %v1573 = vunpack.c.l.b16 %v531
    %v1574 = vunpack.c.l.b16 %v532
    %v1575 = vunpack.c.l.b16 %v533
    %v1576 = vunpack.c.l.b16 %v534
    %v1577 = vunpack.c.l.b16 %v535
    %v1578 = vunpack.c.l.b16 %v536
    %v1579 = vunpack.c.l.b16 %v537
    %v1580 = vunpack.c.l.b16 %v538
    %v1581 = vunpack.c.l.b16 %v539
    %v1582 = vunpack.c.l.b16 %v540
    %v1583 = vunpack.c.l.b16 %v541
    %v1584 = vunpack.c.l.b16 %v542
    %v1585 = vunpack.c.l.b16 %v543
    %v1586 = vunpack.c.l.b16 %v544
    %v1587 = vunpack.c.l.b16 %v545
    %v1588 = vunpack.c.l.b16 %v546
    %v1589 = vunpack.c.l.b16 %v547
    %v1590 = vunpack.c.l.b16 %v548
    %v1591 = vunpack.c.l.b16 %v549
    %v1592 = vunpack.c.l.b16 %v550
    %v1593 = vunpack.c.l.b16 %v551
    %v1594 = vunpack.c.l.b16 %v552
    %v1595 = vunpack.c.l.b16 %v553
    %v1596 = vunpack.c.l.b16 %v554
    %v1597 = vunpack.c.l.b16 %v555
    %v1598 = vunpack.c.l.b16 %v556
    %v1599 = vunpack.c.l.b16 %v557
    %v1600 = vunpack.c.l.b16 %v558
    %v1601 = vunpack.c.l.b16 %v559
    %v1602 = vunpack.c.l.b16 %v560
    %v1603 = vunpack.c.l.b16 %v561
    %v1604 = vunpack.c.l.b16 %v562
    %v1605 = vunpack.c.l.b16 %v563
    %v1606 = vunpack.c.l.b16 %v564
    %v1607 = vunpack.c.l.b16 %v565
    %v1608 = vunpack.c.l.b16 %v566
    %v1609 = vunpack.c.l.b16 %v567
    %v1610 = vunpack.c.l.b16 %v568
    %v1611 = vunpack.c.l.b16 %v569
    %v1612 = vunpack.c.l.b16 %v570
    %v1613 = vunpack.c.l.b16 %v571
    %v1614 = vunpack.c.l.b16 %v572
    %v1615 = vunpack.c.l.b16 %v573
    %v1616 = vunpack.c.l.b16 %v574
    %v1617 = vunpack.c.l.b16 %v575
    %v1618 = vunpack.c.l.b16 %v576
    %v1619 = vpack.c.b16 %v1556, %v1555
    %v1620 = vpack.c.b16 %v1558, %v1557
    %v1621 = vpack.c.b16 %v1560, %v1559
    %v1622 = vpack.c.b16 %v1562, %v1561
    %v1623 = vpack.c.b16 %v1564, %v1563
    %v1624 = vpack.c.b16 %v1566, %v1565
    %v1625 = vpack.c.b16 %v1568, %v1567
    %v1626 = vpack.c.b16 %v1570, %v1569
    %v1627 = vpack.c.b16 %v1572, %v1571
    %v1628 = vpack.c.b16 %v1574, %v1573
    %v1629 = vpack.c.b16 %v1576, %v1575
    %v1630 = vpack.c.b16 %v1578, %v1577
    %v1631 = vpack.c.b16 %v1580, %v1579
    %v1632 = vpack.c.b16 %v1582, %v1581
    %v1633 = vpack.c.b16 %v1584, %v1583
    %v1634 = vpack.c.b16 %v1586, %v1585
    %v1635 = vpack.c.b16 %v1588, %v1587
    %v1636 = vpack.c.b16 %v1590, %v1589
    %v1637 = vpack.c.b16 %v1592, %v1591
    %v1638 = vpack.c.b16 %v1594, %v1593
    %v1639 = vpack.c.b16 %v1596, %v1595
    %v1640 = vpack.c.b16 %v1598, %v1597
    %v1641 = vpack.c.b16 %v1600, %v1599
    %v1642 = vpack.c.b16 %v1602, %v1601
    %v1643 = vpack.c.b16 %v1604, %v1603
    %v1644 = vpack.c.b16 %v1606, %v1605
    %v1645 = vpack.c.b16 %v1608, %v1607
    %v1646 = vpack.c.b16 %v1610, %v1609
    %v1647 = vpack.c.b16 %v1612, %v1611
    %v1648 = vpack.c.b16 %v1614, %v1613
    %v1649 = vpack.c.b16 %v1616, %v1615
    %v1650 = vpack.c.b16 %v1618, %v1617
    %1683 = vmatpush.bf16.msra.mxu0 %v1626
    %1684 = vmatpush.bf16.msra.mxu0 %v1625
    %1685 = vmatpush.bf16.msra.mxu0 %v1624
    %1686 = vmatpush.bf16.msra.mxu0 %v1623
    %1687 = vmatpush.bf16.msra.mxu0 %v1622
    %1688 = vmatpush.bf16.msra.mxu0 %v1621
    %1689 = vmatpush.bf16.msra.mxu0 %v1620
    %1690 = vmatpush.bf16.msra.mxu0 %v1619
    %1691 = vmatmul.bf16.gmra.mxu0 %v1483
    %v1692 = vpop.f32.mrf.mxu0
    %v1693 = vadd.f32 0.0, %v1692
    %v1694 = vpop.f32.mrf.mxu0
    %1695 = vdwg.mxu0
    %1696 = vmatpush.bf16.msra.mxu0 %v1634
    %1697 = vmatpush.bf16.msra.mxu0 %v1633
    %1698 = vmatpush.bf16.msra.mxu0 %v1632
    %1699 = vmatpush.bf16.msra.mxu0 %v1631
    %1700 = vmatpush.bf16.msra.mxu0 %v1630
    %1701 = vmatpush.bf16.msra.mxu0 %v1629
    %1702 = vmatpush.bf16.msra.mxu0 %v1628
    %1703 = vmatpush.bf16.msra.mxu0 %v1627
    %1704 = vmatmul.bf16.gmra.mxu0 %v1484
    %v1705 = vpop.f32.mrf.mxu0
    %v1706 = vadd.f32 %v1693, %v1705
    %v1707 = vpop.f32.mrf.mxu0
    %1708 = vdwg.mxu0
    %1709 = vmatpush.bf16.msra.mxu0 %v1642
    %1710 = vmatpush.bf16.msra.mxu0 %v1641
    %1711 = vmatpush.bf16.msra.mxu0 %v1640
    %1712 = vmatpush.bf16.msra.mxu0 %v1639
    %1713 = vmatpush.bf16.msra.mxu0 %v1638
    %1714 = vmatpush.bf16.msra.mxu0 %v1637
    %1715 = vmatpush.bf16.msra.mxu0 %v1636
    %1716 = vmatpush.bf16.msra.mxu0 %v1635
    %1717 = vmatmul.bf16.gmra.mxu0 %v1485
    %v1718 = vpop.f32.mrf.mxu0
    %v1719 = vadd.f32 %v1706, %v1718
    %v1720 = vpop.f32.mrf.mxu0
    %1721 = vdwg.mxu0
    %1722 = vmatpush.bf16.msra.mxu0 %v1650
    %1723 = vmatpush.bf16.msra.mxu0 %v1649
    %1724 = vmatpush.bf16.msra.mxu0 %v1648
    %1725 = vmatpush.bf16.msra.mxu0 %v1647
    %1726 = vmatpush.bf16.msra.mxu0 %v1646
    %1727 = vmatpush.bf16.msra.mxu0 %v1645
    %1728 = vmatpush.bf16.msra.mxu0 %v1644
    %1729 = vmatpush.bf16.msra.mxu0 %v1643
    %1730 = vmatmul.bf16.gmra.mxu0 %v1486
    %v1731 = vpop.f32.mrf.mxu0
    %v1732 = vadd.f32 %v1719, %v1731
    %v1733 = vpop.f32.mrf.mxu0
    %1734 = vdwg.mxu0
    %v1737 = vunpack.c.l.b16 %v373
    %v1738 = vunpack.c.h.b16 %v373
    %v1739 = vunpack.c.l.b16 %v374
    %v1740 = vunpack.c.h.b16 %v374
    %v1741 = vpack.c.b16 %v1737, %v1737
    %v1742 = vpack.c.b16 %v1738, %v1738
    %v1743 = vpack.c.b16 %v1739, %v1739
    %v1744 = vpack.c.b16 %v1740, %v1740
    %v1813 = vunpack.c.l.b16 %v577
    %v1814 = vunpack.c.l.b16 %v578
    %v1815 = vunpack.c.l.b16 %v579
    %v1816 = vunpack.c.l.b16 %v580
    %v1817 = vunpack.c.l.b16 %v581
    %v1818 = vunpack.c.l.b16 %v582
    %v1819 = vunpack.c.l.b16 %v583
    %v1820 = vunpack.c.l.b16 %v584
    %v1821 = vunpack.c.l.b16 %v585
    %v1822 = vunpack.c.l.b16 %v586
    %v1823 = vunpack.c.l.b16 %v587
    %v1824 = vunpack.c.l.b16 %v588
    %v1825 = vunpack.c.l.b16 %v589
    %v1826 = vunpack.c.l.b16 %v590
    %v1827 = vunpack.c.l.b16 %v591
    %v1828 = vunpack.c.l.b16 %v592
    %v1829 = vunpack.c.l.b16 %v593
    %v1830 = vunpack.c.l.b16 %v594
    %v1831 = vunpack.c.l.b16 %v595
    %v1832 = vunpack.c.l.b16 %v596
    %v1833 = vunpack.c.l.b16 %v597
    %v1834 = vunpack.c.l.b16 %v598
    %v1835 = vunpack.c.l.b16 %v599
    %v1836 = vunpack.c.l.b16 %v600
    %v1837 = vunpack.c.l.b16 %v601
    %v1838 = vunpack.c.l.b16 %v602
    %v1839 = vunpack.c.l.b16 %v603
    %v1840 = vunpack.c.l.b16 %v604
    %v1841 = vunpack.c.l.b16 %v605
    %v1842 = vunpack.c.l.b16 %v606
    %v1843 = vunpack.c.l.b16 %v607
    %v1844 = vunpack.c.l.b16 %v608
    %v1845 = vunpack.c.l.b16 %v609
    %v1846 = vunpack.c.l.b16 %v610
    %v1847 = vunpack.c.l.b16 %v611
    %v1848 = vunpack.c.l.b16 %v612
    %v1849 = vunpack.c.l.b16 %v613
    %v1850 = vunpack.c.l.b16 %v614
    %v1851 = vunpack.c.l.b16 %v615
    %v1852 = vunpack.c.l.b16 %v616
    %v1853 = vunpack.c.l.b16 %v617
    %v1854 = vunpack.c.l.b16 %v618
    %v1855 = vunpack.c.l.b16 %v619
    %v1856 = vunpack.c.l.b16 %v620
    %v1857 = vunpack.c.l.b16 %v621
    %v1858 = vunpack.c.l.b16 %v622
    %v1859 = vunpack.c.l.b16 %v623
    %v1860 = vunpack.c.l.b16 %v624
    %v1861 = vunpack.c.l.b16 %v625
    %v1862 = vunpack.c.l.b16 %v626
    %v1863 = vunpack.c.l.b16 %v627
    %v1864 = vunpack.c.l.b16 %v628
    %v1865 = vunpack.c.l.b16 %v629
    %v1866 = vunpack.c.l.b16 %v630
    %v1867 = vunpack.c.l.b16 %v631
    %v1868 = vunpack.c.l.b16 %v632
    %v1869 = vunpack.c.l.b16 %v633
    %v1870 = vunpack.c.l.b16 %v634
    %v1871 = vunpack.c.l.b16 %v635
    %v1872 = vunpack.c.l.b16 %v636
    %v1873 = vunpack.c.l.b16 %v637
    %v1874 = vunpack.c.l.b16 %v638
    %v1875 = vunpack.c.l.b16 %v639
    %v1876 = vunpack.c.l.b16 %v640
    %v1877 = vpack.c.b16 %v1814, %v1813
    %v1878 = vpack.c.b16 %v1816, %v1815
    %v1879 = vpack.c.b16 %v1818, %v1817
    %v1880 = vpack.c.b16 %v1820, %v1819
    %v1881 = vpack.c.b16 %v1822, %v1821
    %v1882 = vpack.c.b16 %v1824, %v1823
    %v1883 = vpack.c.b16 %v1826, %v1825
    %v1884 = vpack.c.b16 %v1828, %v1827
    %v1885 = vpack.c.b16 %v1830, %v1829
    %v1886 = vpack.c.b16 %v1832, %v1831
    %v1887 = vpack.c.b16 %v1834, %v1833
    %v1888 = vpack.c.b16 %v1836, %v1835
    %v1889 = vpack.c.b16 %v1838, %v1837
    %v1890 = vpack.c.b16 %v1840, %v1839
    %v1891 = vpack.c.b16 %v1842, %v1841
    %v1892 = vpack.c.b16 %v1844, %v1843
    %v1893 = vpack.c.b16 %v1846, %v1845
    %v1894 = vpack.c.b16 %v1848, %v1847
    %v1895 = vpack.c.b16 %v1850, %v1849
    %v1896 = vpack.c.b16 %v1852, %v1851
    %v1897 = vpack.c.b16 %v1854, %v1853
    %v1898 = vpack.c.b16 %v1856, %v1855
    %v1899 = vpack.c.b16 %v1858, %v1857
    %v1900 = vpack.c.b16 %v1860, %v1859
    %v1901 = vpack.c.b16 %v1862, %v1861
    %v1902 = vpack.c.b16 %v1864, %v1863
    %v1903 = vpack.c.b16 %v1866, %v1865
    %v1904 = vpack.c.b16 %v1868, %v1867
    %v1905 = vpack.c.b16 %v1870, %v1869
    %v1906 = vpack.c.b16 %v1872, %v1871
    %v1907 = vpack.c.b16 %v1874, %v1873
    %v1908 = vpack.c.b16 %v1876, %v1875
    %1941 = vmatpush.bf16.msra.mxu0 %v1884
    %1942 = vmatpush.bf16.msra.mxu0 %v1883
    %1943 = vmatpush.bf16.msra.mxu0 %v1882
    %1944 = vmatpush.bf16.msra.mxu0 %v1881
    %1945 = vmatpush.bf16.msra.mxu0 %v1880
    %1946 = vmatpush.bf16.msra.mxu0 %v1879
    %1947 = vmatpush.bf16.msra.mxu0 %v1878
    %1948 = vmatpush.bf16.msra.mxu0 %v1877
    %1949 = vmatmul.bf16.gmra.mxu0 %v1741
    %v1950 = vpop.f32.mrf.mxu0
    %v1951 = vadd.f32 0.0, %v1950
    %v1952 = vpop.f32.mrf.mxu0
    %1953 = vdwg.mxu0
    %1954 = vmatpush.bf16.msra.mxu0 %v1892
    %1955 = vmatpush.bf16.msra.mxu0 %v1891
    %1956 = vmatpush.bf16.msra.mxu0 %v1890
    %1957 = vmatpush.bf16.msra.mxu0 %v1889
    %1958 = vmatpush.bf16.msra.mxu0 %v1888
    %1959 = vmatpush.bf16.msra.mxu0 %v1887
    %1960 = vmatpush.bf16.msra.mxu0 %v1886
    %1961 = vmatpush.bf16.msra.mxu0 %v1885
    %1962 = vmatmul.bf16.gmra.mxu0 %v1742
    %v1963 = vpop.f32.mrf.mxu0
    %v1964 = vadd.f32 %v1951, %v1963
    %v1965 = vpop.f32.mrf.mxu0
    %1966 = vdwg.mxu0
    %1967 = vmatpush.bf16.msra.mxu0 %v1900
    %1968 = vmatpush.bf16.msra.mxu0 %v1899
    %1969 = vmatpush.bf16.msra.mxu0 %v1898
    %1970 = vmatpush.bf16.msra.mxu0 %v1897
    %1971 = vmatpush.bf16.msra.mxu0 %v1896
    %1972 = vmatpush.bf16.msra.mxu0 %v1895
    %1973 = vmatpush.bf16.msra.mxu0 %v1894
    %1974 = vmatpush.bf16.msra.mxu0 %v1893
    %1975 = vmatmul.bf16.gmra.mxu0 %v1743
    %v1976 = vpop.f32.mrf.mxu0
    %v1977 = vadd.f32 %v1964, %v1976
    %v1978 = vpop.f32.mrf.mxu0
    %1979 = vdwg.mxu0
    %1980 = vmatpush.bf16.msra.mxu0 %v1908
    %1981 = vmatpush.bf16.msra.mxu0 %v1907
    %1982 = vmatpush.bf16.msra.mxu0 %v1906
    %1983 = vmatpush.bf16.msra.mxu0 %v1905
    %1984 = vmatpush.bf16.msra.mxu0 %v1904
    %1985 = vmatpush.bf16.msra.mxu0 %v1903
    %1986 = vmatpush.bf16.msra.mxu0 %v1902
    %1987 = vmatpush.bf16.msra.mxu0 %v1901
    %1988 = vmatmul.bf16.gmra.mxu0 %v1744
    %v1989 = vpop.f32.mrf.mxu0
    %v1990 = vadd.f32 %v1977, %v1989
    %v1991 = vpop.f32.mrf.mxu0
    %1992 = vdwg.mxu0
    %v1995 = vunpack.c.l.b16 %v375
    %v1996 = vunpack.c.h.b16 %v375
    %v1997 = vunpack.c.l.b16 %v376
    %v1998 = vunpack.c.h.b16 %v376
    %v1999 = vpack.c.b16 %v1995, %v1995
    %v2000 = vpack.c.b16 %v1996, %v1996
    %v2001 = vpack.c.b16 %v1997, %v1997
    %v2002 = vpack.c.b16 %v1998, %v1998
    %v2071 = vunpack.c.l.b16 %v641
    %v2072 = vunpack.c.l.b16 %v642
    %v2073 = vunpack.c.l.b16 %v643
    %v2074 = vunpack.c.l.b16 %v644
    %v2075 = vunpack.c.l.b16 %v645
    %v2076 = vunpack.c.l.b16 %v646
    %v2077 = vunpack.c.l.b16 %v647
    %v2078 = vunpack.c.l.b16 %v648
    %v2079 = vunpack.c.l.b16 %v649
    %v2080 = vunpack.c.l.b16 %v650
    %v2081 = vunpack.c.l.b16 %v651
    %v2082 = vunpack.c.l.b16 %v652
    %v2083 = vunpack.c.l.b16 %v653
    %v2084 = vunpack.c.l.b16 %v654
    %v2085 = vunpack.c.l.b16 %v655
    %v2086 = vunpack.c.l.b16 %v656
    %v2087 = vunpack.c.l.b16 %v657
    %v2088 = vunpack.c.l.b16 %v658
    %v2089 = vunpack.c.l.b16 %v659
    %v2090 = vunpack.c.l.b16 %v660
    %v2091 = vunpack.c.l.b16 %v661
    %v2092 = vunpack.c.l.b16 %v662
    %v2093 = vunpack.c.l.b16 %v663
    %v2094 = vunpack.c.l.b16 %v664
    %v2095 = vunpack.c.l.b16 %v665
    %v2096 = vunpack.c.l.b16 %v666
    %v2097 = vunpack.c.l.b16 %v667
    %v2098 = vunpack.c.l.b16 %v668
    %v2099 = vunpack.c.l.b16 %v669
    %v2100 = vunpack.c.l.b16 %v670
    %v2101 = vunpack.c.l.b16 %v671
    %v2102 = vunpack.c.l.b16 %v672
    %v2103 = vunpack.c.l.b16 %v673
    %v2104 = vunpack.c.l.b16 %v674
    %v2105 = vunpack.c.l.b16 %v675
    %v2106 = vunpack.c.l.b16 %v676
    %v2107 = vunpack.c.l.b16 %v677
    %v2108 = vunpack.c.l.b16 %v678
    %v2109 = vunpack.c.l.b16 %v679
    %v2110 = vunpack.c.l.b16 %v680
    %v2111 = vunpack.c.l.b16 %v681
    %v2112 = vunpack.c.l.b16 %v682
    %v2113 = vunpack.c.l.b16 %v683
    %v2114 = vunpack.c.l.b16 %v684
    %v2115 = vunpack.c.l.b16 %v685
    %v2116 = vunpack.c.l.b16 %v686
    %v2117 = vunpack.c.l.b16 %v687
    %v2118 = vunpack.c.l.b16 %v688
    %v2119 = vunpack.c.l.b16 %v689
    %v2120 = vunpack.c.l.b16 %v690
    %v2121 = vunpack.c.l.b16 %v691
    %v2122 = vunpack.c.l.b16 %v692
    %v2123 = vunpack.c.l.b16 %v693
    %v2124 = vunpack.c.l.b16 %v694
    %v2125 = vunpack.c.l.b16 %v695
    %v2126 = vunpack.c.l.b16 %v696
    %v2127 = vunpack.c.l.b16 %v697
    %v2128 = vunpack.c.l.b16 %v698
    %v2129 = vunpack.c.l.b16 %v699
    %v2130 = vunpack.c.l.b16 %v700
    %v2131 = vunpack.c.l.b16 %v701
    %v2132 = vunpack.c.l.b16 %v702
    %v2133 = vunpack.c.l.b16 %v703
    %v2134 = vunpack.c.l.b16 %v704
    %v2135 = vpack.c.b16 %v2072, %v2071
    %v2136 = vpack.c.b16 %v2074, %v2073
    %v2137 = vpack.c.b16 %v2076, %v2075
    %v2138 = vpack.c.b16 %v2078, %v2077
    %v2139 = vpack.c.b16 %v2080, %v2079
    %v2140 = vpack.c.b16 %v2082, %v2081
    %v2141 = vpack.c.b16 %v2084, %v2083
    %v2142 = vpack.c.b16 %v2086, %v2085
    %v2143 = vpack.c.b16 %v2088, %v2087
    %v2144 = vpack.c.b16 %v2090, %v2089
    %v2145 = vpack.c.b16 %v2092, %v2091
    %v2146 = vpack.c.b16 %v2094, %v2093
    %v2147 = vpack.c.b16 %v2096, %v2095
    %v2148 = vpack.c.b16 %v2098, %v2097
    %v2149 = vpack.c.b16 %v2100, %v2099
    %v2150 = vpack.c.b16 %v2102, %v2101
    %v2151 = vpack.c.b16 %v2104, %v2103
    %v2152 = vpack.c.b16 %v2106, %v2105
    %v2153 = vpack.c.b16 %v2108, %v2107
    %v2154 = vpack.c.b16 %v2110, %v2109
    %v2155 = vpack.c.b16 %v2112, %v2111
    %v2156 = vpack.c.b16 %v2114, %v2113
    %v2157 = vpack.c.b16 %v2116, %v2115
    %v2158 = vpack.c.b16 %v2118, %v2117
    %v2159 = vpack.c.b16 %v2120, %v2119
    %v2160 = vpack.c.b16 %v2122, %v2121
    %v2161 = vpack.c.b16 %v2124, %v2123
    %v2162 = vpack.c.b16 %v2126, %v2125
    %v2163 = vpack.c.b16 %v2128, %v2127
    %v2164 = vpack.c.b16 %v2130, %v2129
    %v2165 = vpack.c.b16 %v2132, %v2131
    %v2166 = vpack.c.b16 %v2134, %v2133
    %2199 = vmatpush.bf16.msra.mxu0 %v2142
    %2200 = vmatpush.bf16.msra.mxu0 %v2141
    %2201 = vmatpush.bf16.msra.mxu0 %v2140
    %2202 = vmatpush.bf16.msra.mxu0 %v2139
    %2203 = vmatpush.bf16.msra.mxu0 %v2138
    %2204 = vmatpush.bf16.msra.mxu0 %v2137
    %2205 = vmatpush.bf16.msra.mxu0 %v2136
    %2206 = vmatpush.bf16.msra.mxu0 %v2135
    %2207 = vmatmul.bf16.gmra.mxu0 %v1999
    %v2208 = vpop.f32.mrf.mxu0
    %v2209 = vadd.f32 0.0, %v2208
    %v2210 = vpop.f32.mrf.mxu0
    %2211 = vdwg.mxu0
    %2212 = vmatpush.bf16.msra.mxu0 %v2150
    %2213 = vmatpush.bf16.msra.mxu0 %v2149
    %2214 = vmatpush.bf16.msra.mxu0 %v2148
    %2215 = vmatpush.bf16.msra.mxu0 %v2147
    %2216 = vmatpush.bf16.msra.mxu0 %v2146
    %2217 = vmatpush.bf16.msra.mxu0 %v2145
    %2218 = vmatpush.bf16.msra.mxu0 %v2144
    %2219 = vmatpush.bf16.msra.mxu0 %v2143
    %2220 = vmatmul.bf16.gmra.mxu0 %v2000
    %v2221 = vpop.f32.mrf.mxu0
    %v2222 = vadd.f32 %v2209, %v2221
    %v2223 = vpop.f32.mrf.mxu0
    %2224 = vdwg.mxu0
    %2225 = vmatpush.bf16.msra.mxu0 %v2158
    %2226 = vmatpush.bf16.msra.mxu0 %v2157
    %2227 = vmatpush.bf16.msra.mxu0 %v2156
    %2228 = vmatpush.bf16.msra.mxu0 %v2155
    %2229 = vmatpush.bf16.msra.mxu0 %v2154
    %2230 = vmatpush.bf16.msra.mxu0 %v2153
    %2231 = vmatpush.bf16.msra.mxu0 %v2152
    %2232 = vmatpush.bf16.msra.mxu0 %v2151
    %2233 = vmatmul.bf16.gmra.mxu0 %v2001
    %v2234 = vpop.f32.mrf.mxu0
    %v2235 = vadd.f32 %v2222, %v2234
    %v2236 = vpop.f32.mrf.mxu0
    %2237 = vdwg.mxu0
    %2238 = vmatpush.bf16.msra.mxu0 %v2166
    %2239 = vmatpush.bf16.msra.mxu0 %v2165
    %2240 = vmatpush.bf16.msra.mxu0 %v2164
    %2241 = vmatpush.bf16.msra.mxu0 %v2163
    %2242 = vmatpush.bf16.msra.mxu0 %v2162
    %2243 = vmatpush.bf16.msra.mxu0 %v2161
    %2244 = vmatpush.bf16.msra.mxu0 %v2160
    %2245 = vmatpush.bf16.msra.mxu0 %v2159
    %2246 = vmatmul.bf16.gmra.mxu0 %v2002
    %v2247 = vpop.f32.mrf.mxu0
    %v2248 = vadd.f32 %v2235, %v2247
    %v2249 = vpop.f32.mrf.mxu0
    %2250 = vdwg.mxu0
    %v2253 = vunpack.c.l.b16 %v377
    %v2254 = vunpack.c.h.b16 %v377
    %v2255 = vunpack.c.l.b16 %v378
    %v2256 = vunpack.c.h.b16 %v378
    %v2257 = vpack.c.b16 %v2253, %v2253
    %v2258 = vpack.c.b16 %v2254, %v2254
    %v2259 = vpack.c.b16 %v2255, %v2255
    %v2260 = vpack.c.b16 %v2256, %v2256
    %v2329 = vunpack.c.l.b16 %v705
    %v2330 = vunpack.c.l.b16 %v706
    %v2331 = vunpack.c.l.b16 %v707
    %v2332 = vunpack.c.l.b16 %v708
    %v2333 = vunpack.c.l.b16 %v709
    %v2334 = vunpack.c.l.b16 %v710
    %v2335 = vunpack.c.l.b16 %v711
    %v2336 = vunpack.c.l.b16 %v712
    %v2337 = vunpack.c.l.b16 %v713
    %v2338 = vunpack.c.l.b16 %v714
    %v2339 = vunpack.c.l.b16 %v715
    %v2340 = vunpack.c.l.b16 %v716
    %v2341 = vunpack.c.l.b16 %v717
    %v2342 = vunpack.c.l.b16 %v718
    %v2343 = vunpack.c.l.b16 %v719
    %v2344 = vunpack.c.l.b16 %v720
    %v2345 = vunpack.c.l.b16 %v721
    %v2346 = vunpack.c.l.b16 %v722
    %v2347 = vunpack.c.l.b16 %v723
    %v2348 = vunpack.c.l.b16 %v724
    %v2349 = vunpack.c.l.b16 %v725
    %v2350 = vunpack.c.l.b16 %v726
    %v2351 = vunpack.c.l.b16 %v727
    %v2352 = vunpack.c.l.b16 %v728
    %v2353 = vunpack.c.l.b16 %v729
    %v2354 = vunpack.c.l.b16 %v730
    %v2355 = vunpack.c.l.b16 %v731
    %v2356 = vunpack.c.l.b16 %v732
    %v2357 = vunpack.c.l.b16 %v733
    %v2358 = vunpack.c.l.b16 %v734
    %v2359 = vunpack.c.l.b16 %v735
    %v2360 = vunpack.c.l.b16 %v736
    %v2361 = vunpack.c.l.b16 %v737
    %v2362 = vunpack.c.l.b16 %v738
    %v2363 = vunpack.c.l.b16 %v739
    %v2364 = vunpack.c.l.b16 %v740
    %v2365 = vunpack.c.l.b16 %v741
    %v2366 = vunpack.c.l.b16 %v742
    %v2367 = vunpack.c.l.b16 %v743
    %v2368 = vunpack.c.l.b16 %v744
    %v2369 = vunpack.c.l.b16 %v745
    %v2370 = vunpack.c.l.b16 %v746
    %v2371 = vunpack.c.l.b16 %v747
    %v2372 = vunpack.c.l.b16 %v748
    %v2373 = vunpack.c.l.b16 %v749
    %v2374 = vunpack.c.l.b16 %v750
    %v2375 = vunpack.c.l.b16 %v751
    %v2376 = vunpack.c.l.b16 %v752
    %v2377 = vunpack.c.l.b16 %v753
    %v2378 = vunpack.c.l.b16 %v754
    %v2379 = vunpack.c.l.b16 %v755
    %v2380 = vunpack.c.l.b16 %v756
    %v2381 = vunpack.c.l.b16 %v757
    %v2382 = vunpack.c.l.b16 %v758
    %v2383 = vunpack.c.l.b16 %v759
    %v2384 = vunpack.c.l.b16 %v760
    %v2385 = vunpack.c.l.b16 %v761
    %v2386 = vunpack.c.l.b16 %v762
    %v2387 = vunpack.c.l.b16 %v763
    %v2388 = vunpack.c.l.b16 %v764
    %v2389 = vunpack.c.l.b16 %v765
    %v2390 = vunpack.c.l.b16 %v766
    %v2391 = vunpack.c.l.b16 %v767
    %v2392 = vunpack.c.l.b16 %v768
    %v2393 = vpack.c.b16 %v2330, %v2329
    %v2394 = vpack.c.b16 %v2332, %v2331
    %v2395 = vpack.c.b16 %v2334, %v2333
    %v2396 = vpack.c.b16 %v2336, %v2335
    %v2397 = vpack.c.b16 %v2338, %v2337
    %v2398 = vpack.c.b16 %v2340, %v2339
    %v2399 = vpack.c.b16 %v2342, %v2341
    %v2400 = vpack.c.b16 %v2344, %v2343
    %v2401 = vpack.c.b16 %v2346, %v2345
    %v2402 = vpack.c.b16 %v2348, %v2347
    %v2403 = vpack.c.b16 %v2350, %v2349
    %v2404 = vpack.c.b16 %v2352, %v2351
    %v2405 = vpack.c.b16 %v2354, %v2353
    %v2406 = vpack.c.b16 %v2356, %v2355
    %v2407 = vpack.c.b16 %v2358, %v2357
    %v2408 = vpack.c.b16 %v2360, %v2359
    %v2409 = vpack.c.b16 %v2362, %v2361
    %v2410 = vpack.c.b16 %v2364, %v2363
    %v2411 = vpack.c.b16 %v2366, %v2365
    %v2412 = vpack.c.b16 %v2368, %v2367
    %v2413 = vpack.c.b16 %v2370, %v2369
    %v2414 = vpack.c.b16 %v2372, %v2371
    %v2415 = vpack.c.b16 %v2374, %v2373
    %v2416 = vpack.c.b16 %v2376, %v2375
    %v2417 = vpack.c.b16 %v2378, %v2377
    %v2418 = vpack.c.b16 %v2380, %v2379
    %v2419 = vpack.c.b16 %v2382, %v2381
    %v2420 = vpack.c.b16 %v2384, %v2383
    %v2421 = vpack.c.b16 %v2386, %v2385
    %v2422 = vpack.c.b16 %v2388, %v2387
    %v2423 = vpack.c.b16 %v2390, %v2389
    %v2424 = vpack.c.b16 %v2392, %v2391
    %2457 = vmatpush.bf16.msra.mxu0 %v2400
    %2458 = vmatpush.bf16.msra.mxu0 %v2399
    %2459 = vmatpush.bf16.msra.mxu0 %v2398
    %2460 = vmatpush.bf16.msra.mxu0 %v2397
    %2461 = vmatpush.bf16.msra.mxu0 %v2396
    %2462 = vmatpush.bf16.msra.mxu0 %v2395
    %2463 = vmatpush.bf16.msra.mxu0 %v2394
    %2464 = vmatpush.bf16.msra.mxu0 %v2393
    %2465 = vmatmul.bf16.gmra.mxu0 %v2257
    %v2466 = vpop.f32.mrf.mxu0
    %v2467 = vadd.f32 0.0, %v2466
    %v2468 = vpop.f32.mrf.mxu0
    %2469 = vdwg.mxu0
    %2470 = vmatpush.bf16.msra.mxu0 %v2408
    %2471 = vmatpush.bf16.msra.mxu0 %v2407
    %2472 = vmatpush.bf16.msra.mxu0 %v2406
    %2473 = vmatpush.bf16.msra.mxu0 %v2405
    %2474 = vmatpush.bf16.msra.mxu0 %v2404
    %2475 = vmatpush.bf16.msra.mxu0 %v2403
    %2476 = vmatpush.bf16.msra.mxu0 %v2402
    %2477 = vmatpush.bf16.msra.mxu0 %v2401
    %2478 = vmatmul.bf16.gmra.mxu0 %v2258
    %v2479 = vpop.f32.mrf.mxu0
    %v2480 = vadd.f32 %v2467, %v2479
    %v2481 = vpop.f32.mrf.mxu0
    %2482 = vdwg.mxu0
    %2483 = vmatpush.bf16.msra.mxu0 %v2416
    %2484 = vmatpush.bf16.msra.mxu0 %v2415
    %2485 = vmatpush.bf16.msra.mxu0 %v2414
    %2486 = vmatpush.bf16.msra.mxu0 %v2413
    %2487 = vmatpush.bf16.msra.mxu0 %v2412
    %2488 = vmatpush.bf16.msra.mxu0 %v2411
    %2489 = vmatpush.bf16.msra.mxu0 %v2410
    %2490 = vmatpush.bf16.msra.mxu0 %v2409
    %2491 = vmatmul.bf16.gmra.mxu0 %v2259
    %v2492 = vpop.f32.mrf.mxu0
    %v2493 = vadd.f32 %v2480, %v2492
    %v2494 = vpop.f32.mrf.mxu0
    %2495 = vdwg.mxu0
    %2496 = vmatpush.bf16.msra.mxu0 %v2424
    %2497 = vmatpush.bf16.msra.mxu0 %v2423
    %2498 = vmatpush.bf16.msra.mxu0 %v2422
    %2499 = vmatpush.bf16.msra.mxu0 %v2421
    %2500 = vmatpush.bf16.msra.mxu0 %v2420
    %2501 = vmatpush.bf16.msra.mxu0 %v2419
    %2502 = vmatpush.bf16.msra.mxu0 %v2418
    %2503 = vmatpush.bf16.msra.mxu0 %v2417
    %2504 = vmatmul.bf16.gmra.mxu0 %v2260
    %v2505 = vpop.f32.mrf.mxu0
    %v2506 = vadd.f32 %v2493, %v2505
    %v2507 = vpop.f32.mrf.mxu0
    %2508 = vdwg.mxu0
    %v2511 = vunpack.c.l.b16 %v379
    %v2512 = vunpack.c.h.b16 %v379
    %v2513 = vunpack.c.l.b16 %v380
    %v2514 = vunpack.c.h.b16 %v380
    %v2515 = vpack.c.b16 %v2511, %v2511
    %v2516 = vpack.c.b16 %v2512, %v2512
    %v2517 = vpack.c.b16 %v2513, %v2513
    %v2518 = vpack.c.b16 %v2514, %v2514
    %v2587 = vunpack.c.l.b16 %v769
    %v2588 = vunpack.c.l.b16 %v770
    %v2589 = vunpack.c.l.b16 %v771
    %v2590 = vunpack.c.l.b16 %v772
    %v2591 = vunpack.c.l.b16 %v773
    %v2592 = vunpack.c.l.b16 %v774
    %v2593 = vunpack.c.l.b16 %v775
    %v2594 = vunpack.c.l.b16 %v776
    %v2595 = vunpack.c.l.b16 %v777
    %v2596 = vunpack.c.l.b16 %v778
    %v2597 = vunpack.c.l.b16 %v779
    %v2598 = vunpack.c.l.b16 %v780
    %v2599 = vunpack.c.l.b16 %v781
    %v2600 = vunpack.c.l.b16 %v782
    %v2601 = vunpack.c.l.b16 %v783
    %v2602 = vunpack.c.l.b16 %v784
    %v2603 = vunpack.c.l.b16 %v785
    %v2604 = vunpack.c.l.b16 %v786
    %v2605 = vunpack.c.l.b16 %v787
    %v2606 = vunpack.c.l.b16 %v788
    %v2607 = vunpack.c.l.b16 %v789
    %v2608 = vunpack.c.l.b16 %v790
    %v2609 = vunpack.c.l.b16 %v791
    %v2610 = vunpack.c.l.b16 %v792
    %v2611 = vunpack.c.l.b16 %v793
    %v2612 = vunpack.c.l.b16 %v794
    %v2613 = vunpack.c.l.b16 %v795
    %v2614 = vunpack.c.l.b16 %v796
    %v2615 = vunpack.c.l.b16 %v797
    %v2616 = vunpack.c.l.b16 %v798
    %v2617 = vunpack.c.l.b16 %v799
    %v2618 = vunpack.c.l.b16 %v800
    %v2619 = vunpack.c.l.b16 %v801
    %v2620 = vunpack.c.l.b16 %v802
    %v2621 = vunpack.c.l.b16 %v803
    %v2622 = vunpack.c.l.b16 %v804
    %v2623 = vunpack.c.l.b16 %v805
    %v2624 = vunpack.c.l.b16 %v806
    %v2625 = vunpack.c.l.b16 %v807
    %v2626 = vunpack.c.l.b16 %v808
    %v2627 = vunpack.c.l.b16 %v809
    %v2628 = vunpack.c.l.b16 %v810
    %v2629 = vunpack.c.l.b16 %v811
    %v2630 = vunpack.c.l.b16 %v812
    %v2631 = vunpack.c.l.b16 %v813
    %v2632 = vunpack.c.l.b16 %v814
    %v2633 = vunpack.c.l.b16 %v815
    %v2634 = vunpack.c.l.b16 %v816
    %v2635 = vunpack.c.l.b16 %v817
    %v2636 = vunpack.c.l.b16 %v818
    %v2637 = vunpack.c.l.b16 %v819
    %v2638 = vunpack.c.l.b16 %v820
    %v2639 = vunpack.c.l.b16 %v821
    %v2640 = vunpack.c.l.b16 %v822
    %v2641 = vunpack.c.l.b16 %v823
    %v2642 = vunpack.c.l.b16 %v824
    %v2643 = vunpack.c.l.b16 %v825
    %v2644 = vunpack.c.l.b16 %v826
    %v2645 = vunpack.c.l.b16 %v827
    %v2646 = vunpack.c.l.b16 %v828
    %v2647 = vunpack.c.l.b16 %v829
    %v2648 = vunpack.c.l.b16 %v830
    %v2649 = vunpack.c.l.b16 %v831
    %v2650 = vunpack.c.l.b16 %v832
    %v2651 = vpack.c.b16 %v2588, %v2587
    %v2652 = vpack.c.b16 %v2590, %v2589
    %v2653 = vpack.c.b16 %v2592, %v2591
    %v2654 = vpack.c.b16 %v2594, %v2593
    %v2655 = vpack.c.b16 %v2596, %v2595
    %v2656 = vpack.c.b16 %v2598, %v2597
    %v2657 = vpack.c.b16 %v2600, %v2599
    %v2658 = vpack.c.b16 %v2602, %v2601
    %v2659 = vpack.c.b16 %v2604, %v2603
    %v2660 = vpack.c.b16 %v2606, %v2605
    %v2661 = vpack.c.b16 %v2608, %v2607
    %v2662 = vpack.c.b16 %v2610, %v2609
    %v2663 = vpack.c.b16 %v2612, %v2611
    %v2664 = vpack.c.b16 %v2614, %v2613
    %v2665 = vpack.c.b16 %v2616, %v2615
    %v2666 = vpack.c.b16 %v2618, %v2617
    %v2667 = vpack.c.b16 %v2620, %v2619
    %v2668 = vpack.c.b16 %v2622, %v2621
    %v2669 = vpack.c.b16 %v2624, %v2623
    %v2670 = vpack.c.b16 %v2626, %v2625
    %v2671 = vpack.c.b16 %v2628, %v2627
    %v2672 = vpack.c.b16 %v2630, %v2629
    %v2673 = vpack.c.b16 %v2632, %v2631
    %v2674 = vpack.c.b16 %v2634, %v2633
    %v2675 = vpack.c.b16 %v2636, %v2635
    %v2676 = vpack.c.b16 %v2638, %v2637
    %v2677 = vpack.c.b16 %v2640, %v2639
    %v2678 = vpack.c.b16 %v2642, %v2641
    %v2679 = vpack.c.b16 %v2644, %v2643
    %v2680 = vpack.c.b16 %v2646, %v2645
    %v2681 = vpack.c.b16 %v2648, %v2647
    %v2682 = vpack.c.b16 %v2650, %v2649
    %2715 = vmatpush.bf16.msra.mxu0 %v2658
    %2716 = vmatpush.bf16.msra.mxu0 %v2657
    %2717 = vmatpush.bf16.msra.mxu0 %v2656
    %2718 = vmatpush.bf16.msra.mxu0 %v2655
    %2719 = vmatpush.bf16.msra.mxu0 %v2654
    %2720 = vmatpush.bf16.msra.mxu0 %v2653
    %2721 = vmatpush.bf16.msra.mxu0 %v2652
    %2722 = vmatpush.bf16.msra.mxu0 %v2651
    %2723 = vmatmul.bf16.gmra.mxu0 %v2515
    %v2724 = vpop.f32.mrf.mxu0
    %v2725 = vadd.f32 0.0, %v2724
    %v2726 = vpop.f32.mrf.mxu0
    %2727 = vdwg.mxu0
    %2728 = vmatpush.bf16.msra.mxu0 %v2666
    %2729 = vmatpush.bf16.msra.mxu0 %v2665
    %2730 = vmatpush.bf16.msra.mxu0 %v2664
    %2731 = vmatpush.bf16.msra.mxu0 %v2663
    %2732 = vmatpush.bf16.msra.mxu0 %v2662
    %2733 = vmatpush.bf16.msra.mxu0 %v2661
    %2734 = vmatpush.bf16.msra.mxu0 %v2660
    %2735 = vmatpush.bf16.msra.mxu0 %v2659
    %2736 = vmatmul.bf16.gmra.mxu0 %v2516
    %v2737 = vpop.f32.mrf.mxu0
    %v2738 = vadd.f32 %v2725, %v2737
    %v2739 = vpop.f32.mrf.mxu0
    %2740 = vdwg.mxu0
    %2741 = vmatpush.bf16.msra.mxu0 %v2674
    %2742 = vmatpush.bf16.msra.mxu0 %v2673
    %2743 = vmatpush.bf16.msra.mxu0 %v2672
    %2744 = vmatpush.bf16.msra.mxu0 %v2671
    %2745 = vmatpush.bf16.msra.mxu0 %v2670
    %2746 = vmatpush.bf16.msra.mxu0 %v2669
    %2747 = vmatpush.bf16.msra.mxu0 %v2668
    %2748 = vmatpush.bf16.msra.mxu0 %v2667
    %2749 = vmatmul.bf16.gmra.mxu0 %v2517
    %v2750 = vpop.f32.mrf.mxu0
    %v2751 = vadd.f32 %v2738, %v2750
    %v2752 = vpop.f32.mrf.mxu0
    %2753 = vdwg.mxu0
    %2754 = vmatpush.bf16.msra.mxu0 %v2682
    %2755 = vmatpush.bf16.msra.mxu0 %v2681
    %2756 = vmatpush.bf16.msra.mxu0 %v2680
    %2757 = vmatpush.bf16.msra.mxu0 %v2679
    %2758 = vmatpush.bf16.msra.mxu0 %v2678
    %2759 = vmatpush.bf16.msra.mxu0 %v2677
    %2760 = vmatpush.bf16.msra.mxu0 %v2676
    %2761 = vmatpush.bf16.msra.mxu0 %v2675
    %2762 = vmatmul.bf16.gmra.mxu0 %v2518
    %v2763 = vpop.f32.mrf.mxu0
    %v2764 = vadd.f32 %v2751, %v2763
    %v2765 = vpop.f32.mrf.mxu0
    %2766 = vdwg.mxu0
    %v2769 = vunpack.c.l.b16 %v381
    %v2770 = vunpack.c.h.b16 %v381
    %v2771 = vunpack.c.l.b16 %v382
    %v2772 = vunpack.c.h.b16 %v382
    %v2773 = vpack.c.b16 %v2769, %v2769
    %v2774 = vpack.c.b16 %v2770, %v2770
    %v2775 = vpack.c.b16 %v2771, %v2771
    %v2776 = vpack.c.b16 %v2772, %v2772
    %v2845 = vunpack.c.l.b16 %v833
    %v2846 = vunpack.c.l.b16 %v834
    %v2847 = vunpack.c.l.b16 %v835
    %v2848 = vunpack.c.l.b16 %v836
    %v2849 = vunpack.c.l.b16 %v837
    %v2850 = vunpack.c.l.b16 %v838
    %v2851 = vunpack.c.l.b16 %v839
    %v2852 = vunpack.c.l.b16 %v840
    %v2853 = vunpack.c.l.b16 %v841
    %v2854 = vunpack.c.l.b16 %v842
    %v2855 = vunpack.c.l.b16 %v843
    %v2856 = vunpack.c.l.b16 %v844
    %v2857 = vunpack.c.l.b16 %v845
    %v2858 = vunpack.c.l.b16 %v846
    %v2859 = vunpack.c.l.b16 %v847
    %v2860 = vunpack.c.l.b16 %v848
    %v2861 = vunpack.c.l.b16 %v849
    %v2862 = vunpack.c.l.b16 %v850
    %v2863 = vunpack.c.l.b16 %v851
    %v2864 = vunpack.c.l.b16 %v852
    %v2865 = vunpack.c.l.b16 %v853
    %v2866 = vunpack.c.l.b16 %v854
    %v2867 = vunpack.c.l.b16 %v855
    %v2868 = vunpack.c.l.b16 %v856
    %v2869 = vunpack.c.l.b16 %v857
    %v2870 = vunpack.c.l.b16 %v858
    %v2871 = vunpack.c.l.b16 %v859
    %v2872 = vunpack.c.l.b16 %v860
    %v2873 = vunpack.c.l.b16 %v861
    %v2874 = vunpack.c.l.b16 %v862
    %v2875 = vunpack.c.l.b16 %v863
    %v2876 = vunpack.c.l.b16 %v864
    %v2877 = vunpack.c.l.b16 %v865
    %v2878 = vunpack.c.l.b16 %v866
    %v2879 = vunpack.c.l.b16 %v867
    %v2880 = vunpack.c.l.b16 %v868
    %v2881 = vunpack.c.l.b16 %v869
    %v2882 = vunpack.c.l.b16 %v870
    %v2883 = vunpack.c.l.b16 %v871
    %v2884 = vunpack.c.l.b16 %v872
    %v2885 = vunpack.c.l.b16 %v873
    %v2886 = vunpack.c.l.b16 %v874
    %v2887 = vunpack.c.l.b16 %v875
    %v2888 = vunpack.c.l.b16 %v876
    %v2889 = vunpack.c.l.b16 %v877
    %v2890 = vunpack.c.l.b16 %v878
    %v2891 = vunpack.c.l.b16 %v879
    %v2892 = vunpack.c.l.b16 %v880
    %v2893 = vunpack.c.l.b16 %v881
    %v2894 = vunpack.c.l.b16 %v882
    %v2895 = vunpack.c.l.b16 %v883
    %v2896 = vunpack.c.l.b16 %v884
    %v2897 = vunpack.c.l.b16 %v885
    %v2898 = vunpack.c.l.b16 %v886
    %v2899 = vunpack.c.l.b16 %v887
    %v2900 = vunpack.c.l.b16 %v888
    %v2901 = vunpack.c.l.b16 %v889
    %v2902 = vunpack.c.l.b16 %v890
    %v2903 = vunpack.c.l.b16 %v891
    %v2904 = vunpack.c.l.b16 %v892
    %v2905 = vunpack.c.l.b16 %v893
    %v2906 = vunpack.c.l.b16 %v894
    %v2907 = vunpack.c.l.b16 %v895
    %v2908 = vunpack.c.l.b16 %v896
    %v2909 = vpack.c.b16 %v2846, %v2845
    %v2910 = vpack.c.b16 %v2848, %v2847
    %v2911 = vpack.c.b16 %v2850, %v2849
    %v2912 = vpack.c.b16 %v2852, %v2851
    %v2913 = vpack.c.b16 %v2854, %v2853
    %v2914 = vpack.c.b16 %v2856, %v2855
    %v2915 = vpack.c.b16 %v2858, %v2857
    %v2916 = vpack.c.b16 %v2860, %v2859
    %v2917 = vpack.c.b16 %v2862, %v2861
    %v2918 = vpack.c.b16 %v2864, %v2863
    %v2919 = vpack.c.b16 %v2866, %v2865
    %v2920 = vpack.c.b16 %v2868, %v2867
    %v2921 = vpack.c.b16 %v2870, %v2869
    %v2922 = vpack.c.b16 %v2872, %v2871
    %v2923 = vpack.c.b16 %v2874, %v2873
    %v2924 = vpack.c.b16 %v2876, %v2875
    %v2925 = vpack.c.b16 %v2878, %v2877
    %v2926 = vpack.c.b16 %v2880, %v2879
    %v2927 = vpack.c.b16 %v2882, %v2881
    %v2928 = vpack.c.b16 %v2884, %v2883
    %v2929 = vpack.c.b16 %v2886, %v2885
    %v2930 = vpack.c.b16 %v2888, %v2887
    %v2931 = vpack.c.b16 %v2890, %v2889
    %v2932 = vpack.c.b16 %v2892, %v2891
    %v2933 = vpack.c.b16 %v2894, %v2893
    %v2934 = vpack.c.b16 %v2896, %v2895
    %v2935 = vpack.c.b16 %v2898, %v2897
    %v2936 = vpack.c.b16 %v2900, %v2899
    %v2937 = vpack.c.b16 %v2902, %v2901
    %v2938 = vpack.c.b16 %v2904, %v2903
    %v2939 = vpack.c.b16 %v2906, %v2905
    %v2940 = vpack.c.b16 %v2908, %v2907
    %2973 = vmatpush.bf16.msra.mxu0 %v2916
    %2974 = vmatpush.bf16.msra.mxu0 %v2915
    %2975 = vmatpush.bf16.msra.mxu0 %v2914
    %2976 = vmatpush.bf16.msra.mxu0 %v2913
    %2977 = vmatpush.bf16.msra.mxu0 %v2912
    %2978 = vmatpush.bf16.msra.mxu0 %v2911
    %2979 = vmatpush.bf16.msra.mxu0 %v2910
    %2980 = vmatpush.bf16.msra.mxu0 %v2909
    %2981 = vmatmul.bf16.gmra.mxu0 %v2773
    %v2982 = vpop.f32.mrf.mxu0
    %v2983 = vadd.f32 0.0, %v2982
    %v2984 = vpop.f32.mrf.mxu0
    %2985 = vdwg.mxu0
    %2986 = vmatpush.bf16.msra.mxu0 %v2924
    %2987 = vmatpush.bf16.msra.mxu0 %v2923
    %2988 = vmatpush.bf16.msra.mxu0 %v2922
    %2989 = vmatpush.bf16.msra.mxu0 %v2921
    %2990 = vmatpush.bf16.msra.mxu0 %v2920
    %2991 = vmatpush.bf16.msra.mxu0 %v2919
    %2992 = vmatpush.bf16.msra.mxu0 %v2918
    %2993 = vmatpush.bf16.msra.mxu0 %v2917
    %2994 = vmatmul.bf16.gmra.mxu0 %v2774
    %v2995 = vpop.f32.mrf.mxu0
    %v2996 = vadd.f32 %v2983, %v2995
    %v2997 = vpop.f32.mrf.mxu0
    %2998 = vdwg.mxu0
    %2999 = vmatpush.bf16.msra.mxu0 %v2932
    %3000 = vmatpush.bf16.msra.mxu0 %v2931
    %3001 = vmatpush.bf16.msra.mxu0 %v2930
    %3002 = vmatpush.bf16.msra.mxu0 %v2929
    %3003 = vmatpush.bf16.msra.mxu0 %v2928
    %3004 = vmatpush.bf16.msra.mxu0 %v2927
    %3005 = vmatpush.bf16.msra.mxu0 %v2926
    %3006 = vmatpush.bf16.msra.mxu0 %v2925
    %3007 = vmatmul.bf16.gmra.mxu0 %v2775
    %v3008 = vpop.f32.mrf.mxu0
    %v3009 = vadd.f32 %v2996, %v3008
    %v3010 = vpop.f32.mrf.mxu0
    %3011 = vdwg.mxu0
    %3012 = vmatpush.bf16.msra.mxu0 %v2940
    %3013 = vmatpush.bf16.msra.mxu0 %v2939
    %3014 = vmatpush.bf16.msra.mxu0 %v2938
    %3015 = vmatpush.bf16.msra.mxu0 %v2937
    %3016 = vmatpush.bf16.msra.mxu0 %v2936
    %3017 = vmatpush.bf16.msra.mxu0 %v2935
    %3018 = vmatpush.bf16.msra.mxu0 %v2934
    %3019 = vmatpush.bf16.msra.mxu0 %v2933
    %3020 = vmatmul.bf16.gmra.mxu0 %v2776
    %v3021 = vpop.f32.mrf.mxu0
    %v3022 = vadd.f32 %v3009, %v3021
    %v3023 = vpop.f32.mrf.mxu0
    %3024 = vdwg.mxu0
    %v3027 = vunpack.c.l.b16 %v383
    %v3028 = vunpack.c.h.b16 %v383
    %v3029 = vunpack.c.l.b16 %v384
    %v3030 = vunpack.c.h.b16 %v384
    %v3031 = vpack.c.b16 %v3027, %v3027
    %v3032 = vpack.c.b16 %v3028, %v3028
    %v3033 = vpack.c.b16 %v3029, %v3029
    %v3034 = vpack.c.b16 %v3030, %v3030
    %v3103 = vunpack.c.l.b16 %v897
    %v3104 = vunpack.c.l.b16 %v898
    %v3105 = vunpack.c.l.b16 %v899
    %v3106 = vunpack.c.l.b16 %v900
    %v3107 = vunpack.c.l.b16 %v901
    %v3108 = vunpack.c.l.b16 %v902
    %v3109 = vunpack.c.l.b16 %v903
    %v3110 = vunpack.c.l.b16 %v904
    %v3111 = vunpack.c.l.b16 %v905
    %v3112 = vunpack.c.l.b16 %v906
    %v3113 = vunpack.c.l.b16 %v907
    %v3114 = vunpack.c.l.b16 %v908
    %v3115 = vunpack.c.l.b16 %v909
    %v3116 = vunpack.c.l.b16 %v910
    %v3117 = vunpack.c.l.b16 %v911
    %v3118 = vunpack.c.l.b16 %v912
    %v3119 = vunpack.c.l.b16 %v913
    %v3120 = vunpack.c.l.b16 %v914
    %v3121 = vunpack.c.l.b16 %v915
    %v3122 = vunpack.c.l.b16 %v916
    %v3123 = vunpack.c.l.b16 %v917
    %v3124 = vunpack.c.l.b16 %v918
    %v3125 = vunpack.c.l.b16 %v919
    %v3126 = vunpack.c.l.b16 %v920
    %v3127 = vunpack.c.l.b16 %v921
    %v3128 = vunpack.c.l.b16 %v922
    %v3129 = vunpack.c.l.b16 %v923
    %v3130 = vunpack.c.l.b16 %v924
    %v3131 = vunpack.c.l.b16 %v925
    %v3132 = vunpack.c.l.b16 %v926
    %v3133 = vunpack.c.l.b16 %v927
    %v3134 = vunpack.c.l.b16 %v928
    %v3135 = vunpack.c.l.b16 %v929
    %v3136 = vunpack.c.l.b16 %v930
    %v3137 = vunpack.c.l.b16 %v931
    %v3138 = vunpack.c.l.b16 %v932
    %v3139 = vunpack.c.l.b16 %v933
    %v3140 = vunpack.c.l.b16 %v934
    %v3141 = vunpack.c.l.b16 %v935
    %v3142 = vunpack.c.l.b16 %v936
    %v3143 = vunpack.c.l.b16 %v937
    %v3144 = vunpack.c.l.b16 %v938
    %v3145 = vunpack.c.l.b16 %v939
    %v3146 = vunpack.c.l.b16 %v940
    %v3147 = vunpack.c.l.b16 %v941
    %v3148 = vunpack.c.l.b16 %v942
    %v3149 = vunpack.c.l.b16 %v943
    %v3150 = vunpack.c.l.b16 %v944
    %v3151 = vunpack.c.l.b16 %v945
    %v3152 = vunpack.c.l.b16 %v946
    %v3153 = vunpack.c.l.b16 %v947
    %v3154 = vunpack.c.l.b16 %v948
    %v3155 = vunpack.c.l.b16 %v949
    %v3156 = vunpack.c.l.b16 %v950
    %v3157 = vunpack.c.l.b16 %v951
    %v3158 = vunpack.c.l.b16 %v952
    %v3159 = vunpack.c.l.b16 %v953
    %v3160 = vunpack.c.l.b16 %v954
    %v3161 = vunpack.c.l.b16 %v955
    %v3162 = vunpack.c.l.b16 %v956
    %v3163 = vunpack.c.l.b16 %v957
    %v3164 = vunpack.c.l.b16 %v958
    %v3165 = vunpack.c.l.b16 %v959
    %v3166 = vunpack.c.l.b16 %v960
    %v3167 = vpack.c.b16 %v3104, %v3103
    %v3168 = vpack.c.b16 %v3106, %v3105
    %v3169 = vpack.c.b16 %v3108, %v3107
    %v3170 = vpack.c.b16 %v3110, %v3109
    %v3171 = vpack.c.b16 %v3112, %v3111
    %v3172 = vpack.c.b16 %v3114, %v3113
    %v3173 = vpack.c.b16 %v3116, %v3115
    %v3174 = vpack.c.b16 %v3118, %v3117
    %v3175 = vpack.c.b16 %v3120, %v3119
    %v3176 = vpack.c.b16 %v3122, %v3121
    %v3177 = vpack.c.b16 %v3124, %v3123
    %v3178 = vpack.c.b16 %v3126, %v3125
    %v3179 = vpack.c.b16 %v3128, %v3127
    %v3180 = vpack.c.b16 %v3130, %v3129
    %v3181 = vpack.c.b16 %v3132, %v3131
    %v3182 = vpack.c.b16 %v3134, %v3133
    %v3183 = vpack.c.b16 %v3136, %v3135
    %v3184 = vpack.c.b16 %v3138, %v3137
    %v3185 = vpack.c.b16 %v3140, %v3139
    %v3186 = vpack.c.b16 %v3142, %v3141
    %v3187 = vpack.c.b16 %v3144, %v3143
    %v3188 = vpack.c.b16 %v3146, %v3145
    %v3189 = vpack.c.b16 %v3148, %v3147
    %v3190 = vpack.c.b16 %v3150, %v3149
    %v3191 = vpack.c.b16 %v3152, %v3151
    %v3192 = vpack.c.b16 %v3154, %v3153
    %v3193 = vpack.c.b16 %v3156, %v3155
    %v3194 = vpack.c.b16 %v3158, %v3157
    %v3195 = vpack.c.b16 %v3160, %v3159
    %v3196 = vpack.c.b16 %v3162, %v3161
    %v3197 = vpack.c.b16 %v3164, %v3163
    %v3198 = vpack.c.b16 %v3166, %v3165
    %3231 = vmatpush.bf16.msra.mxu0 %v3174
    %3232 = vmatpush.bf16.msra.mxu0 %v3173
    %3233 = vmatpush.bf16.msra.mxu0 %v3172
    %3234 = vmatpush.bf16.msra.mxu0 %v3171
    %3235 = vmatpush.bf16.msra.mxu0 %v3170
    %3236 = vmatpush.bf16.msra.mxu0 %v3169
    %3237 = vmatpush.bf16.msra.mxu0 %v3168
    %3238 = vmatpush.bf16.msra.mxu0 %v3167
    %3239 = vmatmul.bf16.gmra.mxu0 %v3031
    %v3240 = vpop.f32.mrf.mxu0
    %v3241 = vadd.f32 0.0, %v3240
    %v3242 = vpop.f32.mrf.mxu0
    %3243 = vdwg.mxu0
    %3244 = vmatpush.bf16.msra.mxu0 %v3182
    %3245 = vmatpush.bf16.msra.mxu0 %v3181
    %3246 = vmatpush.bf16.msra.mxu0 %v3180
    %3247 = vmatpush.bf16.msra.mxu0 %v3179
    %3248 = vmatpush.bf16.msra.mxu0 %v3178
    %3249 = vmatpush.bf16.msra.mxu0 %v3177
    %3250 = vmatpush.bf16.msra.mxu0 %v3176
    %3251 = vmatpush.bf16.msra.mxu0 %v3175
    %3252 = vmatmul.bf16.gmra.mxu0 %v3032
    %v3253 = vpop.f32.mrf.mxu0
    %v3254 = vadd.f32 %v3241, %v3253
    %v3255 = vpop.f32.mrf.mxu0
    %3256 = vdwg.mxu0
    %3257 = vmatpush.bf16.msra.mxu0 %v3190
    %3258 = vmatpush.bf16.msra.mxu0 %v3189
    %3259 = vmatpush.bf16.msra.mxu0 %v3188
    %3260 = vmatpush.bf16.msra.mxu0 %v3187
    %3261 = vmatpush.bf16.msra.mxu0 %v3186
    %3262 = vmatpush.bf16.msra.mxu0 %v3185
    %3263 = vmatpush.bf16.msra.mxu0 %v3184
    %3264 = vmatpush.bf16.msra.mxu0 %v3183
    %3265 = vmatmul.bf16.gmra.mxu0 %v3033
    %v3266 = vpop.f32.mrf.mxu0
    %v3267 = vadd.f32 %v3254, %v3266
    %v3268 = vpop.f32.mrf.mxu0
    %3269 = vdwg.mxu0
    %3270 = vmatpush.bf16.msra.mxu0 %v3198
    %3271 = vmatpush.bf16.msra.mxu0 %v3197
    %3272 = vmatpush.bf16.msra.mxu0 %v3196
    %3273 = vmatpush.bf16.msra.mxu0 %v3195
    %3274 = vmatpush.bf16.msra.mxu0 %v3194
    %3275 = vmatpush.bf16.msra.mxu0 %v3193
    %3276 = vmatpush.bf16.msra.mxu0 %v3192
    %3277 = vmatpush.bf16.msra.mxu0 %v3191
    %3278 = vmatmul.bf16.gmra.mxu0 %v3034
    %v3279 = vpop.f32.mrf.mxu0
    %v3280 = vadd.f32 %v3267, %v3279
    %v3281 = vpop.f32.mrf.mxu0
    %3282 = vdwg.mxu0
    %v3283 = vadd.f32 %v1216, %v1474
    %v3284 = vadd.f32 %v3283, %v1732
    %v3285 = vadd.f32 %v3284, %v1990
    %v3286 = vadd.f32 %v3285, %v2248
    %v3287 = vadd.f32 %v3286, %v2506
    %v3288 = vadd.f32 %v3287, %v2764
    %v3289 = vadd.f32 %v3288, %v3022
    %v3290 = vadd.f32 %v3289, %v3280
    %v3291 = vld [vmem:[%s4] sm:$0xff]
    %3293 = vset.pattern.permute.xlu0 0
    %3294 = vperm.xlu0 %3293, %v3291
    %v3295 = vpop.permute.xlu0 %3294
    %v3297 = vadd.f32 %v3290, %v3295
    %v3298 = vmax.f32 %v3297, 0.0
    %v3299 = vpack.c.bf16 %v3298, %v3298
    %v3300 = vld [vmem:[#allocation6] sm:$0xf]
    %v3301 = vld [vmem:[#allocation6 + $0x4] sm:$0xf]
    %v3302 = vld [vmem:[#allocation6 + $0x8] sm:$0xf]
    %v3303 = vld [vmem:[#allocation6 + $0xc] sm:$0xf]
    %v3304 = vld [vmem:[#allocation6 + $0x10] sm:$0xf]
    %v3305 = vld [vmem:[#allocation6 + $0x14] sm:$0xf]
    %v3306 = vld [vmem:[#allocation6 + $0x18] sm:$0xf]
    %v3307 = vld [vmem:[#allocation6 + $0x1c] sm:$0xf]
    %v3308 = vld [vmem:[#allocation6 + $0x20] sm:$0xf]
    %v3309 = vld [vmem:[#allocation6 + $0x24] sm:$0xf]
    %v3310 = vld [vmem:[#allocation6 + $0x28] sm:$0xf]
    %v3311 = vld [vmem:[#allocation6 + $0x2c] sm:$0xf]
    %v3312 = vld [vmem:[#allocation6 + $0x30] sm:$0xf]
    %v3313 = vld [vmem:[#allocation6 + $0x34] sm:$0xf]
    %v3314 = vld [vmem:[#allocation6 + $0x38] sm:$0xf]
    %v3315 = vld [vmem:[#allocation6 + $0x3c] sm:$0xf]
    %v3316 = vld [vmem:[#allocation6 + $0x40] sm:$0xf]
    %v3317 = vld [vmem:[#allocation6 + $0x44] sm:$0xf]
    %v3318 = vld [vmem:[#allocation6 + $0x48] sm:$0xf]
    %v3319 = vld [vmem:[#allocation6 + $0x4c] sm:$0xf]
    %v3320 = vld [vmem:[#allocation6 + $0x50] sm:$0xf]
    %v3321 = vld [vmem:[#allocation6 + $0x54] sm:$0xf]
    %v3322 = vld [vmem:[#allocation6 + $0x58] sm:$0xf]
    %v3323 = vld [vmem:[#allocation6 + $0x5c] sm:$0xf]
    %v3324 = vld [vmem:[#allocation6 + $0x60] sm:$0xf]
    %v3325 = vld [vmem:[#allocation6 + $0x64] sm:$0xf]
    %v3326 = vld [vmem:[#allocation6 + $0x68] sm:$0xf]
    %v3327 = vld [vmem:[#allocation6 + $0x6c] sm:$0xf]
    %v3328 = vld [vmem:[#allocation6 + $0x70] sm:$0xf]
    %v3329 = vld [vmem:[#allocation6 + $0x74] sm:$0xf]
    %v3330 = vld [vmem:[#allocation6 + $0x78] sm:$0xf]
    %v3331 = vld [vmem:[#allocation6 + $0x7c] sm:$0xf]
    %v3332 = vld [vmem:[#allocation6 + $0x80] sm:$0xf]
    %v3333 = vld [vmem:[#allocation6 + $0x84] sm:$0xf]
    %v3334 = vld [vmem:[#allocation6 + $0x88] sm:$0xf]
    %v3335 = vld [vmem:[#allocation6 + $0x8c] sm:$0xf]
    %v3336 = vld [vmem:[#allocation6 + $0x90] sm:$0xf]
    %v3337 = vld [vmem:[#allocation6 + $0x94] sm:$0xf]
    %v3338 = vld [vmem:[#allocation6 + $0x98] sm:$0xf]
    %v3339 = vld [vmem:[#allocation6 + $0x9c] sm:$0xf]
    %v3340 = vld [vmem:[#allocation6 + $0xa0] sm:$0xf]
    %v3341 = vld [vmem:[#allocation6 + $0xa4] sm:$0xf]
    %v3342 = vld [vmem:[#allocation6 + $0xa8] sm:$0xf]
    %v3343 = vld [vmem:[#allocation6 + $0xac] sm:$0xf]
    %v3344 = vld [vmem:[#allocation6 + $0xb0] sm:$0xf]
    %v3345 = vld [vmem:[#allocation6 + $0xb4] sm:$0xf]
    %v3346 = vld [vmem:[#allocation6 + $0xb8] sm:$0xf]
    %v3347 = vld [vmem:[#allocation6 + $0xbc] sm:$0xf]
    %v3348 = vld [vmem:[#allocation6 + $0xc0] sm:$0xf]
    %v3349 = vld [vmem:[#allocation6 + $0xc4] sm:$0xf]
    %v3350 = vld [vmem:[#allocation6 + $0xc8] sm:$0xf]
    %v3351 = vld [vmem:[#allocation6 + $0xcc] sm:$0xf]
    %v3352 = vld [vmem:[#allocation6 + $0xd0] sm:$0xf]
    %v3353 = vld [vmem:[#allocation6 + $0xd4] sm:$0xf]
    %v3354 = vld [vmem:[#allocation6 + $0xd8] sm:$0xf]
    %v3355 = vld [vmem:[#allocation6 + $0xdc] sm:$0xf]
    %v3356 = vld [vmem:[#allocation6 + $0xe0] sm:$0xf]
    %v3357 = vld [vmem:[#allocation6 + $0xe4] sm:$0xf]
    %v3358 = vld [vmem:[#allocation6 + $0xe8] sm:$0xf]
    %v3359 = vld [vmem:[#allocation6 + $0xec] sm:$0xf]
    %v3360 = vld [vmem:[#allocation6 + $0xf0] sm:$0xf]
    %v3361 = vld [vmem:[#allocation6 + $0xf4] sm:$0xf]
    %v3362 = vld [vmem:[#allocation6 + $0xf8] sm:$0xf]
    %v3363 = vld [vmem:[#allocation6 + $0xfc] sm:$0xf]
    %v3428 = vunpack.c.l.b16 %v3300
    %v3429 = vunpack.c.l.b16 %v3301
    %v3430 = vunpack.c.l.b16 %v3302
    %v3431 = vunpack.c.l.b16 %v3303
    %v3432 = vunpack.c.l.b16 %v3304
    %v3433 = vunpack.c.l.b16 %v3305
    %v3434 = vunpack.c.l.b16 %v3306
    %v3435 = vunpack.c.l.b16 %v3307
    %v3436 = vunpack.c.l.b16 %v3308
    %v3437 = vunpack.c.l.b16 %v3309
    %v3438 = vunpack.c.l.b16 %v3310
    %v3439 = vunpack.c.l.b16 %v3311
    %v3440 = vunpack.c.l.b16 %v3312
    %v3441 = vunpack.c.l.b16 %v3313
    %v3442 = vunpack.c.l.b16 %v3314
    %v3443 = vunpack.c.l.b16 %v3315
    %v3444 = vunpack.c.l.b16 %v3316
    %v3445 = vunpack.c.l.b16 %v3317
    %v3446 = vunpack.c.l.b16 %v3318
    %v3447 = vunpack.c.l.b16 %v3319
    %v3448 = vunpack.c.l.b16 %v3320
    %v3449 = vunpack.c.l.b16 %v3321
    %v3450 = vunpack.c.l.b16 %v3322
    %v3451 = vunpack.c.l.b16 %v3323
    %v3452 = vunpack.c.l.b16 %v3324
    %v3453 = vunpack.c.l.b16 %v3325
    %v3454 = vunpack.c.l.b16 %v3326
    %v3455 = vunpack.c.l.b16 %v3327
    %v3456 = vunpack.c.l.b16 %v3328
    %v3457 = vunpack.c.l.b16 %v3329
    %v3458 = vunpack.c.l.b16 %v3330
    %v3459 = vunpack.c.l.b16 %v3331
    %v3460 = vunpack.c.l.b16 %v3332
    %v3461 = vunpack.c.l.b16 %v3333
    %v3462 = vunpack.c.l.b16 %v3334
    %v3463 = vunpack.c.l.b16 %v3335
    %v3464 = vunpack.c.l.b16 %v3336
    %v3465 = vunpack.c.l.b16 %v3337
    %v3466 = vunpack.c.l.b16 %v3338
    %v3467 = vunpack.c.l.b16 %v3339
    %v3468 = vunpack.c.l.b16 %v3340
    %v3469 = vunpack.c.l.b16 %v3341
    %v3470 = vunpack.c.l.b16 %v3342
    %v3471 = vunpack.c.l.b16 %v3343
    %v3472 = vunpack.c.l.b16 %v3344
    %v3473 = vunpack.c.l.b16 %v3345
    %v3474 = vunpack.c.l.b16 %v3346
    %v3475 = vunpack.c.l.b16 %v3347
    %v3476 = vunpack.c.l.b16 %v3348
    %v3477 = vunpack.c.l.b16 %v3349
    %v3478 = vunpack.c.l.b16 %v3350
    %v3479 = vunpack.c.l.b16 %v3351
    %v3480 = vunpack.c.l.b16 %v3352
    %v3481 = vunpack.c.l.b16 %v3353
    %v3482 = vunpack.c.l.b16 %v3354
    %v3483 = vunpack.c.l.b16 %v3355
    %v3484 = vunpack.c.l.b16 %v3356
    %v3485 = vunpack.c.l.b16 %v3357
    %v3486 = vunpack.c.l.b16 %v3358
    %v3487 = vunpack.c.l.b16 %v3359
    %v3488 = vunpack.c.l.b16 %v3360
    %v3489 = vunpack.c.l.b16 %v3361
    %v3490 = vunpack.c.l.b16 %v3362
    %v3491 = vunpack.c.l.b16 %v3363
    %v3492 = vpack.c.b16 %v3429, %v3428
    %v3493 = vpack.c.b16 %v3431, %v3430
    %v3494 = vpack.c.b16 %v3433, %v3432
    %v3495 = vpack.c.b16 %v3435, %v3434
    %v3496 = vpack.c.b16 %v3437, %v3436
    %v3497 = vpack.c.b16 %v3439, %v3438
    %v3498 = vpack.c.b16 %v3441, %v3440
    %v3499 = vpack.c.b16 %v3443, %v3442
    %v3500 = vpack.c.b16 %v3445, %v3444
    %v3501 = vpack.c.b16 %v3447, %v3446
    %v3502 = vpack.c.b16 %v3449, %v3448
    %v3503 = vpack.c.b16 %v3451, %v3450
    %v3504 = vpack.c.b16 %v3453, %v3452
    %v3505 = vpack.c.b16 %v3455, %v3454
    %v3506 = vpack.c.b16 %v3457, %v3456
    %v3507 = vpack.c.b16 %v3459, %v3458
    %v3508 = vpack.c.b16 %v3461, %v3460
    %v3509 = vpack.c.b16 %v3463, %v3462
    %v3510 = vpack.c.b16 %v3465, %v3464
    %v3511 = vpack.c.b16 %v3467, %v3466
    %v3512 = vpack.c.b16 %v3469, %v3468
    %v3513 = vpack.c.b16 %v3471, %v3470
    %v3514 = vpack.c.b16 %v3473, %v3472
    %v3515 = vpack.c.b16 %v3475, %v3474
    %v3516 = vpack.c.b16 %v3477, %v3476
    %v3517 = vpack.c.b16 %v3479, %v3478
    %v3518 = vpack.c.b16 %v3481, %v3480
    %v3519 = vpack.c.b16 %v3483, %v3482
    %v3520 = vpack.c.b16 %v3485, %v3484
    %v3521 = vpack.c.b16 %v3487, %v3486
    %v3522 = vpack.c.b16 %v3489, %v3488
    %v3523 = vpack.c.b16 %v3491, %v3490
    %3556 = vmatpush.bf16.msra.mxu0 %v3499
    %3557 = vmatpush.bf16.msra.mxu0 %v3498
    %3558 = vmatpush.bf16.msra.mxu0 %v3497
    %3559 = vmatpush.bf16.msra.mxu0 %v3496
    %3560 = vmatpush.bf16.msra.mxu0 %v3495
    %3561 = vmatpush.bf16.msra.mxu0 %v3494
    %3562 = vmatpush.bf16.msra.mxu0 %v3493
    %3563 = vmatpush.bf16.msra.mxu0 %v3492
    %3564 = vmatmul.bf16.gmra.mxu0 %v88
    %v3565 = vpop.f32.mrf.mxu0
    %v3566 = vadd.f32 0.0, %v3565
    %v3567 = vpop.f32.mrf.mxu0
    %3568 = vdwg.mxu0
    %3569 = vmatpush.bf16.msra.mxu0 %v3507
    %3570 = vmatpush.bf16.msra.mxu0 %v3506
    %3571 = vmatpush.bf16.msra.mxu0 %v3505
    %3572 = vmatpush.bf16.msra.mxu0 %v3504
    %3573 = vmatpush.bf16.msra.mxu0 %v3503
    %3574 = vmatpush.bf16.msra.mxu0 %v3502
    %3575 = vmatpush.bf16.msra.mxu0 %v3501
    %3576 = vmatpush.bf16.msra.mxu0 %v3500
    %3577 = vmatmul.bf16.gmra.mxu0 %v89
    %v3578 = vpop.f32.mrf.mxu0
    %v3579 = vadd.f32 %v3566, %v3578
    %v3580 = vpop.f32.mrf.mxu0
    %3581 = vdwg.mxu0
    %3582 = vmatpush.bf16.msra.mxu0 %v3515
    %3583 = vmatpush.bf16.msra.mxu0 %v3514
    %3584 = vmatpush.bf16.msra.mxu0 %v3513
    %3585 = vmatpush.bf16.msra.mxu0 %v3512
    %3586 = vmatpush.bf16.msra.mxu0 %v3511
    %3587 = vmatpush.bf16.msra.mxu0 %v3510
    %3588 = vmatpush.bf16.msra.mxu0 %v3509
    %3589 = vmatpush.bf16.msra.mxu0 %v3508
    %3590 = vmatmul.bf16.gmra.mxu0 %v90
    %v3591 = vpop.f32.mrf.mxu0
    %v3592 = vadd.f32 %v3579, %v3591
    %v3593 = vpop.f32.mrf.mxu0
    %3594 = vdwg.mxu0
    %3595 = vmatpush.bf16.msra.mxu0 %v3523
    %3596 = vmatpush.bf16.msra.mxu0 %v3522
    %3597 = vmatpush.bf16.msra.mxu0 %v3521
    %3598 = vmatpush.bf16.msra.mxu0 %v3520
    %3599 = vmatpush.bf16.msra.mxu0 %v3519
    %3600 = vmatpush.bf16.msra.mxu0 %v3518
    %3601 = vmatpush.bf16.msra.mxu0 %v3517
    %3602 = vmatpush.bf16.msra.mxu0 %v3516
    %3603 = vmatmul.bf16.gmra.mxu0 %v91
    %v3604 = vpop.f32.mrf.mxu0
    %v3605 = vadd.f32 %v3592, %v3604
    %v3606 = vpop.f32.mrf.mxu0
    %3607 = vdwg.mxu0
    %v3608 = vpack.c.bf16 %v3605, %v3605
    %v3609 = vld [vmem:[%s7] sm:$0xf]
    %v3610 = vld [vmem:[%s7 + $0x4] sm:$0xf]
    %v3611 = vld [vmem:[%s8] sm:$0xff]
    %v3612 = vld [vmem:[%s8 + $0x8] sm:$0xff]
    %3614 = vset.pattern.permute.xlu0 0
    %3615 = vperm.xlu0 %3614, %v3611
    %v3616 = vpop.permute.xlu0 %3615
    %3619 = vset.pattern.permute.xlu0 0
    %3620 = vperm.xlu0 %3619, %v3612
    %v3621 = vpop.permute.xlu0 %3620
    %v3625 = vunpack.c.l.b16 %v3609
    %v3626 = vunpack.c.l.b16 %v3610
    %v3627 = vpack.c.b16 %v3626, %v3625
    %v3629 = vsel %vm99, %v3627, 0
    %v3632 = vsel %vm103, %v3608, 0
    %3634 = vmatpush.bf16.msra.mxu0 0
    %3635 = vmatpush.bf16.msra.mxu0 0
    %3636 = vmatpush.bf16.msra.mxu0 0
    %3637 = vmatpush.bf16.msra.mxu0 0
    %3638 = vmatpush.bf16.msra.mxu0 0
    %3639 = vmatpush.bf16.msra.mxu0 0
    %3640 = vmatpush.bf16.msra.mxu0 0
    %3641 = vmatpush.bf16.msra.mxu0 %v3632
    %3642 = vmatmul.bf16.gmra.mxu0 %v3629
    %v3643 = vpop.f32.mrf.mxu0
    %v3644 = vadd.f32 %v3616, %v3643
    %v3645 = vpop.f32.mrf.mxu0
    %v3646 = vadd.f32 %v3621, %v3645
    %3647 = vdwg.mxu0
    %v3648 = vld [vmem:[%s9] sm:$0xf]
    %v3649 = vld [vmem:[%s9 + $0x4] sm:$0xf]
    %v3650 = vld [vmem:[%s10] sm:$0xff]
    %v3651 = vld [vmem:[%s10 + $0x8] sm:$0xff]
    %3653 = vset.pattern.permute.xlu0 0
    %3654 = vperm.xlu0 %3653, %v3650
    %v3655 = vpop.permute.xlu0 %3654
    %3658 = vset.pattern.permute.xlu0 0
    %3659 = vperm.xlu0 %3658, %v3651
    %v3660 = vpop.permute.xlu0 %3659
    %v3664 = vunpack.c.l.b16 %v3648
    %v3665 = vunpack.c.l.b16 %v3649
    %v3666 = vpack.c.b16 %v3665, %v3664
    %v3668 = vsel %vm99, %v3666, 0
    %v3671 = vsel %vm103, %v3299, 0
    %3673 = vmatpush.bf16.msra.mxu0 0
    %3674 = vmatpush.bf16.msra.mxu0 0
    %3675 = vmatpush.bf16.msra.mxu0 0
    %3676 = vmatpush.bf16.msra.mxu0 0
    %3677 = vmatpush.bf16.msra.mxu0 0
    %3678 = vmatpush.bf16.msra.mxu0 0
    %3679 = vmatpush.bf16.msra.mxu0 0
    %3680 = vmatpush.bf16.msra.mxu0 %v3671
    %3681 = vmatmul.bf16.gmra.mxu0 %v3668
    %v3682 = vpop.f32.mrf.mxu0
    %v3683 = vadd.f32 %v3655, %v3682
    %v3684 = vpop.f32.mrf.mxu0
    %v3685 = vadd.f32 %v3660, %v3684
    %3686 = vdwg.mxu0
    %v3687 = vadd.f32 %v3683, %v3644
    %v3688 = vadd.f32 %v3685, %v3646
    %v3689 = vmax.f32 %v3687, 0.0
    %v3690 = vmax.f32 %v3688, 0.0
    %3691 = vst [vmem:[%s11] sm:$0xff] %v3689
    %3692 = vst [vmem:[%s11 + $0x8] sm:$0xff] %v3690
    // Predicated region
    $region58: #{bottleneck_forward.1} parent=1 // pred_check
      _
    $region59: #{bottleneck_forward.1} parent=1 // pred_check_branch
      %3694 = sbr.rel (0) target = $region61
    $region60: #{bottleneck_forward.1} parent=1 // pred_region
      _
    $region61: #{bottleneck_forward.1} parent=1 // pred_fallthru
      _
    // Predicated region
    $region62: #{bottleneck_forward.1} parent=1 // pred_check
      _
    $region63: #{bottleneck_forward.1} parent=1 // pred_check_branch
      %3696 = sbr.rel (0) target = $region65
    $region64: #{bottleneck_forward.1} parent=1 // pred_region
      _
    $region65: #{bottleneck_forward.1} parent=1 // pred_fallthru
      _
    %3697 = vsyncpa [#allocation3], 1
    %3698 = vsyncpa [#allocation5], 1

</llo_original>
